<compile_context>
chip_gen: v5e
topology: v5e:2x2
jax: 0.10.0
libtpu: 0.0.40
codegen_flags: <defaults>
</compile_context>

<pallas_src>
import jax
import jax.numpy as jnp
from jax.experimental import pallas as pl
from jax.experimental.pallas import tpu as pltpu

# ---------------- configuration (small, consistent with the module) ----------
C_IN = 3                              # 3-D point input, as in NeuS
N_FREQS = 6                           # frequency bands of the positional encoding
HIDDEN = 64                           # MLP hidden width
C_OUT = 4                             # MLP output width (e.g. sdf + 3 features)
ENC_DIM = C_IN * (1 + 2 * N_FREQS)    # 3 * 13 = 39 encoded channels
ENC_PAD = 40                          # padded to a multiple of 8 sublanes

TM = 1024                             # points per grid step (lane axis)


# ---------------------------- Pallas kernel ----------------------------------
def _encnet_kernel(x_ref, w0_ref, b0_ref, w1_ref, b1_ref, w2_ref, b2_ref,
                   o_ref, e_ref):
    x = x_ref[...]                                     # (C_IN, TM)  f32
    tm = x.shape[1]

    # ---- frequency encoding into VMEM scratch E (ENC_PAD, TM) ---------------
    # Row ordering matches the reference: [x, sin(f0 x), cos(f0 x), sin(f1 x),...]
    e_ref[0:C_IN, :] = x
    s = jnp.sin(x)
    c = jnp.cos(x)
    for k in range(N_FREQS):
        r = C_IN * (1 + 2 * k)
        e_ref[r:r + C_IN, :] = s                       # sin(2^k x)
        e_ref[r + C_IN:r + 2 * C_IN, :] = c            # cos(2^k x)
        if k + 1 < N_FREQS:
            # double-angle recurrence (2x error growth per step, stable form)
            s, c = 2.0 * s * c, c * c - s * s
    # zero the padding row so the padded contraction is exact
    e_ref[ENC_DIM:ENC_PAD, :] = jnp.zeros((ENC_PAD - ENC_DIM, tm), jnp.float32)

    # ---- layer 0: one K=40 MXU dot over the whole encoding ------------------
    h = jnp.dot(w0_ref[...], e_ref[...],
                preferred_element_type=jnp.float32)    # (HIDDEN, TM)
    h = jnp.maximum(h + b0_ref[...], 0.0)

    # ---- hidden layer --------------------------------------------------------
    h = jnp.dot(w1_ref[...], h,
                preferred_element_type=jnp.float32) + b1_ref[...]
    h = jnp.maximum(h, 0.0)

    # ---- output layer (lane-dense (C_OUT, TM) store) -------------------------
    o_ref[...] = (jnp.dot(w2_ref[...], h,
                          preferred_element_type=jnp.float32) + b2_ref[...])


# ------------------------------ wrapper ---------------------------------------
@jax.jit
def encoding_with_network(x, w0t, b0, w1t, b1, w2t, b2):
    """x: (N, C_IN) f32 -> (N, C_OUT) f32.  Any N (last tile is padded)."""
    n = x.shape[0]
    n_pad = pl.cdiv(n, TM) * TM
    # channels-first, lane-dense layout for the kernel; pad points to TM multiple
    xt = jnp.pad(x, ((0, n_pad - n), (0, 0))).T        # (C_IN, n_pad)
    grid = (n_pad // TM,)

    flops = 2 * n_pad * (ENC_PAD * HIDDEN + HIDDEN * HIDDEN + HIDDEN * C_OUT)
    transcendentals = 2 * C_IN * n_pad
    bytes_accessed = 4 * (n_pad * (C_IN + C_OUT)
                          + HIDDEN * ENC_PAD + HIDDEN
                          + HIDDEN * HIDDEN + HIDDEN
                          + C_OUT * HIDDEN + C_OUT)

    out_t = pl.pallas_call(
        _encnet_kernel,
        out_shape=jax.ShapeDtypeStruct((C_OUT, n_pad), jnp.float32),
        grid_spec=pltpu.PrefetchScalarGridSpec(
            num_scalar_prefetch=0,
            grid=grid,
            in_specs=[
                pl.BlockSpec((C_IN, TM), lambda i: (0, i)),           # x tile
                pl.BlockSpec((HIDDEN, ENC_PAD), lambda i: (0, 0)),    # W0 (out,in)
                pl.BlockSpec((HIDDEN, 1), lambda i: (0, 0)),          # b0
                pl.BlockSpec((HIDDEN, HIDDEN), lambda i: (0, 0)),     # W1
                pl.BlockSpec((HIDDEN, 1), lambda i: (0, 0)),          # b1
                pl.BlockSpec((C_OUT, HIDDEN), lambda i: (0, 0)),      # W2
                pl.BlockSpec((C_OUT, 1), lambda i: (0, 0)),           # b2
            ],
            out_specs=pl.BlockSpec((C_OUT, TM), lambda i: (0, i)),
            scratch_shapes=[pltpu.VMEM((ENC_PAD, TM), jnp.float32)],  # encoded E
        ),
        compiler_params=pltpu.CompilerParams(
            dimension_semantics=("parallel",)),
        cost_estimate=pl.CostEstimate(
            flops=flops, transcendentals=transcendentals,
            bytes_accessed=bytes_accessed),
    )(xt, w0t, b0, w1t, b1, w2t, b2)

    return out_t[:, :n].T                              # back to (N, C_OUT)


# ----------------------- pure-JAX reference (correctness) --------------------
def reference(x, w0_full, b0, w1, b1, w2, b2):
    feats = [x]
    for k in range(N_FREQS):
        f = jnp.float32(2.0 ** k)
        feats.append(jnp.sin(f * x))
        feats.append(jnp.cos(f * x))
    enc = jnp.concatenate(feats, axis=-1)              # (N, ENC_DIM)
    h = jnp.maximum(enc @ w0_full + b0, 0.0)
    h = jnp.maximum(h @ w1 + b1, 0.0)
    return h @ w2 + b2


# --------------------------------- main ---------------------------------------
if __name__ == "__main__":
    key = jax.random.PRNGKey(0)
    k_x, k0, kb0, k1, kb1, k2, kb2 = jax.random.split(key, 7)

    N = 4000                                           # points (padded to 4096 -> grid of 4)
    x = jax.random.normal(k_x, (N, C_IN), dtype=jnp.float32)

    # Deterministic synthetic parameters in the natural (in, out) layout.
    s0 = float(ENC_DIM) ** -0.5
    s1 = float(HIDDEN) ** -0.5
    w0 = jax.random.uniform(k0, (ENC_DIM, HIDDEN), minval=-s0, maxval=s0,
                            dtype=jnp.float32)
    b0 = jax.random.uniform(kb0, (HIDDEN,), minval=-s0, maxval=s0,
                            dtype=jnp.float32)
    w1 = jax.random.uniform(k1, (HIDDEN, HIDDEN), minval=-s1, maxval=s1,
                            dtype=jnp.float32)
    b1 = jax.random.uniform(kb1, (HIDDEN,), minval=-s1, maxval=s1,
                            dtype=jnp.float32)
    w2 = jax.random.uniform(k2, (HIDDEN, C_OUT), minval=-s1, maxval=s1,
                            dtype=jnp.float32)
    b2 = jax.random.uniform(kb2, (C_OUT,), minval=-s1, maxval=s1,
                            dtype=jnp.float32)

    # Kernel-layout (channels-first) parameters: W stored (out, in), biases (out, 1).
    w0t = jnp.pad(w0, ((0, ENC_PAD - ENC_DIM), (0, 0))).T   # (HIDDEN, ENC_PAD)
    w1t = w1.T                                               # (HIDDEN, HIDDEN)
    w2t = w2.T                                               # (C_OUT, HIDDEN)
    b0k = b0.reshape(HIDDEN, 1)
    b1k = b1.reshape(HIDDEN, 1)
    b2k = b2.reshape(C_OUT, 1)

    out = encoding_with_network(x, w0t, b0k, w1t, b1k, w2t, b2k)
    out = jax.block_until_ready(out)

    ref = reference(x, w0, b0, w1, b1, w2, b2)
    assert out.shape == (N, C_OUT)
    max_err = float(jnp.max(jnp.abs(out - ref)))
    # Tolerance accounts for the double-angle recurrence (~1e-5 drift vs. direct
    # sin/cos evaluation); real layout/weight bugs would be O(0.1) or larger.
    assert jnp.allclose(out, ref, rtol=1e-3, atol=5e-4), max_err

    # TODO(synk): update_step() is training-schedule bookkeeping (no forward
    # compute) and has no kernel equivalent.
    print("KERNEL_OK")
</pallas_src>

<mosaic_0001>
module attributes {stable_mosaic.version = 11 : i64} {
  func.func @_encnet_kernel(%arg0: i32, %arg1: memref<3x1024xf32, #tpu.memory_space<vmem>>, %arg2: memref<64x40xf32, #tpu.memory_space<vmem>>, %arg3: memref<64x1xf32, #tpu.memory_space<vmem>>, %arg4: memref<64x64xf32, #tpu.memory_space<vmem>>, %arg5: memref<64x1xf32, #tpu.memory_space<vmem>>, %arg6: memref<4x64xf32, #tpu.memory_space<vmem>>, %arg7: memref<4x1xf32, #tpu.memory_space<vmem>>, %arg8: memref<4x1024xf32, #tpu.memory_space<vmem>>, %arg9: memref<40x1024xf32, #tpu.memory_space<vmem>>) attributes {dimension_semantics = [#tpu.dimension_semantics<parallel>], iteration_bounds = array<i64: 4>, scalar_prefetch = 0 : i64, scratch_operands = 1 : i64, tpu.core_type = #tpu.core_type<tc>, window_params = [{transform_indices = @transform_0, window_bounds = array<i64: 3, 1024>}, {pipeline_mode = #tpu.pipeline_mode<synchronous>, transform_indices = @transform_1, window_bounds = array<i64: 64, 40>}, {pipeline_mode = #tpu.pipeline_mode<synchronous>, transform_indices = @transform_2, window_bounds = array<i64: 64, 1>}, {pipeline_mode = #tpu.pipeline_mode<synchronous>, transform_indices = @transform_3, window_bounds = array<i64: 64, 64>}, {pipeline_mode = #tpu.pipeline_mode<synchronous>, transform_indices = @transform_4, window_bounds = array<i64: 64, 1>}, {pipeline_mode = #tpu.pipeline_mode<synchronous>, transform_indices = @transform_5, window_bounds = array<i64: 4, 64>}, {pipeline_mode = #tpu.pipeline_mode<synchronous>, transform_indices = @transform_6, window_bounds = array<i64: 4, 1>}, {transform_indices = @transform_7, window_bounds = array<i64: 4, 1024>}]} {
    %c0 = arith.constant 0 : index
    %c0_0 = arith.constant 0 : index
    %0 = vector.load %arg1[%c0, %c0_0] : memref<3x1024xf32, #tpu.memory_space<vmem>>, vector<3x1024xf32>
    %c0_1 = arith.constant 0 : index
    %c0_2 = arith.constant 0 : index
    %1 = vector.load %arg9[%c0_1, %c0_2] : memref<40x1024xf32, #tpu.memory_space<vmem>>, vector<3x1024xf32>
    tpu.vector_store %arg9[%c0_1, %c0_2], %0 {strides = array<i32>} : memref<40x1024xf32, #tpu.memory_space<vmem>>, vector<3x1024xf32>,
    %2 = math.sin %0 : vector<3x1024xf32>
    %3 = math.cos %0 : vector<3x1024xf32>
    %c3 = arith.constant 3 : index
    %c0_3 = arith.constant 0 : index
    %4 = vector.load %arg9[%c3, %c0_3] : memref<40x1024xf32, #tpu.memory_space<vmem>>, vector<3x1024xf32>
    tpu.vector_store %arg9[%c3, %c0_3], %2 {strides = array<i32>} : memref<40x1024xf32, #tpu.memory_space<vmem>>, vector<3x1024xf32>,
    %c6 = arith.constant 6 : index
    %c0_4 = arith.constant 0 : index
    %5 = vector.load %arg9[%c6, %c0_4] : memref<40x1024xf32, #tpu.memory_space<vmem>>, vector<3x1024xf32>
    tpu.vector_store %arg9[%c6, %c0_4], %3 {strides = array<i32>} : memref<40x1024xf32, #tpu.memory_space<vmem>>, vector<3x1024xf32>,
    %cst = arith.constant 2.000000e+00 : f32
    %6 = vector.broadcast %cst : f32 to vector<3x1024xf32>
    %7 = arith.mulf %6, %2 : vector<3x1024xf32>
    %8 = arith.mulf %7, %3 : vector<3x1024xf32>
    %9 = arith.mulf %3, %3 : vector<3x1024xf32>
    %10 = arith.mulf %2, %2 : vector<3x1024xf32>
    %11 = arith.subf %9, %10 : vector<3x1024xf32>
    %c9 = arith.constant 9 : index
    %c0_5 = arith.constant 0 : index
    %12 = vector.load %arg9[%c9, %c0_5] : memref<40x1024xf32, #tpu.memory_space<vmem>>, vector<3x1024xf32>
    tpu.vector_store %arg9[%c9, %c0_5], %8 {strides = array<i32>} : memref<40x1024xf32, #tpu.memory_space<vmem>>, vector<3x1024xf32>,
    %c12 = arith.constant 12 : index
    %c0_6 = arith.constant 0 : index
    %13 = vector.load %arg9[%c12, %c0_6] : memref<40x1024xf32, #tpu.memory_space<vmem>>, vector<3x1024xf32>
    tpu.vector_store %arg9[%c12, %c0_6], %11 {strides = array<i32>} : memref<40x1024xf32, #tpu.memory_space<vmem>>, vector<3x1024xf32>,
    %cst_7 = arith.constant 2.000000e+00 : f32
    %14 = vector.broadcast %cst_7 : f32 to vector<3x1024xf32>
    %15 = arith.mulf %14, %8 : vector<3x1024xf32>
    %16 = arith.mulf %15, %11 : vector<3x1024xf32>
    %17 = arith.mulf %11, %11 : vector<3x1024xf32>
    %18 = arith.mulf %8, %8 : vector<3x1024xf32>
    %19 = arith.subf %17, %18 : vector<3x1024xf32>
    %c15 = arith.constant 15 : index
    %c0_8 = arith.constant 0 : index
    %20 = vector.load %arg9[%c15, %c0_8] : memref<40x1024xf32, #tpu.memory_space<vmem>>, vector<3x1024xf32>
    tpu.vector_store %arg9[%c15, %c0_8], %16 {strides = array<i32>} : memref<40x1024xf32, #tpu.memory_space<vmem>>, vector<3x1024xf32>,
    %c18 = arith.constant 18 : index
    %c0_9 = arith.constant 0 : index
    %21 = vector.load %arg9[%c18, %c0_9] : memref<40x1024xf32, #tpu.memory_space<vmem>>, vector<3x1024xf32>
    tpu.vector_store %arg9[%c18, %c0_9], %19 {strides = array<i32>} : memref<40x1024xf32, #tpu.memory_space<vmem>>, vector<3x1024xf32>,
    %cst_10 = arith.constant 2.000000e+00 : f32
    %22 = vector.broadcast %cst_10 : f32 to vector<3x1024xf32>
    %23 = arith.mulf %22, %16 : vector<3x1024xf32>
    %24 = arith.mulf %23, %19 : vector<3x1024xf32>
    %25 = arith.mulf %19, %19 : vector<3x1024xf32>
    %26 = arith.mulf %16, %16 : vector<3x1024xf32>
    %27 = arith.subf %25, %26 : vector<3x1024xf32>
    %c21 = arith.constant 21 : index
    %c0_11 = arith.constant 0 : index
    %28 = vector.load %arg9[%c21, %c0_11] : memref<40x1024xf32, #tpu.memory_space<vmem>>, vector<3x1024xf32>
    tpu.vector_store %arg9[%c21, %c0_11], %24 {strides = array<i32>} : memref<40x1024xf32, #tpu.memory_space<vmem>>, vector<3x1024xf32>,
    %c24 = arith.constant 24 : index
    %c0_12 = arith.constant 0 : index
    %29 = vector.load %arg9[%c24, %c0_12] : memref<40x1024xf32, #tpu.memory_space<vmem>>, vector<3x1024xf32>
    tpu.vector_store %arg9[%c24, %c0_12], %27 {strides = array<i32>} : memref<40x1024xf32, #tpu.memory_space<vmem>>, vector<3x1024xf32>,
    %cst_13 = arith.constant 2.000000e+00 : f32
    %30 = vector.broadcast %cst_13 : f32 to vector<3x1024xf32>
    %31 = arith.mulf %30, %24 : vector<3x1024xf32>
    %32 = arith.mulf %31, %27 : vector<3x1024xf32>
    %33 = arith.mulf %27, %27 : vector<3x1024xf32>
    %34 = arith.mulf %24, %24 : vector<3x1024xf32>
    %35 = arith.subf %33, %34 : vector<3x1024xf32>
    %c27 = arith.constant 27 : index
    %c0_14 = arith.constant 0 : index
    %36 = vector.load %arg9[%c27, %c0_14] : memref<40x1024xf32, #tpu.memory_space<vmem>>, vector<3x1024xf32>
    tpu.vector_store %arg9[%c27, %c0_14], %32 {strides = array<i32>} : memref<40x1024xf32, #tpu.memory_space<vmem>>, vector<3x1024xf32>,
    %c30 = arith.constant 30 : index
    %c0_15 = arith.constant 0 : index
    %37 = vector.load %arg9[%c30, %c0_15] : memref<40x1024xf32, #tpu.memory_space<vmem>>, vector<3x1024xf32>
    tpu.vector_store %arg9[%c30, %c0_15], %35 {strides = array<i32>} : memref<40x1024xf32, #tpu.memory_space<vmem>>, vector<3x1024xf32>,
    %cst_16 = arith.constant 2.000000e+00 : f32
    %38 = vector.broadcast %cst_16 : f32 to vector<3x1024xf32>
    %39 = arith.mulf %38, %32 : vector<3x1024xf32>
    %40 = arith.mulf %39, %35 : vector<3x1024xf32>
    %41 = arith.mulf %35, %35 : vector<3x1024xf32>
    %42 = arith.mulf %32, %32 : vector<3x1024xf32>
    %43 = arith.subf %41, %42 : vector<3x1024xf32>
    %c33 = arith.constant 33 : index
    %c0_17 = arith.constant 0 : index
    %44 = vector.load %arg9[%c33, %c0_17] : memref<40x1024xf32, #tpu.memory_space<vmem>>, vector<3x1024xf32>
    tpu.vector_store %arg9[%c33, %c0_17], %40 {strides = array<i32>} : memref<40x1024xf32, #tpu.memory_space<vmem>>, vector<3x1024xf32>,
    %c36 = arith.constant 36 : index
    %c0_18 = arith.constant 0 : index
    %45 = vector.load %arg9[%c36, %c0_18] : memref<40x1024xf32, #tpu.memory_space<vmem>>, vector<3x1024xf32>
    tpu.vector_store %arg9[%c36, %c0_18], %43 {strides = array<i32>} : memref<40x1024xf32, #tpu.memory_space<vmem>>, vector<3x1024xf32>,
    %cst_19 = arith.constant 0.000000e+00 : f32
    %46 = vector.broadcast %cst_19 : f32 to vector<1x1024xf32>
    %c39 = arith.constant 39 : index
    %c0_20 = arith.constant 0 : index
    %47 = vector.load %arg9[%c39, %c0_20] : memref<40x1024xf32, #tpu.memory_space<vmem>>, vector<1x1024xf32>
    tpu.vector_store %arg9[%c39, %c0_20], %46 {strides = array<i32>} : memref<40x1024xf32, #tpu.memory_space<vmem>>, vector<1x1024xf32>,
    %c0_21 = arith.constant 0 : index
    %c0_22 = arith.constant 0 : index
    %48 = vector.load %arg2[%c0_21, %c0_22] : memref<64x40xf32, #tpu.memory_space<vmem>>, vector<64x40xf32>
    %c0_23 = arith.constant 0 : index
    %c0_24 = arith.constant 0 : index
    %49 = vector.load %arg9[%c0_23, %c0_24] : memref<40x1024xf32, #tpu.memory_space<vmem>>, vector<40x1024xf32>
    %cst_25 = arith.constant dense<0.000000e+00> : vector<64x1024xf32>
    %50 = tpu.matmul %48, %49, %cst_25 {dimension_numbers = #tpu.dot_dimension_numbers<[1], [0], [0], [1], [0, 0, 1, 1], [], []>} : vector<64x40xf32>, vector<40x1024xf32>, vector<64x1024xf32> -> vector<64x1024xf32>
    %c0_26 = arith.constant 0 : index
    %c0_27 = arith.constant 0 : index
    %51 = vector.load %arg3[%c0_26, %c0_27] : memref<64x1xf32, #tpu.memory_space<vmem>>, vector<64x1xf32>
    %52 = vector.broadcast %51 : vector<64x1xf32> to vector<64x1024xf32>
    %53 = arith.addf %50, %52 : vector<64x1024xf32>
    %cst_28 = arith.constant 0.000000e+00 : f32
    %54 = vector.broadcast %cst_28 : f32 to vector<64x1024xf32>
    %55 = arith.maximumf %53, %54 : vector<64x1024xf32>
    %c0_29 = arith.constant 0 : index
    %c0_30 = arith.constant 0 : index
    %56 = vector.load %arg4[%c0_29, %c0_30] : memref<64x64xf32, #tpu.memory_space<vmem>>, vector<64x64xf32>
    %cst_31 = arith.constant dense<0.000000e+00> : vector<64x1024xf32>
    %57 = tpu.matmul %56, %55, %cst_31 {dimension_numbers = #tpu.dot_dimension_numbers<[1], [0], [0], [1], [0, 0, 1, 1], [], []>} : vector<64x64xf32>, vector<64x1024xf32>, vector<64x1024xf32> -> vector<64x1024xf32>
    %c0_32 = arith.constant 0 : index
    %c0_33 = arith.constant 0 : index
    %58 = vector.load %arg5[%c0_32, %c0_33] : memref<64x1xf32, #tpu.memory_space<vmem>>, vector<64x1xf32>
    %59 = vector.broadcast %58 : vector<64x1xf32> to vector<64x1024xf32>
    %60 = arith.addf %57, %59 : vector<64x1024xf32>
    %cst_34 = arith.constant 0.000000e+00 : f32
    %61 = vector.broadcast %cst_34 : f32 to vector<64x1024xf32>
    %62 = arith.maximumf %60, %61 : vector<64x1024xf32>
    %c0_35 = arith.constant 0 : index
    %c0_36 = arith.constant 0 : index
    %63 = vector.load %arg6[%c0_35, %c0_36] : memref<4x64xf32, #tpu.memory_space<vmem>>, vector<4x64xf32>
    %cst_37 = arith.constant dense<0.000000e+00> : vector<4x1024xf32>
    %64 = tpu.matmul %63, %62, %cst_37 {dimension_numbers = #tpu.dot_dimension_numbers<[1], [0], [0], [1], [0, 0, 1, 1], [], []>} : vector<4x64xf32>, vector<64x1024xf32>, vector<4x1024xf32> -> vector<4x1024xf32>
    %c0_38 = arith.constant 0 : index
    %c0_39 = arith.constant 0 : index
    %65 = vector.load %arg7[%c0_38, %c0_39] : memref<4x1xf32, #tpu.memory_space<vmem>>, vector<4x1xf32>
    %66 = vector.broadcast %65 : vector<4x1xf32> to vector<4x1024xf32>
    %67 = arith.addf %64, %66 : vector<4x1024xf32>
    %c0_40 = arith.constant 0 : index
    %c0_41 = arith.constant 0 : index
    %68 = vector.load %arg8[%c0_40, %c0_41] : memref<4x1024xf32, #tpu.memory_space<vmem>>, vector<4x1024xf32>
    tpu.vector_store %arg8[%c0_40, %c0_41], %67 {strides = array<i32>} : memref<4x1024xf32, #tpu.memory_space<vmem>>, vector<4x1024xf32>,
    return
  }
  func.func @transform_0(%arg0: i32) -> (i32, i32) {
    %c0_i32 = arith.constant 0 : i32
    %c0_i32_0 = arith.constant 0 : i32
    return %c0_i32, %arg0 : i32, i32
  }
  func.func @transform_1(%arg0: i32) -> (i32, i32) {
    %c0_i32 = arith.constant 0 : i32
    %c0_i32_0 = arith.constant 0 : i32
    %c0_i32_1 = arith.constant 0 : i32
    return %c0_i32, %c0_i32_0 : i32, i32
  }
  func.func @transform_2(%arg0: i32) -> (i32, i32) {
    %c0_i32 = arith.constant 0 : i32
    %c0_i32_0 = arith.constant 0 : i32
    %c0_i32_1 = arith.constant 0 : i32
    return %c0_i32, %c0_i32_0 : i32, i32
  }
  func.func @transform_3(%arg0: i32) -> (i32, i32) {
    %c0_i32 = arith.constant 0 : i32
    %c0_i32_0 = arith.constant 0 : i32
    %c0_i32_1 = arith.constant 0 : i32
    return %c0_i32, %c0_i32_0 : i32, i32
  }
  func.func @transform_4(%arg0: i32) -> (i32, i32) {
    %c0_i32 = arith.constant 0 : i32
    %c0_i32_0 = arith.constant 0 : i32
    %c0_i32_1 = arith.constant 0 : i32
    return %c0_i32, %c0_i32_0 : i32, i32
  }
  func.func @transform_5(%arg0: i32) -> (i32, i32) {
    %c0_i32 = arith.constant 0 : i32
    %c0_i32_0 = arith.constant 0 : i32
    %c0_i32_1 = arith.constant 0 : i32
    return %c0_i32, %c0_i32_0 : i32, i32
  }
  func.func @transform_6(%arg0: i32) -> (i32, i32) {
    %c0_i32 = arith.constant 0 : i32
    %c0_i32_0 = arith.constant 0 : i32
    %c0_i32_1 = arith.constant 0 : i32
    return %c0_i32, %c0_i32_0 : i32, i32
  }
  func.func @transform_7(%arg0: i32) -> (i32, i32) {
    %c0_i32 = arith.constant 0 : i32
    %c0_i32_0 = arith.constant 0 : i32
    return %c0_i32, %arg0 : i32, i32
  }
}

</mosaic_0001>

<llo_original>
// kernel: encoding_with_network.1
$region0: #{encoding_with_network.1}
  #allocation0 [shape = 'u32[]', space=smem, size = 0x4, offset = 0x4, fixed_abs, tag = 'smem constant byte address 0x4 - core index']
  #allocation1 [shape = 'u32[72,128]{1,0:T(1,128)}', space=vmem, size = 0x9000, scoped, tag = 'internal scratch']
  #allocation2 [shape = 'f32[40,1024]{1,0:T(8,128)}', space=vmem, size = 0x28000, scoped, tag = 'scratch operand']
  %s0 = inlined_call_operand.vmem [shape: f32[3,4096], index: 0, kind: input, shape index: {}]
  %s1 = inlined_call_operand.vmem [shape: f32[64,40], index: 1, kind: input, shape index: {}]
  %s2 = inlined_call_operand.vmem [shape: f32[64,1], index: 2, kind: input, shape index: {}]
  %s3 = inlined_call_operand.vmem [shape: f32[64,64], index: 3, kind: input, shape index: {}]
  %s4 = inlined_call_operand.vmem [shape: f32[64,1], index: 4, kind: input, shape index: {}]
  %s5 = inlined_call_operand.vmem [shape: f32[4,64], index: 5, kind: input, shape index: {}]
  %s6 = inlined_call_operand.vmem [shape: f32[4,1], index: 6, kind: input, shape index: {}]
  %s7 = inlined_call_operand.vmem [shape: f32[4,4096], index: 7, kind: output, shape index: {}]
  %s8 = sld [smem:[#allocation0]]
  $region61: #{encoding_with_network.1} parent=0
    _
  %s10 = ssub.s32 1, %s8
  %s11 = scalar_select 0, %s10, %s8
  loop: start=0, step=1, limit=6
  $region2: #{encoding_with_network.1} parent=0 // loop_pre_header
    _
  $region3: #{encoding_with_network.1} parent=0 // loop_header
    %s13 = sphi 0, %s17
    %p14 = scmp.ge.s32.totalorder %s13, 6
    %s23 = sphi 0, %s25
    %s26 = sphi 0, %s23
    %s27 = sphi 0, %s26
    %s43 = sphi 0, %s27
    %s47 = sphi 0, %s47
    %s49 = sphi 0, %s47
    %s50 = sphi 0, %s49
    %s64 = sphi 0, %s50
    %s68 = sphi 0, %s68
    %s70 = sphi 0, %s68
    %s71 = sphi 0, %s70
    %s85 = sphi 0, %s71
    %s89 = sphi 0, %s89
    %s91 = sphi 0, %s89
    %s92 = sphi 0, %s91
    %s106 = sphi 0, %s92
    %s110 = sphi 0, %s110
    %s112 = sphi 0, %s110
    %s113 = sphi 0, %s112
    %s127 = sphi 0, %s113
    %s131 = sphi 0, %s131
    %s133 = sphi 0, %s131
    %s134 = sphi 0, %s133
    %s148 = sphi 0, %s134
    %s152 = sphi 0, %s152
    %s154 = sphi 0, %s152
    %s155 = sphi 0, %s154
    %s169 = sphi 0, %s155
    %s175 = sphi 0, %s177
    %s178 = sphi 0, %s175
    %s179 = sphi 0, %s178
    %s195 = sphi 0, %s179
  $region4: #{encoding_with_network.1} parent=0 // loop_header_branch
    %16 = sbr.rel (%p14) target = $region8
  $region5: #{encoding_with_network.1} parent=0 // loop_body
    %s18 = ssub.s32 %s13, 1
    %s19 = ssub.s32 %s13, 2
    %s20 = sadd.s32 %s13, 1
    %s21 = ssub.s32 %s13, %s20
    %p22 = scmp.eq.s32.totalorder %s21, 0
    %s24 = sadd.s32 %s23, 1
    %s25 = scalar_select %p22, %s23, %s24
    %p28 = pneg %p22
    %p29 = scmp.eq.s32.totalorder %s13, 3
    %p30 = por %p28, %p29
    %p31 = scmp.ne.s32.totalorder %s23, %s26
    %p32 = scmp.eq.s32.totalorder %s13, 0
    %p33 = por %p31, %p32
    %p34 = scmp.ne.s32.totalorder %s23, %s26
    %p35 = scmp.eq.s32.totalorder %s18, 3
    %p36 = por %p34, %p35
    %p37 = scmp.ne.s32.totalorder %s26, %s27
    %p38 = scmp.eq.s32.totalorder %s18, 0
    %p39 = por %p37, %p38
    %p40 = scmp.ne.s32.totalorder %s26, %s27
    %p41 = scmp.eq.s32.totalorder %s19, 3
    %p42 = por %p40, %p41
    %p44 = scmp.ne.s32.totalorder %s27, %s43
    %p45 = scmp.eq.s32.totalorder %s19, 0
    %p46 = por %p44, %p45
    %s48 = sadd.s32 %s47, 1
    %p51 = scmp.eq.s32.totalorder %s13, 3
    %p52 = scmp.ne.s32.totalorder %s47, %s49
    %p53 = scmp.eq.s32.totalorder %s13, 0
    %p54 = por %p52, %p53
    %p55 = scmp.ne.s32.totalorder %s47, %s49
    %p56 = scmp.eq.s32.totalorder %s18, 3
    %p57 = por %p55, %p56
    %p58 = scmp.ne.s32.totalorder %s49, %s50
    %p59 = scmp.eq.s32.totalorder %s18, 0
    %p60 = por %p58, %p59
    %p61 = scmp.ne.s32.totalorder %s49, %s50
    %p62 = scmp.eq.s32.totalorder %s19, 3
    %p63 = por %p61, %p62
    %p65 = scmp.ne.s32.totalorder %s50, %s64
    %p66 = scmp.eq.s32.totalorder %s19, 0
    %p67 = por %p65, %p66
    %s69 = sadd.s32 %s68, 1
    %p72 = scmp.eq.s32.totalorder %s13, 3
    %p73 = scmp.ne.s32.totalorder %s68, %s70
    %p74 = scmp.eq.s32.totalorder %s13, 0
    %p75 = por %p73, %p74
    %p76 = scmp.ne.s32.totalorder %s68, %s70
    %p77 = scmp.eq.s32.totalorder %s18, 3
    %p78 = por %p76, %p77
    %p79 = scmp.ne.s32.totalorder %s70, %s71
    %p80 = scmp.eq.s32.totalorder %s18, 0
    %p81 = por %p79, %p80
    %p82 = scmp.ne.s32.totalorder %s70, %s71
    %p83 = scmp.eq.s32.totalorder %s19, 3
    %p84 = por %p82, %p83
    %p86 = scmp.ne.s32.totalorder %s71, %s85
    %p87 = scmp.eq.s32.totalorder %s19, 0
    %p88 = por %p86, %p87
    %s90 = sadd.s32 %s89, 1
    %p93 = scmp.eq.s32.totalorder %s13, 3
    %p94 = scmp.ne.s32.totalorder %s89, %s91
    %p95 = scmp.eq.s32.totalorder %s13, 0
    %p96 = por %p94, %p95
    %p97 = scmp.ne.s32.totalorder %s89, %s91
    %p98 = scmp.eq.s32.totalorder %s18, 3
    %p99 = por %p97, %p98
    %p100 = scmp.ne.s32.totalorder %s91, %s92
    %p101 = scmp.eq.s32.totalorder %s18, 0
    %p102 = por %p100, %p101
    %p103 = scmp.ne.s32.totalorder %s91, %s92
    %p104 = scmp.eq.s32.totalorder %s19, 3
    %p105 = por %p103, %p104
    %p107 = scmp.ne.s32.totalorder %s92, %s106
    %p108 = scmp.eq.s32.totalorder %s19, 0
    %p109 = por %p107, %p108
    %s111 = sadd.s32 %s110, 1
    %p114 = scmp.eq.s32.totalorder %s13, 3
    %p115 = scmp.ne.s32.totalorder %s110, %s112
    %p116 = scmp.eq.s32.totalorder %s13, 0
    %p117 = por %p115, %p116
    %p118 = scmp.ne.s32.totalorder %s110, %s112
    %p119 = scmp.eq.s32.totalorder %s18, 3
    %p120 = por %p118, %p119
    %p121 = scmp.ne.s32.totalorder %s112, %s113
    %p122 = scmp.eq.s32.totalorder %s18, 0
    %p123 = por %p121, %p122
    %p124 = scmp.ne.s32.totalorder %s112, %s113
    %p125 = scmp.eq.s32.totalorder %s19, 3
    %p126 = por %p124, %p125
    %p128 = scmp.ne.s32.totalorder %s113, %s127
    %p129 = scmp.eq.s32.totalorder %s19, 0
    %p130 = por %p128, %p129
    %s132 = sadd.s32 %s131, 1
    %p135 = scmp.eq.s32.totalorder %s13, 3
    %p136 = scmp.ne.s32.totalorder %s131, %s133
    %p137 = scmp.eq.s32.totalorder %s13, 0
    %p138 = por %p136, %p137
    %p139 = scmp.ne.s32.totalorder %s131, %s133
    %p140 = scmp.eq.s32.totalorder %s18, 3
    %p141 = por %p139, %p140
    %p142 = scmp.ne.s32.totalorder %s133, %s134
    %p143 = scmp.eq.s32.totalorder %s18, 0
    %p144 = por %p142, %p143
    %p145 = scmp.ne.s32.totalorder %s133, %s134
    %p146 = scmp.eq.s32.totalorder %s19, 3
    %p147 = por %p145, %p146
    %p149 = scmp.ne.s32.totalorder %s134, %s148
    %p150 = scmp.eq.s32.totalorder %s19, 0
    %p151 = por %p149, %p150
    %s153 = sadd.s32 %s152, 1
    %p156 = scmp.eq.s32.totalorder %s13, 3
    %p157 = scmp.ne.s32.totalorder %s152, %s154
    %p158 = scmp.eq.s32.totalorder %s13, 0
    %p159 = por %p157, %p158
    %p160 = scmp.ne.s32.totalorder %s152, %s154
    %p161 = scmp.eq.s32.totalorder %s18, 3
    %p162 = por %p160, %p161
    %p163 = scmp.ne.s32.totalorder %s154, %s155
    %p164 = scmp.eq.s32.totalorder %s18, 0
    %p165 = por %p163, %p164
    %p166 = scmp.ne.s32.totalorder %s154, %s155
    %p167 = scmp.eq.s32.totalorder %s19, 3
    %p168 = por %p166, %p167
    %p170 = scmp.ne.s32.totalorder %s155, %s169
    %p171 = scmp.eq.s32.totalorder %s19, 0
    %p172 = por %p170, %p171
    %s173 = ssub.s32 %s13, %s20
    %p174 = scmp.eq.s32.totalorder %s173, 0
    %s176 = sadd.s32 %s175, 1
    %s177 = scalar_select %p174, %s175, %s176
    %p180 = pneg %p174
    %p181 = scmp.eq.s32.totalorder %s13, 3
    %p182 = por %p180, %p181
    %p183 = scmp.ne.s32.totalorder %s175, %s178
    %p184 = scmp.eq.s32.totalorder %s13, 0
    %p185 = por %p183, %p184
    %p186 = scmp.ne.s32.totalorder %s175, %s178
    %p187 = scmp.eq.s32.totalorder %s18, 3
    %p188 = por %p186, %p187
    %p189 = scmp.ne.s32.totalorder %s178, %s179
    %p190 = scmp.eq.s32.totalorder %s18, 0
    %p191 = por %p189, %p190
    %p192 = scmp.ne.s32.totalorder %s178, %s179
    %p193 = scmp.eq.s32.totalorder %s19, 3
    %p194 = por %p192, %p193
    %p196 = scmp.ne.s32.totalorder %s179, %s195
    %p197 = scmp.eq.s32.totalorder %s19, 0
    %p198 = por %p196, %p197
    %p199 = scmp.le.s32.totalorder 1, %s13
    %p200 = scmp.lt.s32.totalorder %s13, 5
    %p201 = pnand %p199, %p200
    %p202 = pneg %p201
    // Predicated region
    $region9: #{encoding_with_network.1} parent=5 // pred_check
      _
    $region10: #{encoding_with_network.1} parent=5 // pred_check_branch
      %204 = sbr.rel (%p201) target = $region12
    $region11: #{encoding_with_network.1} parent=5 // pred_region
      %s205 = ssub.s32 %s13, 1
      // Predicated region
      $region13: #{encoding_with_network.1} parent=11 // pred_check
        %p206 = pneg %p60
      $region14: #{encoding_with_network.1} parent=11 // pred_check_branch
        %208 = sbr.rel (%p206) target = $region16
      $region15: #{encoding_with_network.1} parent=11 // pred_region
        _
      $region16: #{encoding_with_network.1} parent=11 // pred_fallthru
        _
      // Predicated region
      $region17: #{encoding_with_network.1} parent=11 // pred_check
        %p209 = pneg %p81
      $region18: #{encoding_with_network.1} parent=11 // pred_check_branch
        %211 = sbr.rel (%p209) target = $region20
      $region19: #{encoding_with_network.1} parent=11 // pred_region
        _
      $region20: #{encoding_with_network.1} parent=11 // pred_fallthru
        _
      // Predicated region
      $region21: #{encoding_with_network.1} parent=11 // pred_check
        %p212 = pneg %p102
      $region22: #{encoding_with_network.1} parent=11 // pred_check_branch
        %214 = sbr.rel (%p212) target = $region24
      $region23: #{encoding_with_network.1} parent=11 // pred_region
        _
      $region24: #{encoding_with_network.1} parent=11 // pred_fallthru
        _
      // Predicated region
      $region25: #{encoding_with_network.1} parent=11 // pred_check
        %p215 = pneg %p123
      $region26: #{encoding_with_network.1} parent=11 // pred_check_branch
        %217 = sbr.rel (%p215) target = $region28
      $region27: #{encoding_with_network.1} parent=11 // pred_region
        _
      $region28: #{encoding_with_network.1} parent=11 // pred_fallthru
        _
      // Predicated region
      $region29: #{encoding_with_network.1} parent=11 // pred_check
        %p218 = pneg %p144
      $region30: #{encoding_with_network.1} parent=11 // pred_check_branch
        %220 = sbr.rel (%p218) target = $region32
      $region31: #{encoding_with_network.1} parent=11 // pred_region
        _
      $region32: #{encoding_with_network.1} parent=11 // pred_fallthru
        _
      // Predicated region
      $region33: #{encoding_with_network.1} parent=11 // pred_check
        %p221 = pneg %p165
      $region34: #{encoding_with_network.1} parent=11 // pred_check_branch
        %223 = sbr.rel (%p221) target = $region36
      $region35: #{encoding_with_network.1} parent=11 // pred_region
        _
      $region36: #{encoding_with_network.1} parent=11 // pred_fallthru
        _
    $region12: #{encoding_with_network.1} parent=5 // pred_fallthru
      _
    %p224 = scmp.lt.s32.totalorder %s13, 4
    // Predicated region
    $region37: #{encoding_with_network.1} parent=5 // pred_check
      %p225 = pneg %p224
    $region38: #{encoding_with_network.1} parent=5 // pred_check_branch
      %227 = sbr.rel (%p225) target = $region40
    $region39: #{encoding_with_network.1} parent=5 // pred_region
      // Predicated region
      $region41: #{encoding_with_network.1} parent=39 // pred_check
        %p228 = pneg %p33
      $region42: #{encoding_with_network.1} parent=39 // pred_check_branch
        %230 = sbr.rel (%p228) target = $region44
      $region43: #{encoding_with_network.1} parent=39 // pred_region
        %s231 = smul.u32 8, %s13
        %p232 = scmp.lt.s32.totalorder %s231, 31
        %s233 = scalar_select %p232, %s231, 31
        %s234 = smul.addr %s233, 4
        %s235 = scalar_lea.vmem %s0, %s234
        %s236 = smul.u32 8, %s13
      $region44: #{encoding_with_network.1} parent=39 // pred_fallthru
        _
    $region40: #{encoding_with_network.1} parent=5 // pred_fallthru
      _
    %p237 = scmp.le.s32.totalorder 1, %s13
    %p238 = scmp.lt.s32.totalorder %s13, 5
    %p239 = pnand %p237, %p238
    %p240 = pneg %p239
    // Predicated region
    $region45: #{encoding_with_network.1} parent=5 // pred_check
      _
    $region46: #{encoding_with_network.1} parent=5 // pred_check_branch
      %242 = sbr.rel (%p239) target = $region48
    $region47: #{encoding_with_network.1} parent=5 // pred_region
      %s243 = ssub.s32 %s13, 1
      %s244 = smul.u32 8, %s18
      %p245 = scmp.lt.s32.totalorder %s244, 31
      %s246 = scalar_select %p245, %s244, 31
      %s247 = smul.addr %s246, 4
      %s248 = scalar_lea.vmem %s0, %s247
      %p249 = pneg %p39
      %p250 = pneg %p36
      %p251 = pneg %p60
      %p252 = pneg %p57
      %p253 = pneg %p81
      %p254 = pneg %p78
      %p255 = pneg %p102
      %p256 = pneg %p99
      %p257 = pneg %p123
      %p258 = pneg %p120
      %p259 = pneg %p144
      %p260 = pneg %p141
      %p261 = pneg %p165
      %p262 = pneg %p162
      %p263 = pneg %p191
      %p264 = pneg %p188
      %s265 = smul.u32 8, %s18
      %p266 = scmp.lt.s32.totalorder %s265, 31
      %s267 = scalar_select %p266, %s265, 31
      %s268 = smul.addr %s267, 4
      %s269 = scalar_lea.vmem %s7, %s268
      %s270 = smul.u32 8, %s18
      %p271 = scmp.lt.s32.totalorder %s270, 31
      %s272 = scalar_select %p271, %s270, 31
      %s273 = smul.addr %s272, 4
      %s274 = scalar_lea.vmem %s0, %s273
      %s275 = smul.u32 8, %s18
      %s276 = smul.u32 8, %s18
      %p277 = scmp.lt.s32.totalorder %s276, 31
      %s278 = scalar_select %p277, %s276, 31
      %s279 = smul.addr %s278, 4
      %s280 = scalar_lea.vmem %s7, %s279
      %s281 = smul.u32 8, %s18
      %v282 = vld [vmem:[%s274] sm:$0x77]
      %v283 = vld [vmem:[%s274 + $0x8] sm:$0x77]
      %v284 = vld [vmem:[%s274 + $0x10] sm:$0x77]
      %v285 = vld [vmem:[%s274 + $0x18] sm:$0x77]
      %290 = vst [vmem:[#allocation1] ss:$2 sm:$0xff] %v282
      %s291 = scalar_lea.vmem [#allocation1], 16
      %292 = vst [vmem:[%s291] ss:$2 sm:$0xff] %v283
      %s293 = scalar_lea.vmem [#allocation1], 32
      %294 = vst [vmem:[%s293] ss:$2 sm:$0xff] %v284
      %s295 = scalar_lea.vmem [#allocation1], 48
      %296 = vst [vmem:[%s295] ss:$2 sm:$0xff] %v285
      %v297 = vld.sshfl [vmem:[#allocation1] sm:$0xff pattern:$0x75316420]
      %v298 = vld.sshfl [vmem:[#allocation1 + $0x8] sm:$0xff pattern:$0x75316420]
      %v299 = vld.sshfl [vmem:[#allocation1 + $0x10] sm:$0xff pattern:$0x75316420]
      %v300 = vld.sshfl [vmem:[#allocation1 + $0x18] sm:$0xff pattern:$0x75316420]
      %v301 = vld.sshfl [vmem:[#allocation1 + $0x20] sm:$0xff pattern:$0x75316420]
      %v302 = vld.sshfl [vmem:[#allocation1 + $0x28] sm:$0xff pattern:$0x75316420]
      %v303 = vld.sshfl [vmem:[#allocation1 + $0x30] sm:$0xff pattern:$0x75316420]
      %v304 = vld.sshfl [vmem:[#allocation1 + $0x38] sm:$0xff pattern:$0x75316420]
      %313 = vst [vmem:[#allocation2] sm:$0x7] %v297
      %314 = vst [vmem:[#allocation2 + $0x8] sm:$0x7] %v298
      %315 = vst [vmem:[#allocation2 + $0x10] sm:$0x7] %v299
      %316 = vst [vmem:[#allocation2 + $0x18] sm:$0x7] %v300
      %317 = vst [vmem:[#allocation2 + $0x20] sm:$0x7] %v301
      %318 = vst [vmem:[#allocation2 + $0x28] sm:$0x7] %v302
      %319 = vst [vmem:[#allocation2 + $0x30] sm:$0x7] %v303
      %320 = vst [vmem:[#allocation2 + $0x38] sm:$0x7] %v304
      %v321 = vand.u32 2147483647, %v282
      %vm322 = vcmp.le.f32.partialorder %v321, 0.7853982
      %vm323 = vcmp.lt.s32.totalorder %v282, 0
      %v324 = vand.u32 %v282, 2139095040
      %v325 = vshrl.u32 %v324, 23
      %v326 = vsub.s32 %v325, 127
      %v327 = vand.u32 2147483647, %v282
      %v328 = vand.u32 %v327, 8388607
      %v329 = vor.u32 %v328, 8388608
      %v330 = vsub.s32 0, %v329
      %v331 = vadd.s32 %v326, 1
      %vm332 = vcmp.gt.s32.totalorder %v331, 0
      %v333 = vsel %vm332, %v331, 0
      %v334 = vshrl.u32 %v333, 5
      %v335 = vand.u32 %v333, 31
      %v336 = vsub.s32 32, %v335
      %v337 = vshrl.u32 683565275, %v336
      %v338 = vshll.u32 683565275, %v335
      %v339 = vshrl.u32 2475754826, %v336
      %v340 = vor.u32 %v338, %v339
      %v341 = vshll.u32 2475754826, %v335
      %v342 = vshrl.u32 2131351028, %v336
      %v343 = vor.u32 %v341, %v342
      %v344 = vshll.u32 2131351028, %v335
      %v345 = vshrl.u32 2102212464, %v336
      %v346 = vor.u32 %v344, %v345
      %v347 = vshll.u32 2102212464, %v335
      %v348 = vshrl.u32 920167782, %v336
      %v349 = vor.u32 %v347, %v348
      %v350 = vshll.u32 920167782, %v335
      %v351 = vshrl.u32 1326507024, %v336
      %v352 = vor.u32 %v350, %v351
      %vm353 = vcmp.lt.s32.totalorder %v334, 1
      %vm354 = vcmp.lt.s32.totalorder %v334, 2
      %vm355 = vcmp.lt.s32.totalorder %v334, 3
      %vm356 = vcmp.lt.s32.totalorder %v334, 4
      %v357 = vsel %vm353, %v337, %v340
      %v358 = vsel %vm356, %v346, 2102212464
      %v359 = vsel %vm355, %v343, %v358
      %v360 = vsel %vm354, %v357, %v359
      %v361 = vsel %vm353, %v340, %v343
      %v362 = vsel %vm356, %v349, 920167782
      %v363 = vsel %vm355, %v346, %v362
      %v364 = vsel %vm354, %v361, %v363
      %v365 = vsel %vm353, %v343, %v346
      %v366 = vsel %vm356, %v352, 1326507024
      %v367 = vsel %vm355, %v349, %v366
      %v368 = vsel %vm354, %v365, %v367
      %v369 = vshll.u32 %v329, 8
      %v370 = vand.u32 %v369, 65535
      %v371 = vshrl.u32 %v369, 16
      %v372 = vand.u32 %v368, 65535
      %v373 = vshrl.u32 %v368, 16
      %v374 = vmul.u32 %v370, %v372
      %v375 = vmul.u32 %v370, %v373
      %v376 = vmul.u32 %v371, %v372
      %v377 = vmul.u32 %v371, %v373
      %v378 = vshll.u32 %v375, 16
      %v379 = vshrl.u32 %v375, 16
      %v380 = vshll.u32 %v376, 16
      %v381 = vshrl.u32 %v376, 16
      %vm382 = vc.u32 %v374, %v378
      %v383 = vsel %vm382, 1, 0
      %v384 = vadd.s32 %v374, %v378
      %v385 = vadd.s32 %v377, %v383
      %vm386 = vc.u32 %v384, %v380
      %v387 = vsel %vm386, 1, 0
      %v388 = vadd.s32 %v384, %v380
      %v389 = vadd.s32 %v385, %v387
      %v390 = vadd.s32 %v389, %v379
      %v391 = vadd.s32 %v390, %v381
      %v392 = vand.u32 %v369, 65535
      %v393 = vshrl.u32 %v369, 16
      %v394 = vand.u32 %v364, 65535
      %v395 = vshrl.u32 %v364, 16
      %v396 = vmul.u32 %v392, %v394
      %v397 = vmul.u32 %v392, %v395
      %v398 = vmul.u32 %v393, %v394
      %v399 = vmul.u32 %v393, %v395
      %v400 = vshll.u32 %v397, 16
      %v401 = vshrl.u32 %v397, 16
      %v402 = vshll.u32 %v398, 16
      %v403 = vshrl.u32 %v398, 16
      %vm404 = vc.u32 %v396, %v400
      %v405 = vsel %vm404, 1, 0
      %v406 = vadd.s32 %v396, %v400
      %v407 = vadd.s32 %v399, %v405
      %vm408 = vc.u32 %v406, %v402
      %v409 = vsel %vm408, 1, 0
      %v410 = vadd.s32 %v406, %v402
      %v411 = vadd.s32 %v407, %v409
      %v412 = vadd.s32 %v411, %v401
      %v413 = vadd.s32 %v412, %v403
      %v414 = vmul.u32 %v369, %v360
      %v415 = vadd.s32 %v391, %v410
      %vm416 = vc.u32 %v391, %v410
      %v417 = vadd.s32 %v413, 1
      %v418 = vsel %vm416, %v417, %v413
      %v419 = vadd.s32 %v414, %v418
      %v420 = vadd.s32 %v419, 536870912
      %v421 = vshrl.u32 %v420, 30
      %v422 = vshll.u32 %v421, 30
      %v423 = vsub.s32 %v419, %v422
      %vm424 = vcmp.lt.s32.totalorder %v423, 0
      %v425 = vsub.s32 0, %v423
      %v426 = vsel %vm424, %v425, %v423
      %v427 = vclz %v426
      %v428 = vsub.s32 %v427, 2
      %vm429 = vcmp.gt.s32.totalorder 0, %v428
      %v430 = vsel %vm429, 0, %v428
      %v431 = vsub.s32 32, %v430
      %v432 = vshll.u32 %v423, %v430
      %v433 = vshrl.u32 %v415, %v431
      %v434 = vor.u32 %v432, %v433
      %v435 = vsub.s32 4294967266, %v430
      %v436 = vadd.s32 %v435, 127
      %v437 = vshll.u32 %v436, 23
      %v438 = vor.u32 4788187, %v437
      %v439 = vand.u32 2147483647, %v438
      %v441 = vcvt.s32.f32 %v434
      %v442 = vmul.f32 %v441, %v439
      %v443 = vxor.u32 %v442, 2147483648
      %v444 = vsel %vm323, %v443, %v442
      %v445 = vsub.s32 4, %v421
      %v446 = vsel %vm323, %v445, %v421
      %v447 = vsel %vm322, %v282, %v444
      %v448 = vsel %vm322, 0, %v446
      %v449 = vmul.f32 %v447, %v447
      %v450 = vmul.f32 %v449, -0.001358992
      %v451 = vadd.f32 %v450, 0.041655596
      %v452 = vmul.f32 %v449, %v451
      %v453 = vadd.f32 %v452, -0.4999988
      %v454 = vmul.f32 %v449, %v453
      %v455 = vadd.f32 1.0, %v454
      %v456 = vmul.f32 %v447, %v447
      %v457 = vmul.f32 %v456, -0.00019511016
      %v458 = vadd.f32 %v457, 0.008332121
      %v459 = vmul.f32 %v456, %v458
      %v460 = vadd.f32 %v459, -0.16666654
      %v461 = vmul.f32 %v456, %v460
      %v462 = vadd.f32 %v461, 1.0
      %v463 = vmul.f32 %v462, %v447
      %vm464 = vweird.f32 %v282
      %v465 = vadd.s32 %v448, 3
      %v466 = vand.u32 %v465, 3
      %vm467 = vcmp.lt.s32.totalorder %v466, 2
      %vm468 = vcmp.eq.s32.totalorder %v466, 0
      %v469 = vxor.u32 %v463, 2147483648
      %v470 = vsel %vm468, %v455, %v469
      %vm471 = vcmp.eq.s32.totalorder %v466, 2
      %v472 = vxor.u32 %v455, 2147483648
      %v473 = vsel %vm471, %v472, %v463
      %v474 = vsel %vm467, %v470, %v473
      %v475 = vsel %vm464, nan, %v474
      %v476 = vand.u32 2147483647, %v283
      %vm477 = vcmp.le.f32.partialorder %v476, 0.7853982
      %vm478 = vcmp.lt.s32.totalorder %v283, 0
      %v479 = vand.u32 %v283, 2139095040
      %v480 = vshrl.u32 %v479, 23
      %v481 = vsub.s32 %v480, 127
      %v482 = vand.u32 2147483647, %v283
      %v483 = vand.u32 %v482, 8388607
      %v484 = vor.u32 %v483, 8388608
      %v485 = vsub.s32 0, %v484
      %v486 = vadd.s32 %v481, 1
      %vm487 = vcmp.gt.s32.totalorder %v486, 0
      %v488 = vsel %vm487, %v486, 0
      %v489 = vshrl.u32 %v488, 5
      %v490 = vand.u32 %v488, 31
      %v491 = vsub.s32 32, %v490
      %v492 = vshrl.u32 683565275, %v491
      %v493 = vshll.u32 683565275, %v490
      %v494 = vshrl.u32 2475754826, %v491
      %v495 = vor.u32 %v493, %v494
      %v496 = vshll.u32 2475754826, %v490
      %v497 = vshrl.u32 2131351028, %v491
      %v498 = vor.u32 %v496, %v497
      %v499 = vshll.u32 2131351028, %v490
      %v500 = vshrl.u32 2102212464, %v491
      %v501 = vor.u32 %v499, %v500
      %v502 = vshll.u32 2102212464, %v490
      %v503 = vshrl.u32 920167782, %v491
      %v504 = vor.u32 %v502, %v503
      %v505 = vshll.u32 920167782, %v490
      %v506 = vshrl.u32 1326507024, %v491
      %v507 = vor.u32 %v505, %v506
      %vm508 = vcmp.lt.s32.totalorder %v489, 1
      %vm509 = vcmp.lt.s32.totalorder %v489, 2
      %vm510 = vcmp.lt.s32.totalorder %v489, 3
      %vm511 = vcmp.lt.s32.totalorder %v489, 4
      %v512 = vsel %vm508, %v492, %v495
      %v513 = vsel %vm511, %v501, 2102212464
      %v514 = vsel %vm510, %v498, %v513
      %v515 = vsel %vm509, %v512, %v514
      %v516 = vsel %vm508, %v495, %v498
      %v517 = vsel %vm511, %v504, 920167782
      %v518 = vsel %vm510, %v501, %v517
      %v519 = vsel %vm509, %v516, %v518
      %v520 = vsel %vm508, %v498, %v501
      %v521 = vsel %vm511, %v507, 1326507024
      %v522 = vsel %vm510, %v504, %v521
      %v523 = vsel %vm509, %v520, %v522
      %v524 = vshll.u32 %v484, 8
      %v525 = vand.u32 %v524, 65535
      %v526 = vshrl.u32 %v524, 16
      %v527 = vand.u32 %v523, 65535
      %v528 = vshrl.u32 %v523, 16
      %v529 = vmul.u32 %v525, %v527
      %v530 = vmul.u32 %v525, %v528
      %v531 = vmul.u32 %v526, %v527
      %v532 = vmul.u32 %v526, %v528
      %v533 = vshll.u32 %v530, 16
      %v534 = vshrl.u32 %v530, 16
      %v535 = vshll.u32 %v531, 16
      %v536 = vshrl.u32 %v531, 16
      %vm537 = vc.u32 %v529, %v533
      %v538 = vsel %vm537, 1, 0
      %v539 = vadd.s32 %v529, %v533
      %v540 = vadd.s32 %v532, %v538
      %vm541 = vc.u32 %v539, %v535
      %v542 = vsel %vm541, 1, 0
      %v543 = vadd.s32 %v539, %v535
      %v544 = vadd.s32 %v540, %v542
      %v545 = vadd.s32 %v544, %v534
      %v546 = vadd.s32 %v545, %v536
      %v547 = vand.u32 %v524, 65535
      %v548 = vshrl.u32 %v524, 16
      %v549 = vand.u32 %v519, 65535
      %v550 = vshrl.u32 %v519, 16
      %v551 = vmul.u32 %v547, %v549
      %v552 = vmul.u32 %v547, %v550
      %v553 = vmul.u32 %v548, %v549
      %v554 = vmul.u32 %v548, %v550
      %v555 = vshll.u32 %v552, 16
      %v556 = vshrl.u32 %v552, 16
      %v557 = vshll.u32 %v553, 16
      %v558 = vshrl.u32 %v553, 16
      %vm559 = vc.u32 %v551, %v555
      %v560 = vsel %vm559, 1, 0
      %v561 = vadd.s32 %v551, %v555
      %v562 = vadd.s32 %v554, %v560
      %vm563 = vc.u32 %v561, %v557
      %v564 = vsel %vm563, 1, 0
      %v565 = vadd.s32 %v561, %v557
      %v566 = vadd.s32 %v562, %v564
      %v567 = vadd.s32 %v566, %v556
      %v568 = vadd.s32 %v567, %v558
      %v569 = vmul.u32 %v524, %v515
      %v570 = vadd.s32 %v546, %v565
      %vm571 = vc.u32 %v546, %v565
      %v572 = vadd.s32 %v568, 1
      %v573 = vsel %vm571, %v572, %v568
      %v574 = vadd.s32 %v569, %v573
      %v575 = vadd.s32 %v574, 536870912
      %v576 = vshrl.u32 %v575, 30
      %v577 = vshll.u32 %v576, 30
      %v578 = vsub.s32 %v574, %v577
      %vm579 = vcmp.lt.s32.totalorder %v578, 0
      %v580 = vsub.s32 0, %v578
      %v581 = vsel %vm579, %v580, %v578
      %v582 = vclz %v581
      %v583 = vsub.s32 %v582, 2
      %vm584 = vcmp.gt.s32.totalorder 0, %v583
      %v585 = vsel %vm584, 0, %v583
      %v586 = vsub.s32 32, %v585
      %v587 = vshll.u32 %v578, %v585
      %v588 = vshrl.u32 %v570, %v586
      %v589 = vor.u32 %v587, %v588
      %v590 = vsub.s32 4294967266, %v585
      %v591 = vadd.s32 %v590, 127
      %v592 = vshll.u32 %v591, 23
      %v593 = vor.u32 4788187, %v592
      %v594 = vand.u32 2147483647, %v593
      %v596 = vcvt.s32.f32 %v589
      %v597 = vmul.f32 %v596, %v594
      %v598 = vxor.u32 %v597, 2147483648
      %v599 = vsel %vm478, %v598, %v597
      %v600 = vsub.s32 4, %v576
      %v601 = vsel %vm478, %v600, %v576
      %v602 = vsel %vm477, %v283, %v599
      %v603 = vsel %vm477, 0, %v601
      %v604 = vmul.f32 %v602, %v602
      %v605 = vmul.f32 %v604, -0.001358992
      %v606 = vadd.f32 %v605, 0.041655596
      %v607 = vmul.f32 %v604, %v606
      %v608 = vadd.f32 %v607, -0.4999988
      %v609 = vmul.f32 %v604, %v608
      %v610 = vadd.f32 1.0, %v609
      %v611 = vmul.f32 %v602, %v602
      %v612 = vmul.f32 %v611, -0.00019511016
      %v613 = vadd.f32 %v612, 0.008332121
      %v614 = vmul.f32 %v611, %v613
      %v615 = vadd.f32 %v614, -0.16666654
      %v616 = vmul.f32 %v611, %v615
      %v617 = vadd.f32 %v616, 1.0
      %v618 = vmul.f32 %v617, %v602
      %vm619 = vweird.f32 %v283
      %v620 = vadd.s32 %v603, 3
      %v621 = vand.u32 %v620, 3
      %vm622 = vcmp.lt.s32.totalorder %v621, 2
      %vm623 = vcmp.eq.s32.totalorder %v621, 0
      %v624 = vxor.u32 %v618, 2147483648
      %v625 = vsel %vm623, %v610, %v624
      %vm626 = vcmp.eq.s32.totalorder %v621, 2
      %v627 = vxor.u32 %v610, 2147483648
      %v628 = vsel %vm626, %v627, %v618
      %v629 = vsel %vm622, %v625, %v628
      %v630 = vsel %vm619, nan, %v629
      %v631 = vand.u32 2147483647, %v284
      %vm632 = vcmp.le.f32.partialorder %v631, 0.7853982
      %vm633 = vcmp.lt.s32.totalorder %v284, 0
      %v634 = vand.u32 %v284, 2139095040
      %v635 = vshrl.u32 %v634, 23
      %v636 = vsub.s32 %v635, 127
      %v637 = vand.u32 2147483647, %v284
      %v638 = vand.u32 %v637, 8388607
      %v639 = vor.u32 %v638, 8388608
      %v640 = vsub.s32 0, %v639
      %v641 = vadd.s32 %v636, 1
      %vm642 = vcmp.gt.s32.totalorder %v641, 0
      %v643 = vsel %vm642, %v641, 0
      %v644 = vshrl.u32 %v643, 5
      %v645 = vand.u32 %v643, 31
      %v646 = vsub.s32 32, %v645
      %v647 = vshrl.u32 683565275, %v646
      %v648 = vshll.u32 683565275, %v645
      %v649 = vshrl.u32 2475754826, %v646
      %v650 = vor.u32 %v648, %v649
      %v651 = vshll.u32 2475754826, %v645
      %v652 = vshrl.u32 2131351028, %v646
      %v653 = vor.u32 %v651, %v652
      %v654 = vshll.u32 2131351028, %v645
      %v655 = vshrl.u32 2102212464, %v646
      %v656 = vor.u32 %v654, %v655
      %v657 = vshll.u32 2102212464, %v645
      %v658 = vshrl.u32 920167782, %v646
      %v659 = vor.u32 %v657, %v658
      %v660 = vshll.u32 920167782, %v645
      %v661 = vshrl.u32 1326507024, %v646
      %v662 = vor.u32 %v660, %v661
      %vm663 = vcmp.lt.s32.totalorder %v644, 1
      %vm664 = vcmp.lt.s32.totalorder %v644, 2
      %vm665 = vcmp.lt.s32.totalorder %v644, 3
      %vm666 = vcmp.lt.s32.totalorder %v644, 4
      %v667 = vsel %vm663, %v647, %v650
      %v668 = vsel %vm666, %v656, 2102212464
      %v669 = vsel %vm665, %v653, %v668
      %v670 = vsel %vm664, %v667, %v669
      %v671 = vsel %vm663, %v650, %v653
      %v672 = vsel %vm666, %v659, 920167782
      %v673 = vsel %vm665, %v656, %v672
      %v674 = vsel %vm664, %v671, %v673
      %v675 = vsel %vm663, %v653, %v656
      %v676 = vsel %vm666, %v662, 1326507024
      %v677 = vsel %vm665, %v659, %v676
      %v678 = vsel %vm664, %v675, %v677
      %v679 = vshll.u32 %v639, 8
      %v680 = vand.u32 %v679, 65535
      %v681 = vshrl.u32 %v679, 16
      %v682 = vand.u32 %v678, 65535
      %v683 = vshrl.u32 %v678, 16
      %v684 = vmul.u32 %v680, %v682
      %v685 = vmul.u32 %v680, %v683
      %v686 = vmul.u32 %v681, %v682
      %v687 = vmul.u32 %v681, %v683
      %v688 = vshll.u32 %v685, 16
      %v689 = vshrl.u32 %v685, 16
      %v690 = vshll.u32 %v686, 16
      %v691 = vshrl.u32 %v686, 16
      %vm692 = vc.u32 %v684, %v688
      %v693 = vsel %vm692, 1, 0
      %v694 = vadd.s32 %v684, %v688
      %v695 = vadd.s32 %v687, %v693
      %vm696 = vc.u32 %v694, %v690
      %v697 = vsel %vm696, 1, 0
      %v698 = vadd.s32 %v694, %v690
      %v699 = vadd.s32 %v695, %v697
      %v700 = vadd.s32 %v699, %v689
      %v701 = vadd.s32 %v700, %v691
      %v702 = vand.u32 %v679, 65535
      %v703 = vshrl.u32 %v679, 16
      %v704 = vand.u32 %v674, 65535
      %v705 = vshrl.u32 %v674, 16
      %v706 = vmul.u32 %v702, %v704
      %v707 = vmul.u32 %v702, %v705
      %v708 = vmul.u32 %v703, %v704
      %v709 = vmul.u32 %v703, %v705
      %v710 = vshll.u32 %v707, 16
      %v711 = vshrl.u32 %v707, 16
      %v712 = vshll.u32 %v708, 16
      %v713 = vshrl.u32 %v708, 16
      %vm714 = vc.u32 %v706, %v710
      %v715 = vsel %vm714, 1, 0
      %v716 = vadd.s32 %v706, %v710
      %v717 = vadd.s32 %v709, %v715
      %vm718 = vc.u32 %v716, %v712
      %v719 = vsel %vm718, 1, 0
      %v720 = vadd.s32 %v716, %v712
      %v721 = vadd.s32 %v717, %v719
      %v722 = vadd.s32 %v721, %v711
      %v723 = vadd.s32 %v722, %v713
      %v724 = vmul.u32 %v679, %v670
      %v725 = vadd.s32 %v701, %v720
      %vm726 = vc.u32 %v701, %v720
      %v727 = vadd.s32 %v723, 1
      %v728 = vsel %vm726, %v727, %v723
      %v729 = vadd.s32 %v724, %v728
      %v730 = vadd.s32 %v729, 536870912
      %v731 = vshrl.u32 %v730, 30
      %v732 = vshll.u32 %v731, 30
      %v733 = vsub.s32 %v729, %v732
      %vm734 = vcmp.lt.s32.totalorder %v733, 0
      %v735 = vsub.s32 0, %v733
      %v736 = vsel %vm734, %v735, %v733
      %v737 = vclz %v736
      %v738 = vsub.s32 %v737, 2
      %vm739 = vcmp.gt.s32.totalorder 0, %v738
      %v740 = vsel %vm739, 0, %v738
      %v741 = vsub.s32 32, %v740
      %v742 = vshll.u32 %v733, %v740
      %v743 = vshrl.u32 %v725, %v741
      %v744 = vor.u32 %v742, %v743
      %v745 = vsub.s32 4294967266, %v740
      %v746 = vadd.s32 %v745, 127
      %v747 = vshll.u32 %v746, 23
      %v748 = vor.u32 4788187, %v747
      %v749 = vand.u32 2147483647, %v748
      %v751 = vcvt.s32.f32 %v744
      %v752 = vmul.f32 %v751, %v749
      %v753 = vxor.u32 %v752, 2147483648
      %v754 = vsel %vm633, %v753, %v752
      %v755 = vsub.s32 4, %v731
      %v756 = vsel %vm633, %v755, %v731
      %v757 = vsel %vm632, %v284, %v754
      %v758 = vsel %vm632, 0, %v756
      %v759 = vmul.f32 %v757, %v757
      %v760 = vmul.f32 %v759, -0.001358992
      %v761 = vadd.f32 %v760, 0.041655596
      %v762 = vmul.f32 %v759, %v761
      %v763 = vadd.f32 %v762, -0.4999988
      %v764 = vmul.f32 %v759, %v763
      %v765 = vadd.f32 1.0, %v764
      %v766 = vmul.f32 %v757, %v757
      %v767 = vmul.f32 %v766, -0.00019511016
      %v768 = vadd.f32 %v767, 0.008332121
      %v769 = vmul.f32 %v766, %v768
      %v770 = vadd.f32 %v769, -0.16666654
      %v771 = vmul.f32 %v766, %v770
      %v772 = vadd.f32 %v771, 1.0
      %v773 = vmul.f32 %v772, %v757
      %vm774 = vweird.f32 %v284
      %v775 = vadd.s32 %v758, 3
      %v776 = vand.u32 %v775, 3
      %vm777 = vcmp.lt.s32.totalorder %v776, 2
      %vm778 = vcmp.eq.s32.totalorder %v776, 0
      %v779 = vxor.u32 %v773, 2147483648
      %v780 = vsel %vm778, %v765, %v779
      %vm781 = vcmp.eq.s32.totalorder %v776, 2
      %v782 = vxor.u32 %v765, 2147483648
      %v783 = vsel %vm781, %v782, %v773
      %v784 = vsel %vm777, %v780, %v783
      %v785 = vsel %vm774, nan, %v784
      %v786 = vand.u32 2147483647, %v285
      %vm787 = vcmp.le.f32.partialorder %v786, 0.7853982
      %vm788 = vcmp.lt.s32.totalorder %v285, 0
      %v789 = vand.u32 %v285, 2139095040
      %v790 = vshrl.u32 %v789, 23
      %v791 = vsub.s32 %v790, 127
      %v792 = vand.u32 2147483647, %v285
      %v793 = vand.u32 %v792, 8388607
      %v794 = vor.u32 %v793, 8388608
      %v795 = vsub.s32 0, %v794
      %v796 = vadd.s32 %v791, 1
      %vm797 = vcmp.gt.s32.totalorder %v796, 0
      %v798 = vsel %vm797, %v796, 0
      %v799 = vshrl.u32 %v798, 5
      %v800 = vand.u32 %v798, 31
      %v801 = vsub.s32 32, %v800
      %v802 = vshrl.u32 683565275, %v801
      %v803 = vshll.u32 683565275, %v800
      %v804 = vshrl.u32 2475754826, %v801
      %v805 = vor.u32 %v803, %v804
      %v806 = vshll.u32 2475754826, %v800
      %v807 = vshrl.u32 2131351028, %v801
      %v808 = vor.u32 %v806, %v807
      %v809 = vshll.u32 2131351028, %v800
      %v810 = vshrl.u32 2102212464, %v801
      %v811 = vor.u32 %v809, %v810
      %v812 = vshll.u32 2102212464, %v800
      %v813 = vshrl.u32 920167782, %v801
      %v814 = vor.u32 %v812, %v813
      %v815 = vshll.u32 920167782, %v800
      %v816 = vshrl.u32 1326507024, %v801
      %v817 = vor.u32 %v815, %v816
      %vm818 = vcmp.lt.s32.totalorder %v799, 1
      %vm819 = vcmp.lt.s32.totalorder %v799, 2
      %vm820 = vcmp.lt.s32.totalorder %v799, 3
      %vm821 = vcmp.lt.s32.totalorder %v799, 4
      %v822 = vsel %vm818, %v802, %v805
      %v823 = vsel %vm821, %v811, 2102212464
      %v824 = vsel %vm820, %v808, %v823
      %v825 = vsel %vm819, %v822, %v824
      %v826 = vsel %vm818, %v805, %v808
      %v827 = vsel %vm821, %v814, 920167782
      %v828 = vsel %vm820, %v811, %v827
      %v829 = vsel %vm819, %v826, %v828
      %v830 = vsel %vm818, %v808, %v811
      %v831 = vsel %vm821, %v817, 1326507024
      %v832 = vsel %vm820, %v814, %v831
      %v833 = vsel %vm819, %v830, %v832
      %v834 = vshll.u32 %v794, 8
      %v835 = vand.u32 %v834, 65535
      %v836 = vshrl.u32 %v834, 16
      %v837 = vand.u32 %v833, 65535
      %v838 = vshrl.u32 %v833, 16
      %v839 = vmul.u32 %v835, %v837
      %v840 = vmul.u32 %v835, %v838
      %v841 = vmul.u32 %v836, %v837
      %v842 = vmul.u32 %v836, %v838
      %v843 = vshll.u32 %v840, 16
      %v844 = vshrl.u32 %v840, 16
      %v845 = vshll.u32 %v841, 16
      %v846 = vshrl.u32 %v841, 16
      %vm847 = vc.u32 %v839, %v843
      %v848 = vsel %vm847, 1, 0
      %v849 = vadd.s32 %v839, %v843
      %v850 = vadd.s32 %v842, %v848
      %vm851 = vc.u32 %v849, %v845
      %v852 = vsel %vm851, 1, 0
      %v853 = vadd.s32 %v849, %v845
      %v854 = vadd.s32 %v850, %v852
      %v855 = vadd.s32 %v854, %v844
      %v856 = vadd.s32 %v855, %v846
      %v857 = vand.u32 %v834, 65535
      %v858 = vshrl.u32 %v834, 16
      %v859 = vand.u32 %v829, 65535
      %v860 = vshrl.u32 %v829, 16
      %v861 = vmul.u32 %v857, %v859
      %v862 = vmul.u32 %v857, %v860
      %v863 = vmul.u32 %v858, %v859
      %v864 = vmul.u32 %v858, %v860
      %v865 = vshll.u32 %v862, 16
      %v866 = vshrl.u32 %v862, 16
      %v867 = vshll.u32 %v863, 16
      %v868 = vshrl.u32 %v863, 16
      %vm869 = vc.u32 %v861, %v865
      %v870 = vsel %vm869, 1, 0
      %v871 = vadd.s32 %v861, %v865
      %v872 = vadd.s32 %v864, %v870
      %vm873 = vc.u32 %v871, %v867
      %v874 = vsel %vm873, 1, 0
      %v875 = vadd.s32 %v871, %v867
      %v876 = vadd.s32 %v872, %v874
      %v877 = vadd.s32 %v876, %v866
      %v878 = vadd.s32 %v877, %v868
      %v879 = vmul.u32 %v834, %v825
      %v880 = vadd.s32 %v856, %v875
      %vm881 = vc.u32 %v856, %v875
      %v882 = vadd.s32 %v878, 1
      %v883 = vsel %vm881, %v882, %v878
      %v884 = vadd.s32 %v879, %v883
      %v885 = vadd.s32 %v884, 536870912
      %v886 = vshrl.u32 %v885, 30
      %v887 = vshll.u32 %v886, 30
      %v888 = vsub.s32 %v884, %v887
      %vm889 = vcmp.lt.s32.totalorder %v888, 0
      %v890 = vsub.s32 0, %v888
      %v891 = vsel %vm889, %v890, %v888
      %v892 = vclz %v891
      %v893 = vsub.s32 %v892, 2
      %vm894 = vcmp.gt.s32.totalorder 0, %v893
      %v895 = vsel %vm894, 0, %v893
      %v896 = vsub.s32 32, %v895
      %v897 = vshll.u32 %v888, %v895
      %v898 = vshrl.u32 %v880, %v896
      %v899 = vor.u32 %v897, %v898
      %v900 = vsub.s32 4294967266, %v895
      %v901 = vadd.s32 %v900, 127
      %v902 = vshll.u32 %v901, 23
      %v903 = vor.u32 4788187, %v902
      %v904 = vand.u32 2147483647, %v903
      %v906 = vcvt.s32.f32 %v899
      %v907 = vmul.f32 %v906, %v904
      %v908 = vxor.u32 %v907, 2147483648
      %v909 = vsel %vm788, %v908, %v907
      %v910 = vsub.s32 4, %v886
      %v911 = vsel %vm788, %v910, %v886
      %v912 = vsel %vm787, %v285, %v909
      %v913 = vsel %vm787, 0, %v911
      %v914 = vmul.f32 %v912, %v912
      %v915 = vmul.f32 %v914, -0.001358992
      %v916 = vadd.f32 %v915, 0.041655596
      %v917 = vmul.f32 %v914, %v916
      %v918 = vadd.f32 %v917, -0.4999988
      %v919 = vmul.f32 %v914, %v918
      %v920 = vadd.f32 1.0, %v919
      %v921 = vmul.f32 %v912, %v912
      %v922 = vmul.f32 %v921, -0.00019511016
      %v923 = vadd.f32 %v922, 0.008332121
      %v924 = vmul.f32 %v921, %v923
      %v925 = vadd.f32 %v924, -0.16666654
      %v926 = vmul.f32 %v921, %v925
      %v927 = vadd.f32 %v926, 1.0
      %v928 = vmul.f32 %v927, %v912
      %vm929 = vweird.f32 %v285
      %v930 = vadd.s32 %v913, 3
      %v931 = vand.u32 %v930, 3
      %vm932 = vcmp.lt.s32.totalorder %v931, 2
      %vm933 = vcmp.eq.s32.totalorder %v931, 0
      %v934 = vxor.u32 %v928, 2147483648
      %v935 = vsel %vm933, %v920, %v934
      %vm936 = vcmp.eq.s32.totalorder %v931, 2
      %v937 = vxor.u32 %v920, 2147483648
      %v938 = vsel %vm936, %v937, %v928
      %v939 = vsel %vm932, %v935, %v938
      %v940 = vsel %vm929, nan, %v939
      %v941 = vand.u32 2147483647, %v282
      %vm942 = vcmp.le.f32.partialorder %v941, 0.7853982
      %vm943 = vcmp.lt.s32.totalorder %v282, 0
      %v944 = vand.u32 %v282, 2139095040
      %v945 = vshrl.u32 %v944, 23
      %v946 = vsub.s32 %v945, 127
      %v947 = vand.u32 2147483647, %v282
      %v948 = vand.u32 %v947, 8388607
      %v949 = vor.u32 %v948, 8388608
      %v950 = vsub.s32 0, %v949
      %v951 = vadd.s32 %v946, 1
      %vm952 = vcmp.gt.s32.totalorder %v951, 0
      %v953 = vsel %vm952, %v951, 0
      %v954 = vshrl.u32 %v953, 5
      %v955 = vand.u32 %v953, 31
      %v956 = vsub.s32 32, %v955
      %v957 = vshrl.u32 683565275, %v956
      %v958 = vshll.u32 683565275, %v955
      %v959 = vshrl.u32 2475754826, %v956
      %v960 = vor.u32 %v958, %v959
      %v961 = vshll.u32 2475754826, %v955
      %v962 = vshrl.u32 2131351028, %v956
      %v963 = vor.u32 %v961, %v962
      %v964 = vshll.u32 2131351028, %v955
      %v965 = vshrl.u32 2102212464, %v956
      %v966 = vor.u32 %v964, %v965
      %v967 = vshll.u32 2102212464, %v955
      %v968 = vshrl.u32 920167782, %v956
      %v969 = vor.u32 %v967, %v968
      %v970 = vshll.u32 920167782, %v955
      %v971 = vshrl.u32 1326507024, %v956
      %v972 = vor.u32 %v970, %v971
      %vm973 = vcmp.lt.s32.totalorder %v954, 1
      %vm974 = vcmp.lt.s32.totalorder %v954, 2
      %vm975 = vcmp.lt.s32.totalorder %v954, 3
      %vm976 = vcmp.lt.s32.totalorder %v954, 4
      %v977 = vsel %vm973, %v957, %v960
      %v978 = vsel %vm976, %v966, 2102212464
      %v979 = vsel %vm975, %v963, %v978
      %v980 = vsel %vm974, %v977, %v979
      %v981 = vsel %vm973, %v960, %v963
      %v982 = vsel %vm976, %v969, 920167782
      %v983 = vsel %vm975, %v966, %v982
      %v984 = vsel %vm974, %v981, %v983
      %v985 = vsel %vm973, %v963, %v966
      %v986 = vsel %vm976, %v972, 1326507024
      %v987 = vsel %vm975, %v969, %v986
      %v988 = vsel %vm974, %v985, %v987
      %v989 = vshll.u32 %v949, 8
      %v990 = vand.u32 %v989, 65535
      %v991 = vshrl.u32 %v989, 16
      %v992 = vand.u32 %v988, 65535
      %v993 = vshrl.u32 %v988, 16
      %v994 = vmul.u32 %v990, %v992
      %v995 = vmul.u32 %v990, %v993
      %v996 = vmul.u32 %v991, %v992
      %v997 = vmul.u32 %v991, %v993
      %v998 = vshll.u32 %v995, 16
      %v999 = vshrl.u32 %v995, 16
      %v1000 = vshll.u32 %v996, 16
      %v1001 = vshrl.u32 %v996, 16
      %vm1002 = vc.u32 %v994, %v998
      %v1003 = vsel %vm1002, 1, 0
      %v1004 = vadd.s32 %v994, %v998
      %v1005 = vadd.s32 %v997, %v1003
      %vm1006 = vc.u32 %v1004, %v1000
      %v1007 = vsel %vm1006, 1, 0
      %v1008 = vadd.s32 %v1004, %v1000
      %v1009 = vadd.s32 %v1005, %v1007
      %v1010 = vadd.s32 %v1009, %v999
      %v1011 = vadd.s32 %v1010, %v1001
      %v1012 = vand.u32 %v989, 65535
      %v1013 = vshrl.u32 %v989, 16
      %v1014 = vand.u32 %v984, 65535
      %v1015 = vshrl.u32 %v984, 16
      %v1016 = vmul.u32 %v1012, %v1014
      %v1017 = vmul.u32 %v1012, %v1015
      %v1018 = vmul.u32 %v1013, %v1014
      %v1019 = vmul.u32 %v1013, %v1015
      %v1020 = vshll.u32 %v1017, 16
      %v1021 = vshrl.u32 %v1017, 16
      %v1022 = vshll.u32 %v1018, 16
      %v1023 = vshrl.u32 %v1018, 16
      %vm1024 = vc.u32 %v1016, %v1020
      %v1025 = vsel %vm1024, 1, 0
      %v1026 = vadd.s32 %v1016, %v1020
      %v1027 = vadd.s32 %v1019, %v1025
      %vm1028 = vc.u32 %v1026, %v1022
      %v1029 = vsel %vm1028, 1, 0
      %v1030 = vadd.s32 %v1026, %v1022
      %v1031 = vadd.s32 %v1027, %v1029
      %v1032 = vadd.s32 %v1031, %v1021
      %v1033 = vadd.s32 %v1032, %v1023
      %v1034 = vmul.u32 %v989, %v980
      %v1035 = vadd.s32 %v1011, %v1030
      %vm1036 = vc.u32 %v1011, %v1030
      %v1037 = vadd.s32 %v1033, 1
      %v1038 = vsel %vm1036, %v1037, %v1033
      %v1039 = vadd.s32 %v1034, %v1038
      %v1040 = vadd.s32 %v1039, 536870912
      %v1041 = vshrl.u32 %v1040, 30
      %v1042 = vshll.u32 %v1041, 30
      %v1043 = vsub.s32 %v1039, %v1042
      %vm1044 = vcmp.lt.s32.totalorder %v1043, 0
      %v1045 = vsub.s32 0, %v1043
      %v1046 = vsel %vm1044, %v1045, %v1043
      %v1047 = vclz %v1046
      %v1048 = vsub.s32 %v1047, 2
      %vm1049 = vcmp.gt.s32.totalorder 0, %v1048
      %v1050 = vsel %vm1049, 0, %v1048
      %v1051 = vsub.s32 32, %v1050
      %v1052 = vshll.u32 %v1043, %v1050
      %v1053 = vshrl.u32 %v1035, %v1051
      %v1054 = vor.u32 %v1052, %v1053
      %v1055 = vsub.s32 4294967266, %v1050
      %v1056 = vadd.s32 %v1055, 127
      %v1057 = vshll.u32 %v1056, 23
      %v1058 = vor.u32 4788187, %v1057
      %v1059 = vand.u32 2147483647, %v1058
      %v1061 = vcvt.s32.f32 %v1054
      %v1062 = vmul.f32 %v1061, %v1059
      %v1063 = vxor.u32 %v1062, 2147483648
      %v1064 = vsel %vm943, %v1063, %v1062
      %v1065 = vsub.s32 4, %v1041
      %v1066 = vsel %vm943, %v1065, %v1041
      %v1067 = vsel %vm942, %v282, %v1064
      %v1068 = vsel %vm942, 0, %v1066
      %v1069 = vmul.f32 %v1067, %v1067
      %v1070 = vmul.f32 %v1069, -0.001358992
      %v1071 = vadd.f32 %v1070, 0.041655596
      %v1072 = vmul.f32 %v1069, %v1071
      %v1073 = vadd.f32 %v1072, -0.4999988
      %v1074 = vmul.f32 %v1069, %v1073
      %v1075 = vadd.f32 1.0, %v1074
      %v1076 = vmul.f32 %v1067, %v1067
      %v1077 = vmul.f32 %v1076, -0.00019511016
      %v1078 = vadd.f32 %v1077, 0.008332121
      %v1079 = vmul.f32 %v1076, %v1078
      %v1080 = vadd.f32 %v1079, -0.16666654
      %v1081 = vmul.f32 %v1076, %v1080
      %v1082 = vadd.f32 %v1081, 1.0
      %v1083 = vmul.f32 %v1082, %v1067
      %vm1084 = vweird.f32 %v282
      %v1085 = vand.u32 %v1068, 3
      %vm1086 = vcmp.lt.s32.totalorder %v1085, 2
      %vm1087 = vcmp.eq.s32.totalorder %v1085, 0
      %v1088 = vxor.u32 %v1083, 2147483648
      %v1089 = vsel %vm1087, %v1075, %v1088
      %vm1090 = vcmp.eq.s32.totalorder %v1085, 2
      %v1091 = vxor.u32 %v1075, 2147483648
      %v1092 = vsel %vm1090, %v1091, %v1083
      %v1093 = vsel %vm1086, %v1089, %v1092
      %v1094 = vsel %vm1084, nan, %v1093
      %v1095 = vand.u32 2147483647, %v283
      %vm1096 = vcmp.le.f32.partialorder %v1095, 0.7853982
      %vm1097 = vcmp.lt.s32.totalorder %v283, 0
      %v1098 = vand.u32 %v283, 2139095040
      %v1099 = vshrl.u32 %v1098, 23
      %v1100 = vsub.s32 %v1099, 127
      %v1101 = vand.u32 2147483647, %v283
      %v1102 = vand.u32 %v1101, 8388607
      %v1103 = vor.u32 %v1102, 8388608
      %v1104 = vsub.s32 0, %v1103
      %v1105 = vadd.s32 %v1100, 1
      %vm1106 = vcmp.gt.s32.totalorder %v1105, 0
      %v1107 = vsel %vm1106, %v1105, 0
      %v1108 = vshrl.u32 %v1107, 5
      %v1109 = vand.u32 %v1107, 31
      %v1110 = vsub.s32 32, %v1109
      %v1111 = vshrl.u32 683565275, %v1110
      %v1112 = vshll.u32 683565275, %v1109
      %v1113 = vshrl.u32 2475754826, %v1110
      %v1114 = vor.u32 %v1112, %v1113
      %v1115 = vshll.u32 2475754826, %v1109
      %v1116 = vshrl.u32 2131351028, %v1110
      %v1117 = vor.u32 %v1115, %v1116
      %v1118 = vshll.u32 2131351028, %v1109
      %v1119 = vshrl.u32 2102212464, %v1110
      %v1120 = vor.u32 %v1118, %v1119
      %v1121 = vshll.u32 2102212464, %v1109
      %v1122 = vshrl.u32 920167782, %v1110
      %v1123 = vor.u32 %v1121, %v1122
      %v1124 = vshll.u32 920167782, %v1109
      %v1125 = vshrl.u32 1326507024, %v1110
      %v1126 = vor.u32 %v1124, %v1125
      %vm1127 = vcmp.lt.s32.totalorder %v1108, 1
      %vm1128 = vcmp.lt.s32.totalorder %v1108, 2
      %vm1129 = vcmp.lt.s32.totalorder %v1108, 3
      %vm1130 = vcmp.lt.s32.totalorder %v1108, 4
      %v1131 = vsel %vm1127, %v1111, %v1114
      %v1132 = vsel %vm1130, %v1120, 2102212464
      %v1133 = vsel %vm1129, %v1117, %v1132
      %v1134 = vsel %vm1128, %v1131, %v1133
      %v1135 = vsel %vm1127, %v1114, %v1117
      %v1136 = vsel %vm1130, %v1123, 920167782
      %v1137 = vsel %vm1129, %v1120, %v1136
      %v1138 = vsel %vm1128, %v1135, %v1137
      %v1139 = vsel %vm1127, %v1117, %v1120
      %v1140 = vsel %vm1130, %v1126, 1326507024
      %v1141 = vsel %vm1129, %v1123, %v1140
      %v1142 = vsel %vm1128, %v1139, %v1141
      %v1143 = vshll.u32 %v1103, 8
      %v1144 = vand.u32 %v1143, 65535
      %v1145 = vshrl.u32 %v1143, 16
      %v1146 = vand.u32 %v1142, 65535
      %v1147 = vshrl.u32 %v1142, 16
      %v1148 = vmul.u32 %v1144, %v1146
      %v1149 = vmul.u32 %v1144, %v1147
      %v1150 = vmul.u32 %v1145, %v1146
      %v1151 = vmul.u32 %v1145, %v1147
      %v1152 = vshll.u32 %v1149, 16
      %v1153 = vshrl.u32 %v1149, 16
      %v1154 = vshll.u32 %v1150, 16
      %v1155 = vshrl.u32 %v1150, 16
      %vm1156 = vc.u32 %v1148, %v1152
      %v1157 = vsel %vm1156, 1, 0
      %v1158 = vadd.s32 %v1148, %v1152
      %v1159 = vadd.s32 %v1151, %v1157
      %vm1160 = vc.u32 %v1158, %v1154
      %v1161 = vsel %vm1160, 1, 0
      %v1162 = vadd.s32 %v1158, %v1154
      %v1163 = vadd.s32 %v1159, %v1161
      %v1164 = vadd.s32 %v1163, %v1153
      %v1165 = vadd.s32 %v1164, %v1155
      %v1166 = vand.u32 %v1143, 65535
      %v1167 = vshrl.u32 %v1143, 16
      %v1168 = vand.u32 %v1138, 65535
      %v1169 = vshrl.u32 %v1138, 16
      %v1170 = vmul.u32 %v1166, %v1168
      %v1171 = vmul.u32 %v1166, %v1169
      %v1172 = vmul.u32 %v1167, %v1168
      %v1173 = vmul.u32 %v1167, %v1169
      %v1174 = vshll.u32 %v1171, 16
      %v1175 = vshrl.u32 %v1171, 16
      %v1176 = vshll.u32 %v1172, 16
      %v1177 = vshrl.u32 %v1172, 16
      %vm1178 = vc.u32 %v1170, %v1174
      %v1179 = vsel %vm1178, 1, 0
      %v1180 = vadd.s32 %v1170, %v1174
      %v1181 = vadd.s32 %v1173, %v1179
      %vm1182 = vc.u32 %v1180, %v1176
      %v1183 = vsel %vm1182, 1, 0
      %v1184 = vadd.s32 %v1180, %v1176
      %v1185 = vadd.s32 %v1181, %v1183
      %v1186 = vadd.s32 %v1185, %v1175
      %v1187 = vadd.s32 %v1186, %v1177
      %v1188 = vmul.u32 %v1143, %v1134
      %v1189 = vadd.s32 %v1165, %v1184
      %vm1190 = vc.u32 %v1165, %v1184
      %v1191 = vadd.s32 %v1187, 1
      %v1192 = vsel %vm1190, %v1191, %v1187
      %v1193 = vadd.s32 %v1188, %v1192
      %v1194 = vadd.s32 %v1193, 536870912
      %v1195 = vshrl.u32 %v1194, 30
      %v1196 = vshll.u32 %v1195, 30
      %v1197 = vsub.s32 %v1193, %v1196
      %vm1198 = vcmp.lt.s32.totalorder %v1197, 0
      %v1199 = vsub.s32 0, %v1197
      %v1200 = vsel %vm1198, %v1199, %v1197
      %v1201 = vclz %v1200
      %v1202 = vsub.s32 %v1201, 2
      %vm1203 = vcmp.gt.s32.totalorder 0, %v1202
      %v1204 = vsel %vm1203, 0, %v1202
      %v1205 = vsub.s32 32, %v1204
      %v1206 = vshll.u32 %v1197, %v1204
      %v1207 = vshrl.u32 %v1189, %v1205
      %v1208 = vor.u32 %v1206, %v1207
      %v1209 = vsub.s32 4294967266, %v1204
      %v1210 = vadd.s32 %v1209, 127
      %v1211 = vshll.u32 %v1210, 23
      %v1212 = vor.u32 4788187, %v1211
      %v1213 = vand.u32 2147483647, %v1212
      %v1215 = vcvt.s32.f32 %v1208
      %v1216 = vmul.f32 %v1215, %v1213
      %v1217 = vxor.u32 %v1216, 2147483648
      %v1218 = vsel %vm1097, %v1217, %v1216
      %v1219 = vsub.s32 4, %v1195
      %v1220 = vsel %vm1097, %v1219, %v1195
      %v1221 = vsel %vm1096, %v283, %v1218
      %v1222 = vsel %vm1096, 0, %v1220
      %v1223 = vmul.f32 %v1221, %v1221
      %v1224 = vmul.f32 %v1223, -0.001358992
      %v1225 = vadd.f32 %v1224, 0.041655596
      %v1226 = vmul.f32 %v1223, %v1225
      %v1227 = vadd.f32 %v1226, -0.4999988
      %v1228 = vmul.f32 %v1223, %v1227
      %v1229 = vadd.f32 1.0, %v1228
      %v1230 = vmul.f32 %v1221, %v1221
      %v1231 = vmul.f32 %v1230, -0.00019511016
      %v1232 = vadd.f32 %v1231, 0.008332121
      %v1233 = vmul.f32 %v1230, %v1232
      %v1234 = vadd.f32 %v1233, -0.16666654
      %v1235 = vmul.f32 %v1230, %v1234
      %v1236 = vadd.f32 %v1235, 1.0
      %v1237 = vmul.f32 %v1236, %v1221
      %vm1238 = vweird.f32 %v283
      %v1239 = vand.u32 %v1222, 3
      %vm1240 = vcmp.lt.s32.totalorder %v1239, 2
      %vm1241 = vcmp.eq.s32.totalorder %v1239, 0
      %v1242 = vxor.u32 %v1237, 2147483648
      %v1243 = vsel %vm1241, %v1229, %v1242
      %vm1244 = vcmp.eq.s32.totalorder %v1239, 2
      %v1245 = vxor.u32 %v1229, 2147483648
      %v1246 = vsel %vm1244, %v1245, %v1237
      %v1247 = vsel %vm1240, %v1243, %v1246
      %v1248 = vsel %vm1238, nan, %v1247
      %v1249 = vand.u32 2147483647, %v284
      %vm1250 = vcmp.le.f32.partialorder %v1249, 0.7853982
      %vm1251 = vcmp.lt.s32.totalorder %v284, 0
      %v1252 = vand.u32 %v284, 2139095040
      %v1253 = vshrl.u32 %v1252, 23
      %v1254 = vsub.s32 %v1253, 127
      %v1255 = vand.u32 2147483647, %v284
      %v1256 = vand.u32 %v1255, 8388607
      %v1257 = vor.u32 %v1256, 8388608
      %v1258 = vsub.s32 0, %v1257
      %v1259 = vadd.s32 %v1254, 1
      %vm1260 = vcmp.gt.s32.totalorder %v1259, 0
      %v1261 = vsel %vm1260, %v1259, 0
      %v1262 = vshrl.u32 %v1261, 5
      %v1263 = vand.u32 %v1261, 31
      %v1264 = vsub.s32 32, %v1263
      %v1265 = vshrl.u32 683565275, %v1264
      %v1266 = vshll.u32 683565275, %v1263
      %v1267 = vshrl.u32 2475754826, %v1264
      %v1268 = vor.u32 %v1266, %v1267
      %v1269 = vshll.u32 2475754826, %v1263
      %v1270 = vshrl.u32 2131351028, %v1264
      %v1271 = vor.u32 %v1269, %v1270
      %v1272 = vshll.u32 2131351028, %v1263
      %v1273 = vshrl.u32 2102212464, %v1264
      %v1274 = vor.u32 %v1272, %v1273
      %v1275 = vshll.u32 2102212464, %v1263
      %v1276 = vshrl.u32 920167782, %v1264
      %v1277 = vor.u32 %v1275, %v1276
      %v1278 = vshll.u32 920167782, %v1263
      %v1279 = vshrl.u32 1326507024, %v1264
      %v1280 = vor.u32 %v1278, %v1279
      %vm1281 = vcmp.lt.s32.totalorder %v1262, 1
      %vm1282 = vcmp.lt.s32.totalorder %v1262, 2
      %vm1283 = vcmp.lt.s32.totalorder %v1262, 3
      %vm1284 = vcmp.lt.s32.totalorder %v1262, 4
      %v1285 = vsel %vm1281, %v1265, %v1268
      %v1286 = vsel %vm1284, %v1274, 2102212464
      %v1287 = vsel %vm1283, %v1271, %v1286
      %v1288 = vsel %vm1282, %v1285, %v1287
      %v1289 = vsel %vm1281, %v1268, %v1271
      %v1290 = vsel %vm1284, %v1277, 920167782
      %v1291 = vsel %vm1283, %v1274, %v1290
      %v1292 = vsel %vm1282, %v1289, %v1291
      %v1293 = vsel %vm1281, %v1271, %v1274
      %v1294 = vsel %vm1284, %v1280, 1326507024
      %v1295 = vsel %vm1283, %v1277, %v1294
      %v1296 = vsel %vm1282, %v1293, %v1295
      %v1297 = vshll.u32 %v1257, 8
      %v1298 = vand.u32 %v1297, 65535
      %v1299 = vshrl.u32 %v1297, 16
      %v1300 = vand.u32 %v1296, 65535
      %v1301 = vshrl.u32 %v1296, 16
      %v1302 = vmul.u32 %v1298, %v1300
      %v1303 = vmul.u32 %v1298, %v1301
      %v1304 = vmul.u32 %v1299, %v1300
      %v1305 = vmul.u32 %v1299, %v1301
      %v1306 = vshll.u32 %v1303, 16
      %v1307 = vshrl.u32 %v1303, 16
      %v1308 = vshll.u32 %v1304, 16
      %v1309 = vshrl.u32 %v1304, 16
      %vm1310 = vc.u32 %v1302, %v1306
      %v1311 = vsel %vm1310, 1, 0
      %v1312 = vadd.s32 %v1302, %v1306
      %v1313 = vadd.s32 %v1305, %v1311
      %vm1314 = vc.u32 %v1312, %v1308
      %v1315 = vsel %vm1314, 1, 0
      %v1316 = vadd.s32 %v1312, %v1308
      %v1317 = vadd.s32 %v1313, %v1315
      %v1318 = vadd.s32 %v1317, %v1307
      %v1319 = vadd.s32 %v1318, %v1309
      %v1320 = vand.u32 %v1297, 65535
      %v1321 = vshrl.u32 %v1297, 16
      %v1322 = vand.u32 %v1292, 65535
      %v1323 = vshrl.u32 %v1292, 16
      %v1324 = vmul.u32 %v1320, %v1322
      %v1325 = vmul.u32 %v1320, %v1323
      %v1326 = vmul.u32 %v1321, %v1322
      %v1327 = vmul.u32 %v1321, %v1323
      %v1328 = vshll.u32 %v1325, 16
      %v1329 = vshrl.u32 %v1325, 16
      %v1330 = vshll.u32 %v1326, 16
      %v1331 = vshrl.u32 %v1326, 16
      %vm1332 = vc.u32 %v1324, %v1328
      %v1333 = vsel %vm1332, 1, 0
      %v1334 = vadd.s32 %v1324, %v1328
      %v1335 = vadd.s32 %v1327, %v1333
      %vm1336 = vc.u32 %v1334, %v1330
      %v1337 = vsel %vm1336, 1, 0
      %v1338 = vadd.s32 %v1334, %v1330
      %v1339 = vadd.s32 %v1335, %v1337
      %v1340 = vadd.s32 %v1339, %v1329
      %v1341 = vadd.s32 %v1340, %v1331
      %v1342 = vmul.u32 %v1297, %v1288
      %v1343 = vadd.s32 %v1319, %v1338
      %vm1344 = vc.u32 %v1319, %v1338
      %v1345 = vadd.s32 %v1341, 1
      %v1346 = vsel %vm1344, %v1345, %v1341
      %v1347 = vadd.s32 %v1342, %v1346
      %v1348 = vadd.s32 %v1347, 536870912
      %v1349 = vshrl.u32 %v1348, 30
      %v1350 = vshll.u32 %v1349, 30
      %v1351 = vsub.s32 %v1347, %v1350
      %vm1352 = vcmp.lt.s32.totalorder %v1351, 0
      %v1353 = vsub.s32 0, %v1351
      %v1354 = vsel %vm1352, %v1353, %v1351
      %v1355 = vclz %v1354
      %v1356 = vsub.s32 %v1355, 2
      %vm1357 = vcmp.gt.s32.totalorder 0, %v1356
      %v1358 = vsel %vm1357, 0, %v1356
      %v1359 = vsub.s32 32, %v1358
      %v1360 = vshll.u32 %v1351, %v1358
      %v1361 = vshrl.u32 %v1343, %v1359
      %v1362 = vor.u32 %v1360, %v1361
      %v1363 = vsub.s32 4294967266, %v1358
      %v1364 = vadd.s32 %v1363, 127
      %v1365 = vshll.u32 %v1364, 23
      %v1366 = vor.u32 4788187, %v1365
      %v1367 = vand.u32 2147483647, %v1366
      %v1369 = vcvt.s32.f32 %v1362
      %v1370 = vmul.f32 %v1369, %v1367
      %v1371 = vxor.u32 %v1370, 2147483648
      %v1372 = vsel %vm1251, %v1371, %v1370
      %v1373 = vsub.s32 4, %v1349
      %v1374 = vsel %vm1251, %v1373, %v1349
      %v1375 = vsel %vm1250, %v284, %v1372
      %v1376 = vsel %vm1250, 0, %v1374
      %v1377 = vmul.f32 %v1375, %v1375
      %v1378 = vmul.f32 %v1377, -0.001358992
      %v1379 = vadd.f32 %v1378, 0.041655596
      %v1380 = vmul.f32 %v1377, %v1379
      %v1381 = vadd.f32 %v1380, -0.4999988
      %v1382 = vmul.f32 %v1377, %v1381
      %v1383 = vadd.f32 1.0, %v1382
      %v1384 = vmul.f32 %v1375, %v1375
      %v1385 = vmul.f32 %v1384, -0.00019511016
      %v1386 = vadd.f32 %v1385, 0.008332121
      %v1387 = vmul.f32 %v1384, %v1386
      %v1388 = vadd.f32 %v1387, -0.16666654
      %v1389 = vmul.f32 %v1384, %v1388
      %v1390 = vadd.f32 %v1389, 1.0
      %v1391 = vmul.f32 %v1390, %v1375
      %vm1392 = vweird.f32 %v284
      %v1393 = vand.u32 %v1376, 3
      %vm1394 = vcmp.lt.s32.totalorder %v1393, 2
      %vm1395 = vcmp.eq.s32.totalorder %v1393, 0
      %v1396 = vxor.u32 %v1391, 2147483648
      %v1397 = vsel %vm1395, %v1383, %v1396
      %vm1398 = vcmp.eq.s32.totalorder %v1393, 2
      %v1399 = vxor.u32 %v1383, 2147483648
      %v1400 = vsel %vm1398, %v1399, %v1391
      %v1401 = vsel %vm1394, %v1397, %v1400
      %v1402 = vsel %vm1392, nan, %v1401
      %v1403 = vand.u32 2147483647, %v285
      %vm1404 = vcmp.le.f32.partialorder %v1403, 0.7853982
      %vm1405 = vcmp.lt.s32.totalorder %v285, 0
      %v1406 = vand.u32 %v285, 2139095040
      %v1407 = vshrl.u32 %v1406, 23
      %v1408 = vsub.s32 %v1407, 127
      %v1409 = vand.u32 2147483647, %v285
      %v1410 = vand.u32 %v1409, 8388607
      %v1411 = vor.u32 %v1410, 8388608
      %v1412 = vsub.s32 0, %v1411
      %v1413 = vadd.s32 %v1408, 1
      %vm1414 = vcmp.gt.s32.totalorder %v1413, 0
      %v1415 = vsel %vm1414, %v1413, 0
      %v1416 = vshrl.u32 %v1415, 5
      %v1417 = vand.u32 %v1415, 31
      %v1418 = vsub.s32 32, %v1417
      %v1419 = vshrl.u32 683565275, %v1418
      %v1420 = vshll.u32 683565275, %v1417
      %v1421 = vshrl.u32 2475754826, %v1418
      %v1422 = vor.u32 %v1420, %v1421
      %v1423 = vshll.u32 2475754826, %v1417
      %v1424 = vshrl.u32 2131351028, %v1418
      %v1425 = vor.u32 %v1423, %v1424
      %v1426 = vshll.u32 2131351028, %v1417
      %v1427 = vshrl.u32 2102212464, %v1418
      %v1428 = vor.u32 %v1426, %v1427
      %v1429 = vshll.u32 2102212464, %v1417
      %v1430 = vshrl.u32 920167782, %v1418
      %v1431 = vor.u32 %v1429, %v1430
      %v1432 = vshll.u32 920167782, %v1417
      %v1433 = vshrl.u32 1326507024, %v1418
      %v1434 = vor.u32 %v1432, %v1433
      %vm1435 = vcmp.lt.s32.totalorder %v1416, 1
      %vm1436 = vcmp.lt.s32.totalorder %v1416, 2
      %vm1437 = vcmp.lt.s32.totalorder %v1416, 3
      %vm1438 = vcmp.lt.s32.totalorder %v1416, 4
      %v1439 = vsel %vm1435, %v1419, %v1422
      %v1440 = vsel %vm1438, %v1428, 2102212464
      %v1441 = vsel %vm1437, %v1425, %v1440
      %v1442 = vsel %vm1436, %v1439, %v1441
      %v1443 = vsel %vm1435, %v1422, %v1425
      %v1444 = vsel %vm1438, %v1431, 920167782
      %v1445 = vsel %vm1437, %v1428, %v1444
      %v1446 = vsel %vm1436, %v1443, %v1445
      %v1447 = vsel %vm1435, %v1425, %v1428
      %v1448 = vsel %vm1438, %v1434, 1326507024
      %v1449 = vsel %vm1437, %v1431, %v1448
      %v1450 = vsel %vm1436, %v1447, %v1449
      %v1451 = vshll.u32 %v1411, 8
      %v1452 = vand.u32 %v1451, 65535
      %v1453 = vshrl.u32 %v1451, 16
      %v1454 = vand.u32 %v1450, 65535
      %v1455 = vshrl.u32 %v1450, 16
      %v1456 = vmul.u32 %v1452, %v1454
      %v1457 = vmul.u32 %v1452, %v1455
      %v1458 = vmul.u32 %v1453, %v1454
      %v1459 = vmul.u32 %v1453, %v1455
      %v1460 = vshll.u32 %v1457, 16
      %v1461 = vshrl.u32 %v1457, 16
      %v1462 = vshll.u32 %v1458, 16
      %v1463 = vshrl.u32 %v1458, 16
      %vm1464 = vc.u32 %v1456, %v1460
      %v1465 = vsel %vm1464, 1, 0
      %v1466 = vadd.s32 %v1456, %v1460
      %v1467 = vadd.s32 %v1459, %v1465
      %vm1468 = vc.u32 %v1466, %v1462
      %v1469 = vsel %vm1468, 1, 0
      %v1470 = vadd.s32 %v1466, %v1462
      %v1471 = vadd.s32 %v1467, %v1469
      %v1472 = vadd.s32 %v1471, %v1461
      %v1473 = vadd.s32 %v1472, %v1463
      %v1474 = vand.u32 %v1451, 65535
      %v1475 = vshrl.u32 %v1451, 16
      %v1476 = vand.u32 %v1446, 65535
      %v1477 = vshrl.u32 %v1446, 16
      %v1478 = vmul.u32 %v1474, %v1476
      %v1479 = vmul.u32 %v1474, %v1477
      %v1480 = vmul.u32 %v1475, %v1476
      %v1481 = vmul.u32 %v1475, %v1477
      %v1482 = vshll.u32 %v1479, 16
      %v1483 = vshrl.u32 %v1479, 16
      %v1484 = vshll.u32 %v1480, 16
      %v1485 = vshrl.u32 %v1480, 16
      %vm1486 = vc.u32 %v1478, %v1482
      %v1487 = vsel %vm1486, 1, 0
      %v1488 = vadd.s32 %v1478, %v1482
      %v1489 = vadd.s32 %v1481, %v1487
      %vm1490 = vc.u32 %v1488, %v1484
      %v1491 = vsel %vm1490, 1, 0
      %v1492 = vadd.s32 %v1488, %v1484
      %v1493 = vadd.s32 %v1489, %v1491
      %v1494 = vadd.s32 %v1493, %v1483
      %v1495 = vadd.s32 %v1494, %v1485
      %v1496 = vmul.u32 %v1451, %v1442
      %v1497 = vadd.s32 %v1473, %v1492
      %vm1498 = vc.u32 %v1473, %v1492
      %v1499 = vadd.s32 %v1495, 1
      %v1500 = vsel %vm1498, %v1499, %v1495
      %v1501 = vadd.s32 %v1496, %v1500
      %v1502 = vadd.s32 %v1501, 536870912
      %v1503 = vshrl.u32 %v1502, 30
      %v1504 = vshll.u32 %v1503, 30
      %v1505 = vsub.s32 %v1501, %v1504
      %vm1506 = vcmp.lt.s32.totalorder %v1505, 0
      %v1507 = vsub.s32 0, %v1505
      %v1508 = vsel %vm1506, %v1507, %v1505
      %v1509 = vclz %v1508
      %v1510 = vsub.s32 %v1509, 2
      %vm1511 = vcmp.gt.s32.totalorder 0, %v1510
      %v1512 = vsel %vm1511, 0, %v1510
      %v1513 = vsub.s32 32, %v1512
      %v1514 = vshll.u32 %v1505, %v1512
      %v1515 = vshrl.u32 %v1497, %v1513
      %v1516 = vor.u32 %v1514, %v1515
      %v1517 = vsub.s32 4294967266, %v1512
      %v1518 = vadd.s32 %v1517, 127
      %v1519 = vshll.u32 %v1518, 23
      %v1520 = vor.u32 4788187, %v1519
      %v1521 = vand.u32 2147483647, %v1520
      %v1523 = vcvt.s32.f32 %v1516
      %v1524 = vmul.f32 %v1523, %v1521
      %v1525 = vxor.u32 %v1524, 2147483648
      %v1526 = vsel %vm1405, %v1525, %v1524
      %v1527 = vsub.s32 4, %v1503
      %v1528 = vsel %vm1405, %v1527, %v1503
      %v1529 = vsel %vm1404, %v285, %v1526
      %v1530 = vsel %vm1404, 0, %v1528
      %v1531 = vmul.f32 %v1529, %v1529
      %v1532 = vmul.f32 %v1531, -0.001358992
      %v1533 = vadd.f32 %v1532, 0.041655596
      %v1534 = vmul.f32 %v1531, %v1533
      %v1535 = vadd.f32 %v1534, -0.4999988
      %v1536 = vmul.f32 %v1531, %v1535
      %v1537 = vadd.f32 1.0, %v1536
      %v1538 = vmul.f32 %v1529, %v1529
      %v1539 = vmul.f32 %v1538, -0.00019511016
      %v1540 = vadd.f32 %v1539, 0.008332121
      %v1541 = vmul.f32 %v1538, %v1540
      %v1542 = vadd.f32 %v1541, -0.16666654
      %v1543 = vmul.f32 %v1538, %v1542
      %v1544 = vadd.f32 %v1543, 1.0
      %v1545 = vmul.f32 %v1544, %v1529
      %vm1546 = vweird.f32 %v285
      %v1547 = vand.u32 %v1530, 3
      %vm1548 = vcmp.lt.s32.totalorder %v1547, 2
      %vm1549 = vcmp.eq.s32.totalorder %v1547, 0
      %v1550 = vxor.u32 %v1545, 2147483648
      %v1551 = vsel %vm1549, %v1537, %v1550
      %vm1552 = vcmp.eq.s32.totalorder %v1547, 2
      %v1553 = vxor.u32 %v1537, 2147483648
      %v1554 = vsel %vm1552, %v1553, %v1545
      %v1555 = vsel %vm1548, %v1551, %v1554
      %v1556 = vsel %vm1546, nan, %v1555
      %1561 = vst [vmem:[#allocation1] ss:$2 sm:$0xff] %v475
      %s1562 = scalar_lea.vmem [#allocation1], 16
      %1563 = vst [vmem:[%s1562] ss:$2 sm:$0xff] %v630
      %s1564 = scalar_lea.vmem [#allocation1], 32
      %1565 = vst [vmem:[%s1564] ss:$2 sm:$0xff] %v785
      %s1566 = scalar_lea.vmem [#allocation1], 48
      %1567 = vst [vmem:[%s1566] ss:$2 sm:$0xff] %v940
      %v1568 = vld.sshfl [vmem:[#allocation1] sm:$0xff pattern:$0x75316420]
      %v1569 = vld.sshfl [vmem:[#allocation1 + $0x8] sm:$0xff pattern:$0x75316420]
      %v1570 = vld.sshfl [vmem:[#allocation1 + $0x10] sm:$0xff pattern:$0x75316420]
      %v1571 = vld.sshfl [vmem:[#allocation1 + $0x18] sm:$0xff pattern:$0x75316420]
      %v1572 = vld.sshfl [vmem:[#allocation1 + $0x20] sm:$0xff pattern:$0x75316420]
      %v1573 = vld.sshfl [vmem:[#allocation1 + $0x28] sm:$0xff pattern:$0x75316420]
      %v1574 = vld.sshfl [vmem:[#allocation1 + $0x30] sm:$0xff pattern:$0x75316420]
      %v1575 = vld.sshfl [vmem:[#allocation1 + $0x38] sm:$0xff pattern:$0x75316420]
      %v1576 = vrot.slane %v1568, 5
      %v1577 = vrot.slane %v1569, 5
      %v1578 = vrot.slane %v1570, 5
      %v1579 = vrot.slane %v1571, 5
      %v1580 = vrot.slane %v1572, 5
      %v1581 = vrot.slane %v1573, 5
      %v1582 = vrot.slane %v1574, 5
      %v1583 = vrot.slane %v1575, 5
      %1592 = vst [vmem:[#allocation2] sm:$0x38] %v1576
      %1593 = vst [vmem:[#allocation2 + $0x8] sm:$0x38] %v1577
      %1594 = vst [vmem:[#allocation2 + $0x10] sm:$0x38] %v1578
      %1595 = vst [vmem:[#allocation2 + $0x18] sm:$0x38] %v1579
      %1596 = vst [vmem:[#allocation2 + $0x20] sm:$0x38] %v1580
      %1597 = vst [vmem:[#allocation2 + $0x28] sm:$0x38] %v1581
      %1598 = vst [vmem:[#allocation2 + $0x30] sm:$0x38] %v1582
      %1599 = vst [vmem:[#allocation2 + $0x38] sm:$0x38] %v1583
      %1604 = vst [vmem:[#allocation1] ss:$2 sm:$0xff] %v1094
      %s1605 = scalar_lea.vmem [#allocation1], 16
      %1606 = vst [vmem:[%s1605] ss:$2 sm:$0xff] %v1248
      %s1607 = scalar_lea.vmem [#allocation1], 32
      %1608 = vst [vmem:[%s1607] ss:$2 sm:$0xff] %v1402
      %s1609 = scalar_lea.vmem [#allocation1], 48
      %1610 = vst [vmem:[%s1609] ss:$2 sm:$0xff] %v1556
      %v1611 = vld.sshfl [vmem:[#allocation1] sm:$0xff pattern:$0x75316420]
      %v1612 = vld.sshfl [vmem:[#allocation1 + $0x8] sm:$0xff pattern:$0x75316420]
      %v1613 = vld.sshfl [vmem:[#allocation1 + $0x10] sm:$0xff pattern:$0x75316420]
      %v1614 = vld.sshfl [vmem:[#allocation1 + $0x18] sm:$0xff pattern:$0x75316420]
      %v1615 = vld.sshfl [vmem:[#allocation1 + $0x20] sm:$0xff pattern:$0x75316420]
      %v1616 = vld.sshfl [vmem:[#allocation1 + $0x28] sm:$0xff pattern:$0x75316420]
      %v1617 = vld.sshfl [vmem:[#allocation1 + $0x30] sm:$0xff pattern:$0x75316420]
      %v1618 = vld.sshfl [vmem:[#allocation1 + $0x38] sm:$0xff pattern:$0x75316420]
      %v1619 = vrot.slane %v1611, 2
      %v1620 = vrot.slane %v1612, 2
      %v1621 = vrot.slane %v1613, 2
      %v1622 = vrot.slane %v1614, 2
      %v1623 = vrot.slane %v1615, 2
      %v1624 = vrot.slane %v1616, 2
      %v1625 = vrot.slane %v1617, 2
      %v1626 = vrot.slane %v1618, 2
      %1635 = vst [vmem:[#allocation2] sm:$0xc0] %v1619
      %1636 = vst [vmem:[#allocation2 + $0x8] sm:$0xc0] %v1620
      %1637 = vst [vmem:[#allocation2 + $0x10] sm:$0xc0] %v1621
      %1638 = vst [vmem:[#allocation2 + $0x18] sm:$0xc0] %v1622
      %1639 = vst [vmem:[#allocation2 + $0x20] sm:$0xc0] %v1623
      %1640 = vst [vmem:[#allocation2 + $0x28] sm:$0xc0] %v1624
      %1641 = vst [vmem:[#allocation2 + $0x30] sm:$0xc0] %v1625
      %1642 = vst [vmem:[#allocation2 + $0x38] sm:$0xc0] %v1626
      %1643 = vst [vmem:[#allocation2 + $0x40] sm:$0x1] %v1619
      %1644 = vst [vmem:[#allocation2 + $0x48] sm:$0x1] %v1620
      %1645 = vst [vmem:[#allocation2 + $0x50] sm:$0x1] %v1621
      %1646 = vst [vmem:[#allocation2 + $0x58] sm:$0x1] %v1622
      %1647 = vst [vmem:[#allocation2 + $0x60] sm:$0x1] %v1623
      %1648 = vst [vmem:[#allocation2 + $0x68] sm:$0x1] %v1624
      %1649 = vst [vmem:[#allocation2 + $0x70] sm:$0x1] %v1625
      %1650 = vst [vmem:[#allocation2 + $0x78] sm:$0x1] %v1626
      %v1651 = vmul.f32 %v475, 2.0
      %v1652 = vmul.f32 %v630, 2.0
      %v1653 = vmul.f32 %v785, 2.0
      %v1654 = vmul.f32 %v940, 2.0
      %v1655 = vmul.f32 %v1651, %v1094
      %v1656 = vmul.f32 %v1652, %v1248
      %v1657 = vmul.f32 %v1653, %v1402
      %v1658 = vmul.f32 %v1654, %v1556
      %v1659 = vmul.f32 %v1094, %v1094
      %v1660 = vmul.f32 %v1248, %v1248
      %v1661 = vmul.f32 %v1402, %v1402
      %v1662 = vmul.f32 %v1556, %v1556
      %v1663 = vmul.f32 %v475, %v475
      %v1664 = vmul.f32 %v630, %v630
      %v1665 = vmul.f32 %v785, %v785
      %v1666 = vmul.f32 %v940, %v940
      %v1667 = vsub.f32 %v1659, %v1663
      %v1668 = vsub.f32 %v1660, %v1664
      %v1669 = vsub.f32 %v1661, %v1665
      %v1670 = vsub.f32 %v1662, %v1666
      %1675 = vst [vmem:[#allocation1] ss:$2 sm:$0xff] %v1655
      %s1676 = scalar_lea.vmem [#allocation1], 16
      %1677 = vst [vmem:[%s1676] ss:$2 sm:$0xff] %v1656
      %s1678 = scalar_lea.vmem [#allocation1], 32
      %1679 = vst [vmem:[%s1678] ss:$2 sm:$0xff] %v1657
      %s1680 = scalar_lea.vmem [#allocation1], 48
      %1681 = vst [vmem:[%s1680] ss:$2 sm:$0xff] %v1658
      %v1682 = vld.sshfl [vmem:[#allocation1] sm:$0xff pattern:$0x75316420]
      %v1683 = vld.sshfl [vmem:[#allocation1 + $0x8] sm:$0xff pattern:$0x75316420]
      %v1684 = vld.sshfl [vmem:[#allocation1 + $0x10] sm:$0xff pattern:$0x75316420]
      %v1685 = vld.sshfl [vmem:[#allocation1 + $0x18] sm:$0xff pattern:$0x75316420]
      %v1686 = vld.sshfl [vmem:[#allocation1 + $0x20] sm:$0xff pattern:$0x75316420]
      %v1687 = vld.sshfl [vmem:[#allocation1 + $0x28] sm:$0xff pattern:$0x75316420]
      %v1688 = vld.sshfl [vmem:[#allocation1 + $0x30] sm:$0xff pattern:$0x75316420]
      %v1689 = vld.sshfl [vmem:[#allocation1 + $0x38] sm:$0xff pattern:$0x75316420]
      %v1690 = vrot.slane %v1682, 7
      %v1691 = vrot.slane %v1683, 7
      %v1692 = vrot.slane %v1684, 7
      %v1693 = vrot.slane %v1685, 7
      %v1694 = vrot.slane %v1686, 7
      %v1695 = vrot.slane %v1687, 7
      %v1696 = vrot.slane %v1688, 7
      %v1697 = vrot.slane %v1689, 7
      %1706 = vst [vmem:[#allocation2 + $0x40] sm:$0xe] %v1690
      %1707 = vst [vmem:[#allocation2 + $0x48] sm:$0xe] %v1691
      %1708 = vst [vmem:[#allocation2 + $0x50] sm:$0xe] %v1692
      %1709 = vst [vmem:[#allocation2 + $0x58] sm:$0xe] %v1693
      %1710 = vst [vmem:[#allocation2 + $0x60] sm:$0xe] %v1694
      %1711 = vst [vmem:[#allocation2 + $0x68] sm:$0xe] %v1695
      %1712 = vst [vmem:[#allocation2 + $0x70] sm:$0xe] %v1696
      %1713 = vst [vmem:[#allocation2 + $0x78] sm:$0xe] %v1697
      %s1718 = scalar_lea.vmem [#allocation1], 1
      %1719 = vst [vmem:[%s1718] ss:$2 sm:$0xff] %v1667
      %s1720 = scalar_lea.vmem [#allocation1], 17
      %1721 = vst [vmem:[%s1720] ss:$2 sm:$0xff] %v1668
      %s1722 = scalar_lea.vmem [#allocation1], 33
      %1723 = vst [vmem:[%s1722] ss:$2 sm:$0xff] %v1669
      %s1724 = scalar_lea.vmem [#allocation1], 49
      %1725 = vst [vmem:[%s1724] ss:$2 sm:$0xff] %v1670
      %v1726 = vld.sshfl [vmem:[#allocation1] sm:$0xff pattern:$0x75316420]
      %v1727 = vld.sshfl [vmem:[#allocation1 + $0x8] sm:$0xff pattern:$0x75316420]
      %v1728 = vld.sshfl [vmem:[#allocation1 + $0x10] sm:$0xff pattern:$0x75316420]
      %v1729 = vld.sshfl [vmem:[#allocation1 + $0x18] sm:$0xff pattern:$0x75316420]
      %v1730 = vld.sshfl [vmem:[#allocation1 + $0x20] sm:$0xff pattern:$0x75316420]
      %v1731 = vld.sshfl [vmem:[#allocation1 + $0x28] sm:$0xff pattern:$0x75316420]
      %v1732 = vld.sshfl [vmem:[#allocation1 + $0x30] sm:$0xff pattern:$0x75316420]
      %v1733 = vld.sshfl [vmem:[#allocation1 + $0x38] sm:$0xff pattern:$0x75316420]
      %1742 = vst [vmem:[#allocation2 + $0x40] sm:$0x70] %v1726
      %1743 = vst [vmem:[#allocation2 + $0x48] sm:$0x70] %v1727
      %1744 = vst [vmem:[#allocation2 + $0x50] sm:$0x70] %v1728
      %1745 = vst [vmem:[#allocation2 + $0x58] sm:$0x70] %v1729
      %1746 = vst [vmem:[#allocation2 + $0x60] sm:$0x70] %v1730
      %1747 = vst [vmem:[#allocation2 + $0x68] sm:$0x70] %v1731
      %1748 = vst [vmem:[#allocation2 + $0x70] sm:$0x70] %v1732
      %1749 = vst [vmem:[#allocation2 + $0x78] sm:$0x70] %v1733
      %v1750 = vmul.f32 %v1655, 2.0
      %v1751 = vmul.f32 %v1656, 2.0
      %v1752 = vmul.f32 %v1657, 2.0
      %v1753 = vmul.f32 %v1658, 2.0
      %v1754 = vmul.f32 %v1750, %v1667
      %v1755 = vmul.f32 %v1751, %v1668
      %v1756 = vmul.f32 %v1752, %v1669
      %v1757 = vmul.f32 %v1753, %v1670
      %v1758 = vmul.f32 %v1667, %v1667
      %v1759 = vmul.f32 %v1668, %v1668
      %v1760 = vmul.f32 %v1669, %v1669
      %v1761 = vmul.f32 %v1670, %v1670
      %v1762 = vmul.f32 %v1655, %v1655
      %v1763 = vmul.f32 %v1656, %v1656
      %v1764 = vmul.f32 %v1657, %v1657
      %v1765 = vmul.f32 %v1658, %v1658
      %v1766 = vsub.f32 %v1758, %v1762
      %v1767 = vsub.f32 %v1759, %v1763
      %v1768 = vsub.f32 %v1760, %v1764
      %v1769 = vsub.f32 %v1761, %v1765
      %1774 = vst [vmem:[#allocation1] ss:$2 sm:$0xff] %v1754
      %s1775 = scalar_lea.vmem [#allocation1], 16
      %1776 = vst [vmem:[%s1775] ss:$2 sm:$0xff] %v1755
      %s1777 = scalar_lea.vmem [#allocation1], 32
      %1778 = vst [vmem:[%s1777] ss:$2 sm:$0xff] %v1756
      %s1779 = scalar_lea.vmem [#allocation1], 48
      %1780 = vst [vmem:[%s1779] ss:$2 sm:$0xff] %v1757
      %v1781 = vld.sshfl [vmem:[#allocation1] sm:$0xff pattern:$0x75316420]
      %v1782 = vld.sshfl [vmem:[#allocation1 + $0x8] sm:$0xff pattern:$0x75316420]
      %v1783 = vld.sshfl [vmem:[#allocation1 + $0x10] sm:$0xff pattern:$0x75316420]
      %v1784 = vld.sshfl [vmem:[#allocation1 + $0x18] sm:$0xff pattern:$0x75316420]
      %v1785 = vld.sshfl [vmem:[#allocation1 + $0x20] sm:$0xff pattern:$0x75316420]
      %v1786 = vld.sshfl [vmem:[#allocation1 + $0x28] sm:$0xff pattern:$0x75316420]
      %v1787 = vld.sshfl [vmem:[#allocation1 + $0x30] sm:$0xff pattern:$0x75316420]
      %v1788 = vld.sshfl [vmem:[#allocation1 + $0x38] sm:$0xff pattern:$0x75316420]
      %v1789 = vrot.slane %v1781, 1
      %v1790 = vrot.slane %v1782, 1
      %v1791 = vrot.slane %v1783, 1
      %v1792 = vrot.slane %v1784, 1
      %v1793 = vrot.slane %v1785, 1
      %v1794 = vrot.slane %v1786, 1
      %v1795 = vrot.slane %v1787, 1
      %v1796 = vrot.slane %v1788, 1
      %1805 = vst [vmem:[#allocation2 + $0x40] sm:$0x80] %v1789
      %1806 = vst [vmem:[#allocation2 + $0x48] sm:$0x80] %v1790
      %1807 = vst [vmem:[#allocation2 + $0x50] sm:$0x80] %v1791
      %1808 = vst [vmem:[#allocation2 + $0x58] sm:$0x80] %v1792
      %1809 = vst [vmem:[#allocation2 + $0x60] sm:$0x80] %v1793
      %1810 = vst [vmem:[#allocation2 + $0x68] sm:$0x80] %v1794
      %1811 = vst [vmem:[#allocation2 + $0x70] sm:$0x80] %v1795
      %1812 = vst [vmem:[#allocation2 + $0x78] sm:$0x80] %v1796
      %1813 = vst [vmem:[#allocation2 + $0x80] sm:$0x3] %v1789
      %1814 = vst [vmem:[#allocation2 + $0x88] sm:$0x3] %v1790
      %1815 = vst [vmem:[#allocation2 + $0x90] sm:$0x3] %v1791
      %1816 = vst [vmem:[#allocation2 + $0x98] sm:$0x3] %v1792
      %1817 = vst [vmem:[#allocation2 + $0xa0] sm:$0x3] %v1793
      %1818 = vst [vmem:[#allocation2 + $0xa8] sm:$0x3] %v1794
      %1819 = vst [vmem:[#allocation2 + $0xb0] sm:$0x3] %v1795
      %1820 = vst [vmem:[#allocation2 + $0xb8] sm:$0x3] %v1796
      %1825 = vst [vmem:[#allocation1] ss:$2 sm:$0xff] %v1766
      %s1826 = scalar_lea.vmem [#allocation1], 16
      %1827 = vst [vmem:[%s1826] ss:$2 sm:$0xff] %v1767
      %s1828 = scalar_lea.vmem [#allocation1], 32
      %1829 = vst [vmem:[%s1828] ss:$2 sm:$0xff] %v1768
      %s1830 = scalar_lea.vmem [#allocation1], 48
      %1831 = vst [vmem:[%s1830] ss:$2 sm:$0xff] %v1769
      %v1832 = vld.sshfl [vmem:[#allocation1] sm:$0xff pattern:$0x75316420]
      %v1833 = vld.sshfl [vmem:[#allocation1 + $0x8] sm:$0xff pattern:$0x75316420]
      %v1834 = vld.sshfl [vmem:[#allocation1 + $0x10] sm:$0xff pattern:$0x75316420]
      %v1835 = vld.sshfl [vmem:[#allocation1 + $0x18] sm:$0xff pattern:$0x75316420]
      %v1836 = vld.sshfl [vmem:[#allocation1 + $0x20] sm:$0xff pattern:$0x75316420]
      %v1837 = vld.sshfl [vmem:[#allocation1 + $0x28] sm:$0xff pattern:$0x75316420]
      %v1838 = vld.sshfl [vmem:[#allocation1 + $0x30] sm:$0xff pattern:$0x75316420]
      %v1839 = vld.sshfl [vmem:[#allocation1 + $0x38] sm:$0xff pattern:$0x75316420]
      %v1840 = vrot.slane %v1832, 6
      %v1841 = vrot.slane %v1833, 6
      %v1842 = vrot.slane %v1834, 6
      %v1843 = vrot.slane %v1835, 6
      %v1844 = vrot.slane %v1836, 6
      %v1845 = vrot.slane %v1837, 6
      %v1846 = vrot.slane %v1838, 6
      %v1847 = vrot.slane %v1839, 6
      %1856 = vst [vmem:[#allocation2 + $0x80] sm:$0x1c] %v1840
      %1857 = vst [vmem:[#allocation2 + $0x88] sm:$0x1c] %v1841
      %1858 = vst [vmem:[#allocation2 + $0x90] sm:$0x1c] %v1842
      %1859 = vst [vmem:[#allocation2 + $0x98] sm:$0x1c] %v1843
      %1860 = vst [vmem:[#allocation2 + $0xa0] sm:$0x1c] %v1844
      %1861 = vst [vmem:[#allocation2 + $0xa8] sm:$0x1c] %v1845
      %1862 = vst [vmem:[#allocation2 + $0xb0] sm:$0x1c] %v1846
      %1863 = vst [vmem:[#allocation2 + $0xb8] sm:$0x1c] %v1847
      %v1864 = vmul.f32 %v1754, 2.0
      %v1865 = vmul.f32 %v1755, 2.0
      %v1866 = vmul.f32 %v1756, 2.0
      %v1867 = vmul.f32 %v1757, 2.0
      %v1868 = vmul.f32 %v1864, %v1766
      %v1869 = vmul.f32 %v1865, %v1767
      %v1870 = vmul.f32 %v1866, %v1768
      %v1871 = vmul.f32 %v1867, %v1769
      %v1872 = vmul.f32 %v1766, %v1766
      %v1873 = vmul.f32 %v1767, %v1767
      %v1874 = vmul.f32 %v1768, %v1768
      %v1875 = vmul.f32 %v1769, %v1769
      %v1876 = vmul.f32 %v1754, %v1754
      %v1877 = vmul.f32 %v1755, %v1755
      %v1878 = vmul.f32 %v1756, %v1756
      %v1879 = vmul.f32 %v1757, %v1757
      %v1880 = vsub.f32 %v1872, %v1876
      %v1881 = vsub.f32 %v1873, %v1877
      %v1882 = vsub.f32 %v1874, %v1878
      %v1883 = vsub.f32 %v1875, %v1879
      %1888 = vst [vmem:[#allocation1] ss:$2 sm:$0xff] %v1868
      %s1889 = scalar_lea.vmem [#allocation1], 16
      %1890 = vst [vmem:[%s1889] ss:$2 sm:$0xff] %v1869
      %s1891 = scalar_lea.vmem [#allocation1], 32
      %1892 = vst [vmem:[%s1891] ss:$2 sm:$0xff] %v1870
      %s1893 = scalar_lea.vmem [#allocation1], 48
      %1894 = vst [vmem:[%s1893] ss:$2 sm:$0xff] %v1871
      %v1895 = vld.sshfl [vmem:[#allocation1] sm:$0xff pattern:$0x75316420]
      %v1896 = vld.sshfl [vmem:[#allocation1 + $0x8] sm:$0xff pattern:$0x75316420]
      %v1897 = vld.sshfl [vmem:[#allocation1 + $0x10] sm:$0xff pattern:$0x75316420]
      %v1898 = vld.sshfl [vmem:[#allocation1 + $0x18] sm:$0xff pattern:$0x75316420]
      %v1899 = vld.sshfl [vmem:[#allocation1 + $0x20] sm:$0xff pattern:$0x75316420]
      %v1900 = vld.sshfl [vmem:[#allocation1 + $0x28] sm:$0xff pattern:$0x75316420]
      %v1901 = vld.sshfl [vmem:[#allocation1 + $0x30] sm:$0xff pattern:$0x75316420]
      %v1902 = vld.sshfl [vmem:[#allocation1 + $0x38] sm:$0xff pattern:$0x75316420]
      %v1903 = vrot.slane %v1895, 3
      %v1904 = vrot.slane %v1896, 3
      %v1905 = vrot.slane %v1897, 3
      %v1906 = vrot.slane %v1898, 3
      %v1907 = vrot.slane %v1899, 3
      %v1908 = vrot.slane %v1900, 3
      %v1909 = vrot.slane %v1901, 3
      %v1910 = vrot.slane %v1902, 3
      %1919 = vst [vmem:[#allocation2 + $0x80] sm:$0xe0] %v1903
      %1920 = vst [vmem:[#allocation2 + $0x88] sm:$0xe0] %v1904
      %1921 = vst [vmem:[#allocation2 + $0x90] sm:$0xe0] %v1905
      %1922 = vst [vmem:[#allocation2 + $0x98] sm:$0xe0] %v1906
      %1923 = vst [vmem:[#allocation2 + $0xa0] sm:$0xe0] %v1907
      %1924 = vst [vmem:[#allocation2 + $0xa8] sm:$0xe0] %v1908
      %1925 = vst [vmem:[#allocation2 + $0xb0] sm:$0xe0] %v1909
      %1926 = vst [vmem:[#allocation2 + $0xb8] sm:$0xe0] %v1910
      %1931 = vst [vmem:[#allocation1] ss:$2 sm:$0xff] %v1880
      %s1932 = scalar_lea.vmem [#allocation1], 16
      %1933 = vst [vmem:[%s1932] ss:$2 sm:$0xff] %v1881
      %s1934 = scalar_lea.vmem [#allocation1], 32
      %1935 = vst [vmem:[%s1934] ss:$2 sm:$0xff] %v1882
      %s1936 = scalar_lea.vmem [#allocation1], 48
      %1937 = vst [vmem:[%s1936] ss:$2 sm:$0xff] %v1883
      %v1938 = vld.sshfl [vmem:[#allocation1] sm:$0xff pattern:$0x75316420]
      %v1939 = vld.sshfl [vmem:[#allocation1 + $0x8] sm:$0xff pattern:$0x75316420]
      %v1940 = vld.sshfl [vmem:[#allocation1 + $0x10] sm:$0xff pattern:$0x75316420]
      %v1941 = vld.sshfl [vmem:[#allocation1 + $0x18] sm:$0xff pattern:$0x75316420]
      %v1942 = vld.sshfl [vmem:[#allocation1 + $0x20] sm:$0xff pattern:$0x75316420]
      %v1943 = vld.sshfl [vmem:[#allocation1 + $0x28] sm:$0xff pattern:$0x75316420]
      %v1944 = vld.sshfl [vmem:[#allocation1 + $0x30] sm:$0xff pattern:$0x75316420]
      %v1945 = vld.sshfl [vmem:[#allocation1 + $0x38] sm:$0xff pattern:$0x75316420]
      %1954 = vst [vmem:[#allocation2 + $0xc0] sm:$0x7] %v1938
      %1955 = vst [vmem:[#allocation2 + $0xc8] sm:$0x7] %v1939
      %1956 = vst [vmem:[#allocation2 + $0xd0] sm:$0x7] %v1940
      %1957 = vst [vmem:[#allocation2 + $0xd8] sm:$0x7] %v1941
      %1958 = vst [vmem:[#allocation2 + $0xe0] sm:$0x7] %v1942
      %1959 = vst [vmem:[#allocation2 + $0xe8] sm:$0x7] %v1943
      %1960 = vst [vmem:[#allocation2 + $0xf0] sm:$0x7] %v1944
      %1961 = vst [vmem:[#allocation2 + $0xf8] sm:$0x7] %v1945
      %v1962 = vmul.f32 %v1868, 2.0
      %v1963 = vmul.f32 %v1869, 2.0
      %v1964 = vmul.f32 %v1870, 2.0
      %v1965 = vmul.f32 %v1871, 2.0
      %v1966 = vmul.f32 %v1962, %v1880
      %v1967 = vmul.f32 %v1963, %v1881
      %v1968 = vmul.f32 %v1964, %v1882
      %v1969 = vmul.f32 %v1965, %v1883
      %v1970 = vmul.f32 %v1880, %v1880
      %v1971 = vmul.f32 %v1881, %v1881
      %v1972 = vmul.f32 %v1882, %v1882
      %v1973 = vmul.f32 %v1883, %v1883
      %v1974 = vmul.f32 %v1868, %v1868
      %v1975 = vmul.f32 %v1869, %v1869
      %v1976 = vmul.f32 %v1870, %v1870
      %v1977 = vmul.f32 %v1871, %v1871
      %v1978 = vsub.f32 %v1970, %v1974
      %v1979 = vsub.f32 %v1971, %v1975
      %v1980 = vsub.f32 %v1972, %v1976
      %v1981 = vsub.f32 %v1973, %v1977
      %1986 = vst [vmem:[#allocation1] ss:$2 sm:$0xff] %v1966
      %s1987 = scalar_lea.vmem [#allocation1], 16
      %1988 = vst [vmem:[%s1987] ss:$2 sm:$0xff] %v1967
      %s1989 = scalar_lea.vmem [#allocation1], 32
      %1990 = vst [vmem:[%s1989] ss:$2 sm:$0xff] %v1968
      %s1991 = scalar_lea.vmem [#allocation1], 48
      %1992 = vst [vmem:[%s1991] ss:$2 sm:$0xff] %v1969
      %v1993 = vld.sshfl [vmem:[#allocation1] sm:$0xff pattern:$0x75316420]
      %v1994 = vld.sshfl [vmem:[#allocation1 + $0x8] sm:$0xff pattern:$0x75316420]
      %v1995 = vld.sshfl [vmem:[#allocation1 + $0x10] sm:$0xff pattern:$0x75316420]
      %v1996 = vld.sshfl [vmem:[#allocation1 + $0x18] sm:$0xff pattern:$0x75316420]
      %v1997 = vld.sshfl [vmem:[#allocation1 + $0x20] sm:$0xff pattern:$0x75316420]
      %v1998 = vld.sshfl [vmem:[#allocation1 + $0x28] sm:$0xff pattern:$0x75316420]
      %v1999 = vld.sshfl [vmem:[#allocation1 + $0x30] sm:$0xff pattern:$0x75316420]
      %v2000 = vld.sshfl [vmem:[#allocation1 + $0x38] sm:$0xff pattern:$0x75316420]
      %v2001 = vrot.slane %v1993, 5
      %v2002 = vrot.slane %v1994, 5
      %v2003 = vrot.slane %v1995, 5
      %v2004 = vrot.slane %v1996, 5
      %v2005 = vrot.slane %v1997, 5
      %v2006 = vrot.slane %v1998, 5
      %v2007 = vrot.slane %v1999, 5
      %v2008 = vrot.slane %v2000, 5
      %2017 = vst [vmem:[#allocation2 + $0xc0] sm:$0x38] %v2001
      %2018 = vst [vmem:[#allocation2 + $0xc8] sm:$0x38] %v2002
      %2019 = vst [vmem:[#allocation2 + $0xd0] sm:$0x38] %v2003
      %2020 = vst [vmem:[#allocation2 + $0xd8] sm:$0x38] %v2004
      %2021 = vst [vmem:[#allocation2 + $0xe0] sm:$0x38] %v2005
      %2022 = vst [vmem:[#allocation2 + $0xe8] sm:$0x38] %v2006
      %2023 = vst [vmem:[#allocation2 + $0xf0] sm:$0x38] %v2007
      %2024 = vst [vmem:[#allocation2 + $0xf8] sm:$0x38] %v2008
      %2029 = vst [vmem:[#allocation1] ss:$2 sm:$0xff] %v1978
      %s2030 = scalar_lea.vmem [#allocation1], 16
      %2031 = vst [vmem:[%s2030] ss:$2 sm:$0xff] %v1979
      %s2032 = scalar_lea.vmem [#allocation1], 32
      %2033 = vst [vmem:[%s2032] ss:$2 sm:$0xff] %v1980
      %s2034 = scalar_lea.vmem [#allocation1], 48
      %2035 = vst [vmem:[%s2034] ss:$2 sm:$0xff] %v1981
      %v2036 = vld.sshfl [vmem:[#allocation1] sm:$0xff pattern:$0x75316420]
      %v2037 = vld.sshfl [vmem:[#allocation1 + $0x8] sm:$0xff pattern:$0x75316420]
      %v2038 = vld.sshfl [vmem:[#allocation1 + $0x10] sm:$0xff pattern:$0x75316420]
      %v2039 = vld.sshfl [vmem:[#allocation1 + $0x18] sm:$0xff pattern:$0x75316420]
      %v2040 = vld.sshfl [vmem:[#allocation1 + $0x20] sm:$0xff pattern:$0x75316420]
      %v2041 = vld.sshfl [vmem:[#allocation1 + $0x28] sm:$0xff pattern:$0x75316420]
      %v2042 = vld.sshfl [vmem:[#allocation1 + $0x30] sm:$0xff pattern:$0x75316420]
      %v2043 = vld.sshfl [vmem:[#allocation1 + $0x38] sm:$0xff pattern:$0x75316420]
      %v2044 = vrot.slane %v2036, 2
      %v2045 = vrot.slane %v2037, 2
      %v2046 = vrot.slane %v2038, 2
      %v2047 = vrot.slane %v2039, 2
      %v2048 = vrot.slane %v2040, 2
      %v2049 = vrot.slane %v2041, 2
      %v2050 = vrot.slane %v2042, 2
      %v2051 = vrot.slane %v2043, 2
      %2060 = vst [vmem:[#allocation2 + $0xc0] sm:$0xc0] %v2044
      %2061 = vst [vmem:[#allocation2 + $0xc8] sm:$0xc0] %v2045
      %2062 = vst [vmem:[#allocation2 + $0xd0] sm:$0xc0] %v2046
      %2063 = vst [vmem:[#allocation2 + $0xd8] sm:$0xc0] %v2047
      %2064 = vst [vmem:[#allocation2 + $0xe0] sm:$0xc0] %v2048
      %2065 = vst [vmem:[#allocation2 + $0xe8] sm:$0xc0] %v2049
      %2066 = vst [vmem:[#allocation2 + $0xf0] sm:$0xc0] %v2050
      %2067 = vst [vmem:[#allocation2 + $0xf8] sm:$0xc0] %v2051
      %2068 = vst [vmem:[#allocation2 + $0x100] sm:$0x1] %v2044
      %2069 = vst [vmem:[#allocation2 + $0x108] sm:$0x1] %v2045
      %2070 = vst [vmem:[#allocation2 + $0x110] sm:$0x1] %v2046
      %2071 = vst [vmem:[#allocation2 + $0x118] sm:$0x1] %v2047
      %2072 = vst [vmem:[#allocation2 + $0x120] sm:$0x1] %v2048
      %2073 = vst [vmem:[#allocation2 + $0x128] sm:$0x1] %v2049
      %2074 = vst [vmem:[#allocation2 + $0x130] sm:$0x1] %v2050
      %2075 = vst [vmem:[#allocation2 + $0x138] sm:$0x1] %v2051
      %v2076 = vmul.f32 %v1966, 2.0
      %v2077 = vmul.f32 %v1967, 2.0
      %v2078 = vmul.f32 %v1968, 2.0
      %v2079 = vmul.f32 %v1969, 2.0
      %v2080 = vmul.f32 %v2076, %v1978
      %v2081 = vmul.f32 %v2077, %v1979
      %v2082 = vmul.f32 %v2078, %v1980
      %v2083 = vmul.f32 %v2079, %v1981
      %v2084 = vmul.f32 %v1978, %v1978
      %v2085 = vmul.f32 %v1979, %v1979
      %v2086 = vmul.f32 %v1980, %v1980
      %v2087 = vmul.f32 %v1981, %v1981
      %v2088 = vmul.f32 %v1966, %v1966
      %v2089 = vmul.f32 %v1967, %v1967
      %v2090 = vmul.f32 %v1968, %v1968
      %v2091 = vmul.f32 %v1969, %v1969
      %v2092 = vsub.f32 %v2084, %v2088
      %v2093 = vsub.f32 %v2085, %v2089
      %v2094 = vsub.f32 %v2086, %v2090
      %v2095 = vsub.f32 %v2087, %v2091
      %2100 = vst [vmem:[#allocation1] ss:$2 sm:$0xff] %v2080
      %s2101 = scalar_lea.vmem [#allocation1], 16
      %2102 = vst [vmem:[%s2101] ss:$2 sm:$0xff] %v2081
      %s2103 = scalar_lea.vmem [#allocation1], 32
      %2104 = vst [vmem:[%s2103] ss:$2 sm:$0xff] %v2082
      %s2105 = scalar_lea.vmem [#allocation1], 48
      %2106 = vst [vmem:[%s2105] ss:$2 sm:$0xff] %v2083
      %v2107 = vld.sshfl [vmem:[#allocation1] sm:$0xff pattern:$0x75316420]
      %v2108 = vld.sshfl [vmem:[#allocation1 + $0x8] sm:$0xff pattern:$0x75316420]
      %v2109 = vld.sshfl [vmem:[#allocation1 + $0x10] sm:$0xff pattern:$0x75316420]
      %v2110 = vld.sshfl [vmem:[#allocation1 + $0x18] sm:$0xff pattern:$0x75316420]
      %v2111 = vld.sshfl [vmem:[#allocation1 + $0x20] sm:$0xff pattern:$0x75316420]
      %v2112 = vld.sshfl [vmem:[#allocation1 + $0x28] sm:$0xff pattern:$0x75316420]
      %v2113 = vld.sshfl [vmem:[#allocation1 + $0x30] sm:$0xff pattern:$0x75316420]
      %v2114 = vld.sshfl [vmem:[#allocation1 + $0x38] sm:$0xff pattern:$0x75316420]
      %v2115 = vrot.slane %v2107, 7
      %v2116 = vrot.slane %v2108, 7
      %v2117 = vrot.slane %v2109, 7
      %v2118 = vrot.slane %v2110, 7
      %v2119 = vrot.slane %v2111, 7
      %v2120 = vrot.slane %v2112, 7
      %v2121 = vrot.slane %v2113, 7
      %v2122 = vrot.slane %v2114, 7
      %2131 = vst [vmem:[#allocation2 + $0x100] sm:$0xe] %v2115
      %2132 = vst [vmem:[#allocation2 + $0x108] sm:$0xe] %v2116
      %2133 = vst [vmem:[#allocation2 + $0x110] sm:$0xe] %v2117
      %2134 = vst [vmem:[#allocation2 + $0x118] sm:$0xe] %v2118
      %2135 = vst [vmem:[#allocation2 + $0x120] sm:$0xe] %v2119
      %2136 = vst [vmem:[#allocation2 + $0x128] sm:$0xe] %v2120
      %2137 = vst [vmem:[#allocation2 + $0x130] sm:$0xe] %v2121
      %2138 = vst [vmem:[#allocation2 + $0x138] sm:$0xe] %v2122
      %s2143 = scalar_lea.vmem [#allocation1], 1
      %2144 = vst [vmem:[%s2143] ss:$2 sm:$0xff] %v2092
      %s2145 = scalar_lea.vmem [#allocation1], 17
      %2146 = vst [vmem:[%s2145] ss:$2 sm:$0xff] %v2093
      %s2147 = scalar_lea.vmem [#allocation1], 33
      %2148 = vst [vmem:[%s2147] ss:$2 sm:$0xff] %v2094
      %s2149 = scalar_lea.vmem [#allocation1], 49
      %2150 = vst [vmem:[%s2149] ss:$2 sm:$0xff] %v2095
      %v2151 = vld.sshfl [vmem:[#allocation1] sm:$0xff pattern:$0x75316420]
      %v2152 = vld.sshfl [vmem:[#allocation1 + $0x8] sm:$0xff pattern:$0x75316420]
      %v2153 = vld.sshfl [vmem:[#allocation1 + $0x10] sm:$0xff pattern:$0x75316420]
      %v2154 = vld.sshfl [vmem:[#allocation1 + $0x18] sm:$0xff pattern:$0x75316420]
      %v2155 = vld.sshfl [vmem:[#allocation1 + $0x20] sm:$0xff pattern:$0x75316420]
      %v2156 = vld.sshfl [vmem:[#allocation1 + $0x28] sm:$0xff pattern:$0x75316420]
      %v2157 = vld.sshfl [vmem:[#allocation1 + $0x30] sm:$0xff pattern:$0x75316420]
      %v2158 = vld.sshfl [vmem:[#allocation1 + $0x38] sm:$0xff pattern:$0x75316420]
      %2167 = vst [vmem:[#allocation2 + $0x100] sm:$0x70] %v2151
      %2168 = vst [vmem:[#allocation2 + $0x108] sm:$0x70] %v2152
      %2169 = vst [vmem:[#allocation2 + $0x110] sm:$0x70] %v2153
      %2170 = vst [vmem:[#allocation2 + $0x118] sm:$0x70] %v2154
      %2171 = vst [vmem:[#allocation2 + $0x120] sm:$0x70] %v2155
      %2172 = vst [vmem:[#allocation2 + $0x128] sm:$0x70] %v2156
      %2173 = vst [vmem:[#allocation2 + $0x130] sm:$0x70] %v2157
      %2174 = vst [vmem:[#allocation2 + $0x138] sm:$0x70] %v2158
      %s2175 = scalar_lea.vmem [#allocation2], 263
      %2176 = vst [vmem:[%s2175] ss:$8 sm:$0xf] 0.0
      %2177 = vst [vmem:[%s2175] ss:$8 sm:$0xf0] 0.0
      %v2178 = vld [vmem:[%s1] sm:$0xff]
      %v2179 = vld [vmem:[%s1 + $0x8] sm:$0xff]
      %v2180 = vld [vmem:[%s1 + $0x10] sm:$0xff]
      %v2181 = vld [vmem:[%s1 + $0x18] sm:$0xff]
      %v2182 = vld [vmem:[%s1 + $0x20] sm:$0xff]
      %v2183 = vld [vmem:[%s1 + $0x28] sm:$0xff]
      %v2184 = vld [vmem:[%s1 + $0x30] sm:$0xff]
      %v2185 = vld [vmem:[%s1 + $0x38] sm:$0xff]
      %v2186 = vld [vmem:[#allocation2] sm:$0xff]
      %v2187 = vld [vmem:[#allocation2 + $0x8] sm:$0xff]
      %v2188 = vld [vmem:[#allocation2 + $0x10] sm:$0xff]
      %v2189 = vld [vmem:[#allocation2 + $0x18] sm:$0xff]
      %v2190 = vld [vmem:[#allocation2 + $0x20] sm:$0xff]
      %v2191 = vld [vmem:[#allocation2 + $0x28] sm:$0xff]
      %v2192 = vld [vmem:[#allocation2 + $0x30] sm:$0xff]
      %v2193 = vld [vmem:[#allocation2 + $0x38] sm:$0xff]
      %v2194 = vld [vmem:[#allocation2 + $0x40] sm:$0xff]
      %v2195 = vld [vmem:[#allocation2 + $0x48] sm:$0xff]
      %v2196 = vld [vmem:[#allocation2 + $0x50] sm:$0xff]
      %v2197 = vld [vmem:[#allocation2 + $0x58] sm:$0xff]
      %v2198 = vld [vmem:[#allocation2 + $0x60] sm:$0xff]
      %v2199 = vld [vmem:[#allocation2 + $0x68] sm:$0xff]
      %v2200 = vld [vmem:[#allocation2 + $0x70] sm:$0xff]
      %v2201 = vld [vmem:[#allocation2 + $0x78] sm:$0xff]
      %v2202 = vld [vmem:[#allocation2 + $0x80] sm:$0xff]
      %v2203 = vld [vmem:[#allocation2 + $0x88] sm:$0xff]
      %v2204 = vld [vmem:[#allocation2 + $0x90] sm:$0xff]
      %v2205 = vld [vmem:[#allocation2 + $0x98] sm:$0xff]
      %v2206 = vld [vmem:[#allocation2 + $0xa0] sm:$0xff]
      %v2207 = vld [vmem:[#allocation2 + $0xa8] sm:$0xff]
      %v2208 = vld [vmem:[#allocation2 + $0xb0] sm:$0xff]
      %v2209 = vld [vmem:[#allocation2 + $0xb8] sm:$0xff]
      %v2210 = vld [vmem:[#allocation2 + $0xc0] sm:$0xff]
      %v2211 = vld [vmem:[#allocation2 + $0xc8] sm:$0xff]
      %v2212 = vld [vmem:[#allocation2 + $0xd0] sm:$0xff]
      %v2213 = vld [vmem:[#allocation2 + $0xd8] sm:$0xff]
      %v2214 = vld [vmem:[#allocation2 + $0xe0] sm:$0xff]
      %v2215 = vld [vmem:[#allocation2 + $0xe8] sm:$0xff]
      %v2216 = vld [vmem:[#allocation2 + $0xf0] sm:$0xff]
      %v2217 = vld [vmem:[#allocation2 + $0xf8] sm:$0xff]
      %v2218 = vld [vmem:[#allocation2 + $0x100] sm:$0xff]
      %v2219 = vld [vmem:[#allocation2 + $0x108] sm:$0xff]
      %v2220 = vld [vmem:[#allocation2 + $0x110] sm:$0xff]
      %v2221 = vld [vmem:[#allocation2 + $0x118] sm:$0xff]
      %v2222 = vld [vmem:[#allocation2 + $0x120] sm:$0xff]
      %v2223 = vld [vmem:[#allocation2 + $0x128] sm:$0xff]
      %v2224 = vld [vmem:[#allocation2 + $0x130] sm:$0xff]
      %v2225 = vld [vmem:[#allocation2 + $0x138] sm:$0xff]
      %v2226 = vld [vmem:[%s2] sm:$0xff]
      %v2227 = vld [vmem:[%s2 + $0x8] sm:$0xff]
      %v2228 = vld [vmem:[%s2 + $0x10] sm:$0xff]
      %v2229 = vld [vmem:[%s2 + $0x18] sm:$0xff]
      %v2230 = vld [vmem:[%s2 + $0x20] sm:$0xff]
      %v2231 = vld [vmem:[%s2 + $0x28] sm:$0xff]
      %v2232 = vld [vmem:[%s2 + $0x30] sm:$0xff]
      %v2233 = vld [vmem:[%s2 + $0x38] sm:$0xff]
      %2235 = vset.pattern.permute.xlu0 0
      %2236 = vperm.xlu0 %2235, %v2226
      %v2237 = vpop.permute.xlu0 %2236
      %2240 = vset.pattern.permute.xlu0 0
      %2241 = vperm.xlu0 %2240, %v2227
      %v2242 = vpop.permute.xlu0 %2241
      %2245 = vset.pattern.permute.xlu0 0
      %2246 = vperm.xlu0 %2245, %v2228
      %v2247 = vpop.permute.xlu0 %2246
      %2250 = vset.pattern.permute.xlu0 0
      %2251 = vperm.xlu0 %2250, %v2229
      %v2252 = vpop.permute.xlu0 %2251
      %2255 = vset.pattern.permute.xlu0 0
      %2256 = vperm.xlu0 %2255, %v2230
      %v2257 = vpop.permute.xlu0 %2256
      %2260 = vset.pattern.permute.xlu0 0
      %2261 = vperm.xlu0 %2260, %v2231
      %v2262 = vpop.permute.xlu0 %2261
      %2265 = vset.pattern.permute.xlu0 0
      %2266 = vperm.xlu0 %2265, %v2232
      %v2267 = vpop.permute.xlu0 %2266
      %2270 = vset.pattern.permute.xlu0 0
      %2271 = vperm.xlu0 %2270, %v2233
      %v2272 = vpop.permute.xlu0 %2271
      %vm2274 = vcmask 326656
      %v2276 = vsel %vm2274, %v2178, 0
      %v2279 = vsel %vm2274, %v2179, 0
      %v2282 = vsel %vm2274, %v2180, 0
      %v2285 = vsel %vm2274, %v2181, 0
      %v2288 = vsel %vm2274, %v2182, 0
      %v2291 = vsel %vm2274, %v2183, 0
      %v2294 = vsel %vm2274, %v2184, 0
      %v2297 = vsel %vm2274, %v2185, 0
      %2299 = vmatpush.msra.mxu0 0.0
      %2300 = vmatpush.msra.mxu0 0.0
      %2301 = vmatpush.msra.mxu0 0.0
      %2302 = vmatpush.msra.mxu0 0.0
      %2303 = vmatpush.msra.mxu0 0.0
      %2304 = vmatpush.msra.mxu0 0.0
      %2305 = vmatpush.msra.mxu0 0.0
      %2306 = vmatpush.msra.mxu0 0.0
      %2307 = vmatpush.msra.mxu0 0.0
      %2308 = vmatpush.msra.mxu0 0.0
      %2309 = vmatpush.msra.mxu0 0.0
      %2310 = vmatpush.msra.mxu0 %v2218
      %2311 = vmatpush.msra.mxu0 %v2210
      %2312 = vmatpush.msra.mxu0 %v2202
      %2313 = vmatpush.msra.mxu0 %v2194
      %2314 = vmatpush.msra.mxu0 %v2186
      %2315 = vmatmul.f32.gmra.mxu0 %v2276
      %v2316 = vpop.f32.mrf.mxu0
      %v2317 = vadd.f32 %v2237, %v2316
      %2318 = vmatmul.f32.gmra.mxu0 %v2279
      %v2319 = vpop.f32.mrf.mxu0
      %v2320 = vadd.f32 %v2242, %v2319
      %2321 = vmatmul.f32.gmra.mxu0 %v2282
      %v2322 = vpop.f32.mrf.mxu0
      %v2323 = vadd.f32 %v2247, %v2322
      %2324 = vmatmul.f32.gmra.mxu0 %v2285
      %v2325 = vpop.f32.mrf.mxu0
      %v2326 = vadd.f32 %v2252, %v2325
      %2327 = vmatmul.f32.gmra.mxu0 %v2288
      %v2328 = vpop.f32.mrf.mxu0
      %v2329 = vadd.f32 %v2257, %v2328
      %2330 = vmatmul.f32.gmra.mxu0 %v2291
      %v2331 = vpop.f32.mrf.mxu0
      %v2332 = vadd.f32 %v2262, %v2331
      %2333 = vmatmul.f32.gmra.mxu0 %v2294
      %v2334 = vpop.f32.mrf.mxu0
      %v2335 = vadd.f32 %v2267, %v2334
      %2336 = vmatmul.f32.gmra.mxu0 %v2297
      %v2337 = vpop.f32.mrf.mxu0
      %v2338 = vadd.f32 %v2272, %v2337
      %2339 = vdwg.mxu0
      %2340 = vmatpush.msra.mxu0 0.0
      %2341 = vmatpush.msra.mxu0 0.0
      %2342 = vmatpush.msra.mxu0 0.0
      %2343 = vmatpush.msra.mxu0 0.0
      %2344 = vmatpush.msra.mxu0 0.0
      %2345 = vmatpush.msra.mxu0 0.0
      %2346 = vmatpush.msra.mxu0 0.0
      %2347 = vmatpush.msra.mxu0 0.0
      %2348 = vmatpush.msra.mxu0 0.0
      %2349 = vmatpush.msra.mxu0 0.0
      %2350 = vmatpush.msra.mxu0 0.0
      %2351 = vmatpush.msra.mxu0 %v2219
      %2352 = vmatpush.msra.mxu0 %v2211
      %2353 = vmatpush.msra.mxu0 %v2203
      %2354 = vmatpush.msra.mxu0 %v2195
      %2355 = vmatpush.msra.mxu0 %v2187
      %2356 = vmatmul.f32.gmra.mxu0 %v2276
      %v2357 = vpop.f32.mrf.mxu0
      %v2358 = vadd.f32 %v2237, %v2357
      %2359 = vmatmul.f32.gmra.mxu0 %v2279
      %v2360 = vpop.f32.mrf.mxu0
      %v2361 = vadd.f32 %v2242, %v2360
      %2362 = vmatmul.f32.gmra.mxu0 %v2282
      %v2363 = vpop.f32.mrf.mxu0
      %v2364 = vadd.f32 %v2247, %v2363
      %2365 = vmatmul.f32.gmra.mxu0 %v2285
      %v2366 = vpop.f32.mrf.mxu0
      %v2367 = vadd.f32 %v2252, %v2366
      %2368 = vmatmul.f32.gmra.mxu0 %v2288
      %v2369 = vpop.f32.mrf.mxu0
      %v2370 = vadd.f32 %v2257, %v2369
      %2371 = vmatmul.f32.gmra.mxu0 %v2291
      %v2372 = vpop.f32.mrf.mxu0
      %v2373 = vadd.f32 %v2262, %v2372
      %2374 = vmatmul.f32.gmra.mxu0 %v2294
      %v2375 = vpop.f32.mrf.mxu0
      %v2376 = vadd.f32 %v2267, %v2375
      %2377 = vmatmul.f32.gmra.mxu0 %v2297
      %v2378 = vpop.f32.mrf.mxu0
      %v2379 = vadd.f32 %v2272, %v2378
      %2380 = vdwg.mxu0
      %2381 = vmatpush.msra.mxu0 0.0
      %2382 = vmatpush.msra.mxu0 0.0
      %2383 = vmatpush.msra.mxu0 0.0
      %2384 = vmatpush.msra.mxu0 0.0
      %2385 = vmatpush.msra.mxu0 0.0
      %2386 = vmatpush.msra.mxu0 0.0
      %2387 = vmatpush.msra.mxu0 0.0
      %2388 = vmatpush.msra.mxu0 0.0
      %2389 = vmatpush.msra.mxu0 0.0
      %2390 = vmatpush.msra.mxu0 0.0
      %2391 = vmatpush.msra.mxu0 0.0
      %2392 = vmatpush.msra.mxu0 %v2220
      %2393 = vmatpush.msra.mxu0 %v2212
      %2394 = vmatpush.msra.mxu0 %v2204
      %2395 = vmatpush.msra.mxu0 %v2196
      %2396 = vmatpush.msra.mxu0 %v2188
      %2397 = vmatmul.f32.gmra.mxu0 %v2276
      %v2398 = vpop.f32.mrf.mxu0
      %v2399 = vadd.f32 %v2237, %v2398
      %2400 = vmatmul.f32.gmra.mxu0 %v2279
      %v2401 = vpop.f32.mrf.mxu0
      %v2402 = vadd.f32 %v2242, %v2401
      %2403 = vmatmul.f32.gmra.mxu0 %v2282
      %v2404 = vpop.f32.mrf.mxu0
      %v2405 = vadd.f32 %v2247, %v2404
      %2406 = vmatmul.f32.gmra.mxu0 %v2285
      %v2407 = vpop.f32.mrf.mxu0
      %v2408 = vadd.f32 %v2252, %v2407
      %2409 = vmatmul.f32.gmra.mxu0 %v2288
      %v2410 = vpop.f32.mrf.mxu0
      %v2411 = vadd.f32 %v2257, %v2410
      %2412 = vmatmul.f32.gmra.mxu0 %v2291
      %v2413 = vpop.f32.mrf.mxu0
      %v2414 = vadd.f32 %v2262, %v2413
      %2415 = vmatmul.f32.gmra.mxu0 %v2294
      %v2416 = vpop.f32.mrf.mxu0
      %v2417 = vadd.f32 %v2267, %v2416
      %2418 = vmatmul.f32.gmra.mxu0 %v2297
      %v2419 = vpop.f32.mrf.mxu0
      %v2420 = vadd.f32 %v2272, %v2419
      %2421 = vdwg.mxu0
      %2422 = vmatpush.msra.mxu0 0.0
      %2423 = vmatpush.msra.mxu0 0.0
      %2424 = vmatpush.msra.mxu0 0.0
      %2425 = vmatpush.msra.mxu0 0.0
      %2426 = vmatpush.msra.mxu0 0.0
      %2427 = vmatpush.msra.mxu0 0.0
      %2428 = vmatpush.msra.mxu0 0.0
      %2429 = vmatpush.msra.mxu0 0.0
      %2430 = vmatpush.msra.mxu0 0.0
      %2431 = vmatpush.msra.mxu0 0.0
      %2432 = vmatpush.msra.mxu0 0.0
      %2433 = vmatpush.msra.mxu0 %v2221
      %2434 = vmatpush.msra.mxu0 %v2213
      %2435 = vmatpush.msra.mxu0 %v2205
      %2436 = vmatpush.msra.mxu0 %v2197
      %2437 = vmatpush.msra.mxu0 %v2189
      %2438 = vmatmul.f32.gmra.mxu0 %v2276
      %v2439 = vpop.f32.mrf.mxu0
      %v2440 = vadd.f32 %v2237, %v2439
      %2441 = vmatmul.f32.gmra.mxu0 %v2279
      %v2442 = vpop.f32.mrf.mxu0
      %v2443 = vadd.f32 %v2242, %v2442
      %2444 = vmatmul.f32.gmra.mxu0 %v2282
      %v2445 = vpop.f32.mrf.mxu0
      %v2446 = vadd.f32 %v2247, %v2445
      %2447 = vmatmul.f32.gmra.mxu0 %v2285
      %v2448 = vpop.f32.mrf.mxu0
      %v2449 = vadd.f32 %v2252, %v2448
      %2450 = vmatmul.f32.gmra.mxu0 %v2288
      %v2451 = vpop.f32.mrf.mxu0
      %v2452 = vadd.f32 %v2257, %v2451
      %2453 = vmatmul.f32.gmra.mxu0 %v2291
      %v2454 = vpop.f32.mrf.mxu0
      %v2455 = vadd.f32 %v2262, %v2454
      %2456 = vmatmul.f32.gmra.mxu0 %v2294
      %v2457 = vpop.f32.mrf.mxu0
      %v2458 = vadd.f32 %v2267, %v2457
      %2459 = vmatmul.f32.gmra.mxu0 %v2297
      %v2460 = vpop.f32.mrf.mxu0
      %v2461 = vadd.f32 %v2272, %v2460
      %2462 = vdwg.mxu0
      %2463 = vmatpush.msra.mxu0 0.0
      %2464 = vmatpush.msra.mxu0 0.0
      %2465 = vmatpush.msra.mxu0 0.0
      %2466 = vmatpush.msra.mxu0 0.0
      %2467 = vmatpush.msra.mxu0 0.0
      %2468 = vmatpush.msra.mxu0 0.0
      %2469 = vmatpush.msra.mxu0 0.0
      %2470 = vmatpush.msra.mxu0 0.0
      %2471 = vmatpush.msra.mxu0 0.0
      %2472 = vmatpush.msra.mxu0 0.0
      %2473 = vmatpush.msra.mxu0 0.0
      %2474 = vmatpush.msra.mxu0 %v2222
      %2475 = vmatpush.msra.mxu0 %v2214
      %2476 = vmatpush.msra.mxu0 %v2206
      %2477 = vmatpush.msra.mxu0 %v2198
      %2478 = vmatpush.msra.mxu0 %v2190
      %2479 = vmatmul.f32.gmra.mxu0 %v2276
      %v2480 = vpop.f32.mrf.mxu0
      %v2481 = vadd.f32 %v2237, %v2480
      %2482 = vmatmul.f32.gmra.mxu0 %v2279
      %v2483 = vpop.f32.mrf.mxu0
      %v2484 = vadd.f32 %v2242, %v2483
      %2485 = vmatmul.f32.gmra.mxu0 %v2282
      %v2486 = vpop.f32.mrf.mxu0
      %v2487 = vadd.f32 %v2247, %v2486
      %2488 = vmatmul.f32.gmra.mxu0 %v2285
      %v2489 = vpop.f32.mrf.mxu0
      %v2490 = vadd.f32 %v2252, %v2489
      %2491 = vmatmul.f32.gmra.mxu0 %v2288
      %v2492 = vpop.f32.mrf.mxu0
      %v2493 = vadd.f32 %v2257, %v2492
      %2494 = vmatmul.f32.gmra.mxu0 %v2291
      %v2495 = vpop.f32.mrf.mxu0
      %v2496 = vadd.f32 %v2262, %v2495
      %2497 = vmatmul.f32.gmra.mxu0 %v2294
      %v2498 = vpop.f32.mrf.mxu0
      %v2499 = vadd.f32 %v2267, %v2498
      %2500 = vmatmul.f32.gmra.mxu0 %v2297
      %v2501 = vpop.f32.mrf.mxu0
      %v2502 = vadd.f32 %v2272, %v2501
      %2503 = vdwg.mxu0
      %2504 = vmatpush.msra.mxu0 0.0
      %2505 = vmatpush.msra.mxu0 0.0
      %2506 = vmatpush.msra.mxu0 0.0
      %2507 = vmatpush.msra.mxu0 0.0
      %2508 = vmatpush.msra.mxu0 0.0
      %2509 = vmatpush.msra.mxu0 0.0
      %2510 = vmatpush.msra.mxu0 0.0
      %2511 = vmatpush.msra.mxu0 0.0
      %2512 = vmatpush.msra.mxu0 0.0
      %2513 = vmatpush.msra.mxu0 0.0
      %2514 = vmatpush.msra.mxu0 0.0
      %2515 = vmatpush.msra.mxu0 %v2223
      %2516 = vmatpush.msra.mxu0 %v2215
      %2517 = vmatpush.msra.mxu0 %v2207
      %2518 = vmatpush.msra.mxu0 %v2199
      %2519 = vmatpush.msra.mxu0 %v2191
      %2520 = vmatmul.f32.gmra.mxu0 %v2276
      %v2521 = vpop.f32.mrf.mxu0
      %v2522 = vadd.f32 %v2237, %v2521
      %2523 = vmatmul.f32.gmra.mxu0 %v2279
      %v2524 = vpop.f32.mrf.mxu0
      %v2525 = vadd.f32 %v2242, %v2524
      %2526 = vmatmul.f32.gmra.mxu0 %v2282
      %v2527 = vpop.f32.mrf.mxu0
      %v2528 = vadd.f32 %v2247, %v2527
      %2529 = vmatmul.f32.gmra.mxu0 %v2285
      %v2530 = vpop.f32.mrf.mxu0
      %v2531 = vadd.f32 %v2252, %v2530
      %2532 = vmatmul.f32.gmra.mxu0 %v2288
      %v2533 = vpop.f32.mrf.mxu0
      %v2534 = vadd.f32 %v2257, %v2533
      %2535 = vmatmul.f32.gmra.mxu0 %v2291
      %v2536 = vpop.f32.mrf.mxu0
      %v2537 = vadd.f32 %v2262, %v2536
      %2538 = vmatmul.f32.gmra.mxu0 %v2294
      %v2539 = vpop.f32.mrf.mxu0
      %v2540 = vadd.f32 %v2267, %v2539
      %2541 = vmatmul.f32.gmra.mxu0 %v2297
      %v2542 = vpop.f32.mrf.mxu0
      %v2543 = vadd.f32 %v2272, %v2542
      %2544 = vdwg.mxu0
      %2545 = vmatpush.msra.mxu0 0.0
      %2546 = vmatpush.msra.mxu0 0.0
      %2547 = vmatpush.msra.mxu0 0.0
      %2548 = vmatpush.msra.mxu0 0.0
      %2549 = vmatpush.msra.mxu0 0.0
      %2550 = vmatpush.msra.mxu0 0.0
      %2551 = vmatpush.msra.mxu0 0.0
      %2552 = vmatpush.msra.mxu0 0.0
      %2553 = vmatpush.msra.mxu0 0.0
      %2554 = vmatpush.msra.mxu0 0.0
      %2555 = vmatpush.msra.mxu0 0.0
      %2556 = vmatpush.msra.mxu0 %v2224
      %2557 = vmatpush.msra.mxu0 %v2216
      %2558 = vmatpush.msra.mxu0 %v2208
      %2559 = vmatpush.msra.mxu0 %v2200
      %2560 = vmatpush.msra.mxu0 %v2192
      %2561 = vmatmul.f32.gmra.mxu0 %v2276
      %v2562 = vpop.f32.mrf.mxu0
      %v2563 = vadd.f32 %v2237, %v2562
      %2564 = vmatmul.f32.gmra.mxu0 %v2279
      %v2565 = vpop.f32.mrf.mxu0
      %v2566 = vadd.f32 %v2242, %v2565
      %2567 = vmatmul.f32.gmra.mxu0 %v2282
      %v2568 = vpop.f32.mrf.mxu0
      %v2569 = vadd.f32 %v2247, %v2568
      %2570 = vmatmul.f32.gmra.mxu0 %v2285
      %v2571 = vpop.f32.mrf.mxu0
      %v2572 = vadd.f32 %v2252, %v2571
      %2573 = vmatmul.f32.gmra.mxu0 %v2288
      %v2574 = vpop.f32.mrf.mxu0
      %v2575 = vadd.f32 %v2257, %v2574
      %2576 = vmatmul.f32.gmra.mxu0 %v2291
      %v2577 = vpop.f32.mrf.mxu0
      %v2578 = vadd.f32 %v2262, %v2577
      %2579 = vmatmul.f32.gmra.mxu0 %v2294
      %v2580 = vpop.f32.mrf.mxu0
      %v2581 = vadd.f32 %v2267, %v2580
      %2582 = vmatmul.f32.gmra.mxu0 %v2297
      %v2583 = vpop.f32.mrf.mxu0
      %v2584 = vadd.f32 %v2272, %v2583
      %2585 = vdwg.mxu0
      %2586 = vmatpush.msra.mxu0 0.0
      %2587 = vmatpush.msra.mxu0 0.0
      %2588 = vmatpush.msra.mxu0 0.0
      %2589 = vmatpush.msra.mxu0 0.0
      %2590 = vmatpush.msra.mxu0 0.0
      %2591 = vmatpush.msra.mxu0 0.0
      %2592 = vmatpush.msra.mxu0 0.0
      %2593 = vmatpush.msra.mxu0 0.0
      %2594 = vmatpush.msra.mxu0 0.0
      %2595 = vmatpush.msra.mxu0 0.0
      %2596 = vmatpush.msra.mxu0 0.0
      %2597 = vmatpush.msra.mxu0 %v2225
      %2598 = vmatpush.msra.mxu0 %v2217
      %2599 = vmatpush.msra.mxu0 %v2209
      %2600 = vmatpush.msra.mxu0 %v2201
      %2601 = vmatpush.msra.mxu0 %v2193
      %2602 = vmatmul.f32.gmra.mxu0 %v2276
      %v2603 = vpop.f32.mrf.mxu0
      %v2604 = vadd.f32 %v2237, %v2603
      %2605 = vmatmul.f32.gmra.mxu0 %v2279
      %v2606 = vpop.f32.mrf.mxu0
      %v2607 = vadd.f32 %v2242, %v2606
      %2608 = vmatmul.f32.gmra.mxu0 %v2282
      %v2609 = vpop.f32.mrf.mxu0
      %v2610 = vadd.f32 %v2247, %v2609
      %2611 = vmatmul.f32.gmra.mxu0 %v2285
      %v2612 = vpop.f32.mrf.mxu0
      %v2613 = vadd.f32 %v2252, %v2612
      %2614 = vmatmul.f32.gmra.mxu0 %v2288
      %v2615 = vpop.f32.mrf.mxu0
      %v2616 = vadd.f32 %v2257, %v2615
      %2617 = vmatmul.f32.gmra.mxu0 %v2291
      %v2618 = vpop.f32.mrf.mxu0
      %v2619 = vadd.f32 %v2262, %v2618
      %2620 = vmatmul.f32.gmra.mxu0 %v2294
      %v2621 = vpop.f32.mrf.mxu0
      %v2622 = vadd.f32 %v2267, %v2621
      %2623 = vmatmul.f32.gmra.mxu0 %v2297
      %v2624 = vpop.f32.mrf.mxu0
      %v2625 = vadd.f32 %v2272, %v2624
      %2626 = vdwg.mxu0
      %v2627 = vmax.f32 %v2317, 0.0
      %v2628 = vmax.f32 %v2358, 0.0
      %v2629 = vmax.f32 %v2399, 0.0
      %v2630 = vmax.f32 %v2440, 0.0
      %v2631 = vmax.f32 %v2481, 0.0
      %v2632 = vmax.f32 %v2522, 0.0
      %v2633 = vmax.f32 %v2563, 0.0
      %v2634 = vmax.f32 %v2604, 0.0
      %v2635 = vmax.f32 %v2320, 0.0
      %v2636 = vmax.f32 %v2361, 0.0
      %v2637 = vmax.f32 %v2402, 0.0
      %v2638 = vmax.f32 %v2443, 0.0
      %v2639 = vmax.f32 %v2484, 0.0
      %v2640 = vmax.f32 %v2525, 0.0
      %v2641 = vmax.f32 %v2566, 0.0
      %v2642 = vmax.f32 %v2607, 0.0
      %v2643 = vmax.f32 %v2323, 0.0
      %v2644 = vmax.f32 %v2364, 0.0
      %v2645 = vmax.f32 %v2405, 0.0
      %v2646 = vmax.f32 %v2446, 0.0
      %v2647 = vmax.f32 %v2487, 0.0
      %v2648 = vmax.f32 %v2528, 0.0
      %v2649 = vmax.f32 %v2569, 0.0
      %v2650 = vmax.f32 %v2610, 0.0
      %v2651 = vmax.f32 %v2326, 0.0
      %v2652 = vmax.f32 %v2367, 0.0
      %v2653 = vmax.f32 %v2408, 0.0
      %v2654 = vmax.f32 %v2449, 0.0
      %v2655 = vmax.f32 %v2490, 0.0
      %v2656 = vmax.f32 %v2531, 0.0
      %v2657 = vmax.f32 %v2572, 0.0
      %v2658 = vmax.f32 %v2613, 0.0
      %v2659 = vmax.f32 %v2329, 0.0
      %v2660 = vmax.f32 %v2370, 0.0
      %v2661 = vmax.f32 %v2411, 0.0
      %v2662 = vmax.f32 %v2452, 0.0
      %v2663 = vmax.f32 %v2493, 0.0
      %v2664 = vmax.f32 %v2534, 0.0
      %v2665 = vmax.f32 %v2575, 0.0
      %v2666 = vmax.f32 %v2616, 0.0
      %v2667 = vmax.f32 %v2332, 0.0
      %v2668 = vmax.f32 %v2373, 0.0
      %v2669 = vmax.f32 %v2414, 0.0
      %v2670 = vmax.f32 %v2455, 0.0
      %v2671 = vmax.f32 %v2496, 0.0
      %v2672 = vmax.f32 %v2537, 0.0
      %v2673 = vmax.f32 %v2578, 0.0
      %v2674 = vmax.f32 %v2619, 0.0
      %v2675 = vmax.f32 %v2335, 0.0
      %v2676 = vmax.f32 %v2376, 0.0
      %v2677 = vmax.f32 %v2417, 0.0
      %v2678 = vmax.f32 %v2458, 0.0
      %v2679 = vmax.f32 %v2499, 0.0
      %v2680 = vmax.f32 %v2540, 0.0
      %v2681 = vmax.f32 %v2581, 0.0
      %v2682 = vmax.f32 %v2622, 0.0
      %v2683 = vmax.f32 %v2338, 0.0
      %v2684 = vmax.f32 %v2379, 0.0
      %v2685 = vmax.f32 %v2420, 0.0
      %v2686 = vmax.f32 %v2461, 0.0
      %v2687 = vmax.f32 %v2502, 0.0
      %v2688 = vmax.f32 %v2543, 0.0
      %v2689 = vmax.f32 %v2584, 0.0
      %v2690 = vmax.f32 %v2625, 0.0
      %v2691 = vld [vmem:[%s3] sm:$0xff]
      %v2692 = vld [vmem:[%s3 + $0x8] sm:$0xff]
      %v2693 = vld [vmem:[%s3 + $0x10] sm:$0xff]
      %v2694 = vld [vmem:[%s3 + $0x18] sm:$0xff]
      %v2695 = vld [vmem:[%s3 + $0x20] sm:$0xff]
      %v2696 = vld [vmem:[%s3 + $0x28] sm:$0xff]
      %v2697 = vld [vmem:[%s3 + $0x30] sm:$0xff]
      %v2698 = vld [vmem:[%s3 + $0x38] sm:$0xff]
      %v2699 = vld [vmem:[%s4] sm:$0xff]
      %v2700 = vld [vmem:[%s4 + $0x8] sm:$0xff]
      %v2701 = vld [vmem:[%s4 + $0x10] sm:$0xff]
      %v2702 = vld [vmem:[%s4 + $0x18] sm:$0xff]
      %v2703 = vld [vmem:[%s4 + $0x20] sm:$0xff]
      %v2704 = vld [vmem:[%s4 + $0x28] sm:$0xff]
      %v2705 = vld [vmem:[%s4 + $0x30] sm:$0xff]
      %v2706 = vld [vmem:[%s4 + $0x38] sm:$0xff]
      %2708 = vset.pattern.permute.xlu0 0
      %2709 = vperm.xlu0 %2708, %v2699
      %v2710 = vpop.permute.xlu0 %2709
      %2713 = vset.pattern.permute.xlu0 0
      %2714 = vperm.xlu0 %2713, %v2700
      %v2715 = vpop.permute.xlu0 %2714
      %2718 = vset.pattern.permute.xlu0 0
      %2719 = vperm.xlu0 %2718, %v2701
      %v2720 = vpop.permute.xlu0 %2719
      %2723 = vset.pattern.permute.xlu0 0
      %2724 = vperm.xlu0 %2723, %v2702
      %v2725 = vpop.permute.xlu0 %2724
      %2728 = vset.pattern.permute.xlu0 0
      %2729 = vperm.xlu0 %2728, %v2703
      %v2730 = vpop.permute.xlu0 %2729
      %2733 = vset.pattern.permute.xlu0 0
      %2734 = vperm.xlu0 %2733, %v2704
      %v2735 = vpop.permute.xlu0 %2734
      %2738 = vset.pattern.permute.xlu0 0
      %2739 = vperm.xlu0 %2738, %v2705
      %v2740 = vpop.permute.xlu0 %2739
      %2743 = vset.pattern.permute.xlu0 0
      %2744 = vperm.xlu0 %2743, %v2706
      %v2745 = vpop.permute.xlu0 %2744
      %vm2747 = vcmask 523264
      %v2749 = vsel %vm2747, %v2691, 0
      %v2752 = vsel %vm2747, %v2692, 0
      %v2755 = vsel %vm2747, %v2693, 0
      %v2758 = vsel %vm2747, %v2694, 0
      %v2761 = vsel %vm2747, %v2695, 0
      %v2764 = vsel %vm2747, %v2696, 0
      %v2767 = vsel %vm2747, %v2697, 0
      %v2770 = vsel %vm2747, %v2698, 0
      %2772 = vmatpush.msra.mxu0 0.0
      %2773 = vmatpush.msra.mxu0 0.0
      %2774 = vmatpush.msra.mxu0 0.0
      %2775 = vmatpush.msra.mxu0 0.0
      %2776 = vmatpush.msra.mxu0 0.0
      %2777 = vmatpush.msra.mxu0 0.0
      %2778 = vmatpush.msra.mxu0 0.0
      %2779 = vmatpush.msra.mxu0 0.0
      %2780 = vmatpush.msra.mxu0 %v2683
      %2781 = vmatpush.msra.mxu0 %v2675
      %2782 = vmatpush.msra.mxu0 %v2667
      %2783 = vmatpush.msra.mxu0 %v2659
      %2784 = vmatpush.msra.mxu0 %v2651
      %2785 = vmatpush.msra.mxu0 %v2643
      %2786 = vmatpush.msra.mxu0 %v2635
      %2787 = vmatpush.msra.mxu0 %v2627
      %2788 = vmatmul.f32.gmra.mxu0 %v2749
      %v2789 = vpop.f32.mrf.mxu0
      %v2790 = vadd.f32 %v2710, %v2789
      %2791 = vmatmul.f32.gmra.mxu0 %v2752
      %v2792 = vpop.f32.mrf.mxu0
      %v2793 = vadd.f32 %v2715, %v2792
      %2794 = vmatmul.f32.gmra.mxu0 %v2755
      %v2795 = vpop.f32.mrf.mxu0
      %v2796 = vadd.f32 %v2720, %v2795
      %2797 = vmatmul.f32.gmra.mxu0 %v2758
      %v2798 = vpop.f32.mrf.mxu0
      %v2799 = vadd.f32 %v2725, %v2798
      %2800 = vmatmul.f32.gmra.mxu0 %v2761
      %v2801 = vpop.f32.mrf.mxu0
      %v2802 = vadd.f32 %v2730, %v2801
      %2803 = vmatmul.f32.gmra.mxu0 %v2764
      %v2804 = vpop.f32.mrf.mxu0
      %v2805 = vadd.f32 %v2735, %v2804
      %2806 = vmatmul.f32.gmra.mxu0 %v2767
      %v2807 = vpop.f32.mrf.mxu0
      %v2808 = vadd.f32 %v2740, %v2807
      %2809 = vmatmul.f32.gmra.mxu0 %v2770
      %v2810 = vpop.f32.mrf.mxu0
      %v2811 = vadd.f32 %v2745, %v2810
      %2812 = vdwg.mxu0
      %2813 = vmatpush.msra.mxu0 0.0
      %2814 = vmatpush.msra.mxu0 0.0
      %2815 = vmatpush.msra.mxu0 0.0
      %2816 = vmatpush.msra.mxu0 0.0
      %2817 = vmatpush.msra.mxu0 0.0
      %2818 = vmatpush.msra.mxu0 0.0
      %2819 = vmatpush.msra.mxu0 0.0
      %2820 = vmatpush.msra.mxu0 0.0
      %2821 = vmatpush.msra.mxu0 %v2684
      %2822 = vmatpush.msra.mxu0 %v2676
      %2823 = vmatpush.msra.mxu0 %v2668
      %2824 = vmatpush.msra.mxu0 %v2660
      %2825 = vmatpush.msra.mxu0 %v2652
      %2826 = vmatpush.msra.mxu0 %v2644
      %2827 = vmatpush.msra.mxu0 %v2636
      %2828 = vmatpush.msra.mxu0 %v2628
      %2829 = vmatmul.f32.gmra.mxu0 %v2749
      %v2830 = vpop.f32.mrf.mxu0
      %v2831 = vadd.f32 %v2710, %v2830
      %2832 = vmatmul.f32.gmra.mxu0 %v2752
      %v2833 = vpop.f32.mrf.mxu0
      %v2834 = vadd.f32 %v2715, %v2833
      %2835 = vmatmul.f32.gmra.mxu0 %v2755
      %v2836 = vpop.f32.mrf.mxu0
      %v2837 = vadd.f32 %v2720, %v2836
      %2838 = vmatmul.f32.gmra.mxu0 %v2758
      %v2839 = vpop.f32.mrf.mxu0
      %v2840 = vadd.f32 %v2725, %v2839
      %2841 = vmatmul.f32.gmra.mxu0 %v2761
      %v2842 = vpop.f32.mrf.mxu0
      %v2843 = vadd.f32 %v2730, %v2842
      %2844 = vmatmul.f32.gmra.mxu0 %v2764
      %v2845 = vpop.f32.mrf.mxu0
      %v2846 = vadd.f32 %v2735, %v2845
      %2847 = vmatmul.f32.gmra.mxu0 %v2767
      %v2848 = vpop.f32.mrf.mxu0
      %v2849 = vadd.f32 %v2740, %v2848
      %2850 = vmatmul.f32.gmra.mxu0 %v2770
      %v2851 = vpop.f32.mrf.mxu0
      %v2852 = vadd.f32 %v2745, %v2851
      %2853 = vdwg.mxu0
      %2854 = vmatpush.msra.mxu0 0.0
      %2855 = vmatpush.msra.mxu0 0.0
      %2856 = vmatpush.msra.mxu0 0.0
      %2857 = vmatpush.msra.mxu0 0.0
      %2858 = vmatpush.msra.mxu0 0.0
      %2859 = vmatpush.msra.mxu0 0.0
      %2860 = vmatpush.msra.mxu0 0.0
      %2861 = vmatpush.msra.mxu0 0.0
      %2862 = vmatpush.msra.mxu0 %v2685
      %2863 = vmatpush.msra.mxu0 %v2677
      %2864 = vmatpush.msra.mxu0 %v2669
      %2865 = vmatpush.msra.mxu0 %v2661
      %2866 = vmatpush.msra.mxu0 %v2653
      %2867 = vmatpush.msra.mxu0 %v2645
      %2868 = vmatpush.msra.mxu0 %v2637
      %2869 = vmatpush.msra.mxu0 %v2629
      %2870 = vmatmul.f32.gmra.mxu0 %v2749
      %v2871 = vpop.f32.mrf.mxu0
      %v2872 = vadd.f32 %v2710, %v2871
      %2873 = vmatmul.f32.gmra.mxu0 %v2752
      %v2874 = vpop.f32.mrf.mxu0
      %v2875 = vadd.f32 %v2715, %v2874
      %2876 = vmatmul.f32.gmra.mxu0 %v2755
      %v2877 = vpop.f32.mrf.mxu0
      %v2878 = vadd.f32 %v2720, %v2877
      %2879 = vmatmul.f32.gmra.mxu0 %v2758
      %v2880 = vpop.f32.mrf.mxu0
      %v2881 = vadd.f32 %v2725, %v2880
      %2882 = vmatmul.f32.gmra.mxu0 %v2761
      %v2883 = vpop.f32.mrf.mxu0
      %v2884 = vadd.f32 %v2730, %v2883
      %2885 = vmatmul.f32.gmra.mxu0 %v2764
      %v2886 = vpop.f32.mrf.mxu0
      %v2887 = vadd.f32 %v2735, %v2886
      %2888 = vmatmul.f32.gmra.mxu0 %v2767
      %v2889 = vpop.f32.mrf.mxu0
      %v2890 = vadd.f32 %v2740, %v2889
      %2891 = vmatmul.f32.gmra.mxu0 %v2770
      %v2892 = vpop.f32.mrf.mxu0
      %v2893 = vadd.f32 %v2745, %v2892
      %2894 = vdwg.mxu0
      %2895 = vmatpush.msra.mxu0 0.0
      %2896 = vmatpush.msra.mxu0 0.0
      %2897 = vmatpush.msra.mxu0 0.0
      %2898 = vmatpush.msra.mxu0 0.0
      %2899 = vmatpush.msra.mxu0 0.0
      %2900 = vmatpush.msra.mxu0 0.0
      %2901 = vmatpush.msra.mxu0 0.0
      %2902 = vmatpush.msra.mxu0 0.0
      %2903 = vmatpush.msra.mxu0 %v2686
      %2904 = vmatpush.msra.mxu0 %v2678
      %2905 = vmatpush.msra.mxu0 %v2670
      %2906 = vmatpush.msra.mxu0 %v2662
      %2907 = vmatpush.msra.mxu0 %v2654
      %2908 = vmatpush.msra.mxu0 %v2646
      %2909 = vmatpush.msra.mxu0 %v2638
      %2910 = vmatpush.msra.mxu0 %v2630
      %2911 = vmatmul.f32.gmra.mxu0 %v2749
      %v2912 = vpop.f32.mrf.mxu0
      %v2913 = vadd.f32 %v2710, %v2912
      %2914 = vmatmul.f32.gmra.mxu0 %v2752
      %v2915 = vpop.f32.mrf.mxu0
      %v2916 = vadd.f32 %v2715, %v2915
      %2917 = vmatmul.f32.gmra.mxu0 %v2755
      %v2918 = vpop.f32.mrf.mxu0
      %v2919 = vadd.f32 %v2720, %v2918
      %2920 = vmatmul.f32.gmra.mxu0 %v2758
      %v2921 = vpop.f32.mrf.mxu0
      %v2922 = vadd.f32 %v2725, %v2921
      %2923 = vmatmul.f32.gmra.mxu0 %v2761
      %v2924 = vpop.f32.mrf.mxu0
      %v2925 = vadd.f32 %v2730, %v2924
      %2926 = vmatmul.f32.gmra.mxu0 %v2764
      %v2927 = vpop.f32.mrf.mxu0
      %v2928 = vadd.f32 %v2735, %v2927
      %2929 = vmatmul.f32.gmra.mxu0 %v2767
      %v2930 = vpop.f32.mrf.mxu0
      %v2931 = vadd.f32 %v2740, %v2930
      %2932 = vmatmul.f32.gmra.mxu0 %v2770
      %v2933 = vpop.f32.mrf.mxu0
      %v2934 = vadd.f32 %v2745, %v2933
      %2935 = vdwg.mxu0
      %2936 = vmatpush.msra.mxu0 0.0
      %2937 = vmatpush.msra.mxu0 0.0
      %2938 = vmatpush.msra.mxu0 0.0
      %2939 = vmatpush.msra.mxu0 0.0
      %2940 = vmatpush.msra.mxu0 0.0
      %2941 = vmatpush.msra.mxu0 0.0
      %2942 = vmatpush.msra.mxu0 0.0
      %2943 = vmatpush.msra.mxu0 0.0
      %2944 = vmatpush.msra.mxu0 %v2687
      %2945 = vmatpush.msra.mxu0 %v2679
      %2946 = vmatpush.msra.mxu0 %v2671
      %2947 = vmatpush.msra.mxu0 %v2663
      %2948 = vmatpush.msra.mxu0 %v2655
      %2949 = vmatpush.msra.mxu0 %v2647
      %2950 = vmatpush.msra.mxu0 %v2639
      %2951 = vmatpush.msra.mxu0 %v2631
      %2952 = vmatmul.f32.gmra.mxu0 %v2749
      %v2953 = vpop.f32.mrf.mxu0
      %v2954 = vadd.f32 %v2710, %v2953
      %2955 = vmatmul.f32.gmra.mxu0 %v2752
      %v2956 = vpop.f32.mrf.mxu0
      %v2957 = vadd.f32 %v2715, %v2956
      %2958 = vmatmul.f32.gmra.mxu0 %v2755
      %v2959 = vpop.f32.mrf.mxu0
      %v2960 = vadd.f32 %v2720, %v2959
      %2961 = vmatmul.f32.gmra.mxu0 %v2758
      %v2962 = vpop.f32.mrf.mxu0
      %v2963 = vadd.f32 %v2725, %v2962
      %2964 = vmatmul.f32.gmra.mxu0 %v2761
      %v2965 = vpop.f32.mrf.mxu0
      %v2966 = vadd.f32 %v2730, %v2965
      %2967 = vmatmul.f32.gmra.mxu0 %v2764
      %v2968 = vpop.f32.mrf.mxu0
      %v2969 = vadd.f32 %v2735, %v2968
      %2970 = vmatmul.f32.gmra.mxu0 %v2767
      %v2971 = vpop.f32.mrf.mxu0
      %v2972 = vadd.f32 %v2740, %v2971
      %2973 = vmatmul.f32.gmra.mxu0 %v2770
      %v2974 = vpop.f32.mrf.mxu0
      %v2975 = vadd.f32 %v2745, %v2974
      %2976 = vdwg.mxu0
      %2977 = vmatpush.msra.mxu0 0.0
      %2978 = vmatpush.msra.mxu0 0.0
      %2979 = vmatpush.msra.mxu0 0.0
      %2980 = vmatpush.msra.mxu0 0.0
      %2981 = vmatpush.msra.mxu0 0.0
      %2982 = vmatpush.msra.mxu0 0.0
      %2983 = vmatpush.msra.mxu0 0.0
      %2984 = vmatpush.msra.mxu0 0.0
      %2985 = vmatpush.msra.mxu0 %v2688
      %2986 = vmatpush.msra.mxu0 %v2680
      %2987 = vmatpush.msra.mxu0 %v2672
      %2988 = vmatpush.msra.mxu0 %v2664
      %2989 = vmatpush.msra.mxu0 %v2656
      %2990 = vmatpush.msra.mxu0 %v2648
      %2991 = vmatpush.msra.mxu0 %v2640
      %2992 = vmatpush.msra.mxu0 %v2632
      %2993 = vmatmul.f32.gmra.mxu0 %v2749
      %v2994 = vpop.f32.mrf.mxu0
      %v2995 = vadd.f32 %v2710, %v2994
      %2996 = vmatmul.f32.gmra.mxu0 %v2752
      %v2997 = vpop.f32.mrf.mxu0
      %v2998 = vadd.f32 %v2715, %v2997
      %2999 = vmatmul.f32.gmra.mxu0 %v2755
      %v3000 = vpop.f32.mrf.mxu0
      %v3001 = vadd.f32 %v2720, %v3000
      %3002 = vmatmul.f32.gmra.mxu0 %v2758
      %v3003 = vpop.f32.mrf.mxu0
      %v3004 = vadd.f32 %v2725, %v3003
      %3005 = vmatmul.f32.gmra.mxu0 %v2761
      %v3006 = vpop.f32.mrf.mxu0
      %v3007 = vadd.f32 %v2730, %v3006
      %3008 = vmatmul.f32.gmra.mxu0 %v2764
      %v3009 = vpop.f32.mrf.mxu0
      %v3010 = vadd.f32 %v2735, %v3009
      %3011 = vmatmul.f32.gmra.mxu0 %v2767
      %v3012 = vpop.f32.mrf.mxu0
      %v3013 = vadd.f32 %v2740, %v3012
      %3014 = vmatmul.f32.gmra.mxu0 %v2770
      %v3015 = vpop.f32.mrf.mxu0
      %v3016 = vadd.f32 %v2745, %v3015
      %3017 = vdwg.mxu0
      %3018 = vmatpush.msra.mxu0 0.0
      %3019 = vmatpush.msra.mxu0 0.0
      %3020 = vmatpush.msra.mxu0 0.0
      %3021 = vmatpush.msra.mxu0 0.0
      %3022 = vmatpush.msra.mxu0 0.0
      %3023 = vmatpush.msra.mxu0 0.0
      %3024 = vmatpush.msra.mxu0 0.0
      %3025 = vmatpush.msra.mxu0 0.0
      %3026 = vmatpush.msra.mxu0 %v2689
      %3027 = vmatpush.msra.mxu0 %v2681
      %3028 = vmatpush.msra.mxu0 %v2673
      %3029 = vmatpush.msra.mxu0 %v2665
      %3030 = vmatpush.msra.mxu0 %v2657
      %3031 = vmatpush.msra.mxu0 %v2649
      %3032 = vmatpush.msra.mxu0 %v2641
      %3033 = vmatpush.msra.mxu0 %v2633
      %3034 = vmatmul.f32.gmra.mxu0 %v2749
      %v3035 = vpop.f32.mrf.mxu0
      %v3036 = vadd.f32 %v2710, %v3035
      %3037 = vmatmul.f32.gmra.mxu0 %v2752
      %v3038 = vpop.f32.mrf.mxu0
      %v3039 = vadd.f32 %v2715, %v3038
      %3040 = vmatmul.f32.gmra.mxu0 %v2755
      %v3041 = vpop.f32.mrf.mxu0
      %v3042 = vadd.f32 %v2720, %v3041
      %3043 = vmatmul.f32.gmra.mxu0 %v2758
      %v3044 = vpop.f32.mrf.mxu0
      %v3045 = vadd.f32 %v2725, %v3044
      %3046 = vmatmul.f32.gmra.mxu0 %v2761
      %v3047 = vpop.f32.mrf.mxu0
      %v3048 = vadd.f32 %v2730, %v3047
      %3049 = vmatmul.f32.gmra.mxu0 %v2764
      %v3050 = vpop.f32.mrf.mxu0
      %v3051 = vadd.f32 %v2735, %v3050
      %3052 = vmatmul.f32.gmra.mxu0 %v2767
      %v3053 = vpop.f32.mrf.mxu0
      %v3054 = vadd.f32 %v2740, %v3053
      %3055 = vmatmul.f32.gmra.mxu0 %v2770
      %v3056 = vpop.f32.mrf.mxu0
      %v3057 = vadd.f32 %v2745, %v3056
      %3058 = vdwg.mxu0
      %3059 = vmatpush.msra.mxu0 0.0
      %3060 = vmatpush.msra.mxu0 0.0
      %3061 = vmatpush.msra.mxu0 0.0
      %3062 = vmatpush.msra.mxu0 0.0
      %3063 = vmatpush.msra.mxu0 0.0
      %3064 = vmatpush.msra.mxu0 0.0
      %3065 = vmatpush.msra.mxu0 0.0
      %3066 = vmatpush.msra.mxu0 0.0
      %3067 = vmatpush.msra.mxu0 %v2690
      %3068 = vmatpush.msra.mxu0 %v2682
      %3069 = vmatpush.msra.mxu0 %v2674
      %3070 = vmatpush.msra.mxu0 %v2666
      %3071 = vmatpush.msra.mxu0 %v2658
      %3072 = vmatpush.msra.mxu0 %v2650
      %3073 = vmatpush.msra.mxu0 %v2642
      %3074 = vmatpush.msra.mxu0 %v2634
      %3075 = vmatmul.f32.gmra.mxu0 %v2749
      %v3076 = vpop.f32.mrf.mxu0
      %v3077 = vadd.f32 %v2710, %v3076
      %3078 = vmatmul.f32.gmra.mxu0 %v2752
      %v3079 = vpop.f32.mrf.mxu0
      %v3080 = vadd.f32 %v2715, %v3079
      %3081 = vmatmul.f32.gmra.mxu0 %v2755
      %v3082 = vpop.f32.mrf.mxu0
      %v3083 = vadd.f32 %v2720, %v3082
      %3084 = vmatmul.f32.gmra.mxu0 %v2758
      %v3085 = vpop.f32.mrf.mxu0
      %v3086 = vadd.f32 %v2725, %v3085
      %3087 = vmatmul.f32.gmra.mxu0 %v2761
      %v3088 = vpop.f32.mrf.mxu0
      %v3089 = vadd.f32 %v2730, %v3088
      %3090 = vmatmul.f32.gmra.mxu0 %v2764
      %v3091 = vpop.f32.mrf.mxu0
      %v3092 = vadd.f32 %v2735, %v3091
      %3093 = vmatmul.f32.gmra.mxu0 %v2767
      %v3094 = vpop.f32.mrf.mxu0
      %v3095 = vadd.f32 %v2740, %v3094
      %3096 = vmatmul.f32.gmra.mxu0 %v2770
      %v3097 = vpop.f32.mrf.mxu0
      %v3098 = vadd.f32 %v2745, %v3097
      %3099 = vdwg.mxu0
      %v3100 = vmax.f32 %v2790, 0.0
      %v3101 = vmax.f32 %v2831, 0.0
      %v3102 = vmax.f32 %v2872, 0.0
      %v3103 = vmax.f32 %v2913, 0.0
      %v3104 = vmax.f32 %v2954, 0.0
      %v3105 = vmax.f32 %v2995, 0.0
      %v3106 = vmax.f32 %v3036, 0.0
      %v3107 = vmax.f32 %v3077, 0.0
      %v3108 = vmax.f32 %v2793, 0.0
      %v3109 = vmax.f32 %v2834, 0.0
      %v3110 = vmax.f32 %v2875, 0.0
      %v3111 = vmax.f32 %v2916, 0.0
      %v3112 = vmax.f32 %v2957, 0.0
      %v3113 = vmax.f32 %v2998, 0.0
      %v3114 = vmax.f32 %v3039, 0.0
      %v3115 = vmax.f32 %v3080, 0.0
      %v3116 = vmax.f32 %v2796, 0.0
      %v3117 = vmax.f32 %v2837, 0.0
      %v3118 = vmax.f32 %v2878, 0.0
      %v3119 = vmax.f32 %v2919, 0.0
      %v3120 = vmax.f32 %v2960, 0.0
      %v3121 = vmax.f32 %v3001, 0.0
      %v3122 = vmax.f32 %v3042, 0.0
      %v3123 = vmax.f32 %v3083, 0.0
      %v3124 = vmax.f32 %v2799, 0.0
      %v3125 = vmax.f32 %v2840, 0.0
      %v3126 = vmax.f32 %v2881, 0.0
      %v3127 = vmax.f32 %v2922, 0.0
      %v3128 = vmax.f32 %v2963, 0.0
      %v3129 = vmax.f32 %v3004, 0.0
      %v3130 = vmax.f32 %v3045, 0.0
      %v3131 = vmax.f32 %v3086, 0.0
      %v3132 = vmax.f32 %v2802, 0.0
      %v3133 = vmax.f32 %v2843, 0.0
      %v3134 = vmax.f32 %v2884, 0.0
      %v3135 = vmax.f32 %v2925, 0.0
      %v3136 = vmax.f32 %v2966, 0.0
      %v3137 = vmax.f32 %v3007, 0.0
      %v3138 = vmax.f32 %v3048, 0.0
      %v3139 = vmax.f32 %v3089, 0.0
      %v3140 = vmax.f32 %v2805, 0.0
      %v3141 = vmax.f32 %v2846, 0.0
      %v3142 = vmax.f32 %v2887, 0.0
      %v3143 = vmax.f32 %v2928, 0.0
      %v3144 = vmax.f32 %v2969, 0.0
      %v3145 = vmax.f32 %v3010, 0.0
      %v3146 = vmax.f32 %v3051, 0.0
      %v3147 = vmax.f32 %v3092, 0.0
      %v3148 = vmax.f32 %v2808, 0.0
      %v3149 = vmax.f32 %v2849, 0.0
      %v3150 = vmax.f32 %v2890, 0.0
      %v3151 = vmax.f32 %v2931, 0.0
      %v3152 = vmax.f32 %v2972, 0.0
      %v3153 = vmax.f32 %v3013, 0.0
      %v3154 = vmax.f32 %v3054, 0.0
      %v3155 = vmax.f32 %v3095, 0.0
      %v3156 = vmax.f32 %v2811, 0.0
      %v3157 = vmax.f32 %v2852, 0.0
      %v3158 = vmax.f32 %v2893, 0.0
      %v3159 = vmax.f32 %v2934, 0.0
      %v3160 = vmax.f32 %v2975, 0.0
      %v3161 = vmax.f32 %v3016, 0.0
      %v3162 = vmax.f32 %v3057, 0.0
      %v3163 = vmax.f32 %v3098, 0.0
      %v3164 = vld [vmem:[%s5] sm:$0xf]
      %v3165 = vld [vmem:[%s6] sm:$0xf]
      %3167 = vset.pattern.permute.xlu0 0
      %3168 = vperm.xlu0 %3167, %v3165
      %v3169 = vpop.permute.xlu0 %3168
      %v3172 = vsel %vm2747, %v3164, 0
      %3174 = vmatpush.msra.mxu0 0.0
      %3175 = vmatpush.msra.mxu0 0.0
      %3176 = vmatpush.msra.mxu0 0.0
      %3177 = vmatpush.msra.mxu0 0.0
      %3178 = vmatpush.msra.mxu0 0.0
      %3179 = vmatpush.msra.mxu0 0.0
      %3180 = vmatpush.msra.mxu0 0.0
      %3181 = vmatpush.msra.mxu0 0.0
      %3182 = vmatpush.msra.mxu0 %v3156
      %3183 = vmatpush.msra.mxu0 %v3148
      %3184 = vmatpush.msra.mxu0 %v3140
      %3185 = vmatpush.msra.mxu0 %v3132
      %3186 = vmatpush.msra.mxu0 %v3124
      %3187 = vmatpush.msra.mxu0 %v3116
      %3188 = vmatpush.msra.mxu0 %v3108
      %3189 = vmatpush.msra.mxu0 %v3100
      %3190 = vmatmul.f32.gmra.mxu0 %v3172
      %v3191 = vpop.f32.mrf.mxu0
      %v3192 = vadd.f32 %v3169, %v3191
      %3193 = vdwg.mxu0
      %3194 = vmatpush.msra.mxu0 0.0
      %3195 = vmatpush.msra.mxu0 0.0
      %3196 = vmatpush.msra.mxu0 0.0
      %3197 = vmatpush.msra.mxu0 0.0
      %3198 = vmatpush.msra.mxu0 0.0
      %3199 = vmatpush.msra.mxu0 0.0
      %3200 = vmatpush.msra.mxu0 0.0
      %3201 = vmatpush.msra.mxu0 0.0
      %3202 = vmatpush.msra.mxu0 %v3157
      %3203 = vmatpush.msra.mxu0 %v3149
      %3204 = vmatpush.msra.mxu0 %v3141
      %3205 = vmatpush.msra.mxu0 %v3133
      %3206 = vmatpush.msra.mxu0 %v3125
      %3207 = vmatpush.msra.mxu0 %v3117
      %3208 = vmatpush.msra.mxu0 %v3109
      %3209 = vmatpush.msra.mxu0 %v3101
      %3210 = vmatmul.f32.gmra.mxu0 %v3172
      %v3211 = vpop.f32.mrf.mxu0
      %v3212 = vadd.f32 %v3169, %v3211
      %3213 = vdwg.mxu0
      %3214 = vmatpush.msra.mxu0 0.0
      %3215 = vmatpush.msra.mxu0 0.0
      %3216 = vmatpush.msra.mxu0 0.0
      %3217 = vmatpush.msra.mxu0 0.0
      %3218 = vmatpush.msra.mxu0 0.0
      %3219 = vmatpush.msra.mxu0 0.0
      %3220 = vmatpush.msra.mxu0 0.0
      %3221 = vmatpush.msra.mxu0 0.0
      %3222 = vmatpush.msra.mxu0 %v3158
      %3223 = vmatpush.msra.mxu0 %v3150
      %3224 = vmatpush.msra.mxu0 %v3142
      %3225 = vmatpush.msra.mxu0 %v3134
      %3226 = vmatpush.msra.mxu0 %v3126
      %3227 = vmatpush.msra.mxu0 %v3118
      %3228 = vmatpush.msra.mxu0 %v3110
      %3229 = vmatpush.msra.mxu0 %v3102
      %3230 = vmatmul.f32.gmra.mxu0 %v3172
      %v3231 = vpop.f32.mrf.mxu0
      %v3232 = vadd.f32 %v3169, %v3231
      %3233 = vdwg.mxu0
      %3234 = vmatpush.msra.mxu0 0.0
      %3235 = vmatpush.msra.mxu0 0.0
      %3236 = vmatpush.msra.mxu0 0.0
      %3237 = vmatpush.msra.mxu0 0.0
      %3238 = vmatpush.msra.mxu0 0.0
      %3239 = vmatpush.msra.mxu0 0.0
      %3240 = vmatpush.msra.mxu0 0.0
      %3241 = vmatpush.msra.mxu0 0.0
      %3242 = vmatpush.msra.mxu0 %v3159
      %3243 = vmatpush.msra.mxu0 %v3151
      %3244 = vmatpush.msra.mxu0 %v3143
      %3245 = vmatpush.msra.mxu0 %v3135
      %3246 = vmatpush.msra.mxu0 %v3127
      %3247 = vmatpush.msra.mxu0 %v3119
      %3248 = vmatpush.msra.mxu0 %v3111
      %3249 = vmatpush.msra.mxu0 %v3103
      %3250 = vmatmul.f32.gmra.mxu0 %v3172
      %v3251 = vpop.f32.mrf.mxu0
      %v3252 = vadd.f32 %v3169, %v3251
      %3253 = vdwg.mxu0
      %3254 = vmatpush.msra.mxu0 0.0
      %3255 = vmatpush.msra.mxu0 0.0
      %3256 = vmatpush.msra.mxu0 0.0
      %3257 = vmatpush.msra.mxu0 0.0
      %3258 = vmatpush.msra.mxu0 0.0
      %3259 = vmatpush.msra.mxu0 0.0
      %3260 = vmatpush.msra.mxu0 0.0
      %3261 = vmatpush.msra.mxu0 0.0
      %3262 = vmatpush.msra.mxu0 %v3160
      %3263 = vmatpush.msra.mxu0 %v3152
      %3264 = vmatpush.msra.mxu0 %v3144
      %3265 = vmatpush.msra.mxu0 %v3136
      %3266 = vmatpush.msra.mxu0 %v3128
      %3267 = vmatpush.msra.mxu0 %v3120
      %3268 = vmatpush.msra.mxu0 %v3112
      %3269 = vmatpush.msra.mxu0 %v3104
      %3270 = vmatmul.f32.gmra.mxu0 %v3172
      %v3271 = vpop.f32.mrf.mxu0
      %v3272 = vadd.f32 %v3169, %v3271
      %3273 = vdwg.mxu0
      %3274 = vmatpush.msra.mxu0 0.0
      %3275 = vmatpush.msra.mxu0 0.0
      %3276 = vmatpush.msra.mxu0 0.0
      %3277 = vmatpush.msra.mxu0 0.0
      %3278 = vmatpush.msra.mxu0 0.0
      %3279 = vmatpush.msra.mxu0 0.0
      %3280 = vmatpush.msra.mxu0 0.0
      %3281 = vmatpush.msra.mxu0 0.0
      %3282 = vmatpush.msra.mxu0 %v3161
      %3283 = vmatpush.msra.mxu0 %v3153
      %3284 = vmatpush.msra.mxu0 %v3145
      %3285 = vmatpush.msra.mxu0 %v3137
      %3286 = vmatpush.msra.mxu0 %v3129
      %3287 = vmatpush.msra.mxu0 %v3121
      %3288 = vmatpush.msra.mxu0 %v3113
      %3289 = vmatpush.msra.mxu0 %v3105
      %3290 = vmatmul.f32.gmra.mxu0 %v3172
      %v3291 = vpop.f32.mrf.mxu0
      %v3292 = vadd.f32 %v3169, %v3291
      %3293 = vdwg.mxu0
      %3294 = vmatpush.msra.mxu0 0.0
      %3295 = vmatpush.msra.mxu0 0.0
      %3296 = vmatpush.msra.mxu0 0.0
      %3297 = vmatpush.msra.mxu0 0.0
      %3298 = vmatpush.msra.mxu0 0.0
      %3299 = vmatpush.msra.mxu0 0.0
      %3300 = vmatpush.msra.mxu0 0.0
      %3301 = vmatpush.msra.mxu0 0.0
      %3302 = vmatpush.msra.mxu0 %v3162
      %3303 = vmatpush.msra.mxu0 %v3154
      %3304 = vmatpush.msra.mxu0 %v3146
      %3305 = vmatpush.msra.mxu0 %v3138
      %3306 = vmatpush.msra.mxu0 %v3130
      %3307 = vmatpush.msra.mxu0 %v3122
      %3308 = vmatpush.msra.mxu0 %v3114
      %3309 = vmatpush.msra.mxu0 %v3106
      %3310 = vmatmul.f32.gmra.mxu0 %v3172
      %v3311 = vpop.f32.mrf.mxu0
      %v3312 = vadd.f32 %v3169, %v3311
      %3313 = vdwg.mxu0
      %3314 = vmatpush.msra.mxu0 0.0
      %3315 = vmatpush.msra.mxu0 0.0
      %3316 = vmatpush.msra.mxu0 0.0
      %3317 = vmatpush.msra.mxu0 0.0
      %3318 = vmatpush.msra.mxu0 0.0
      %3319 = vmatpush.msra.mxu0 0.0
      %3320 = vmatpush.msra.mxu0 0.0
      %3321 = vmatpush.msra.mxu0 0.0
      %3322 = vmatpush.msra.mxu0 %v3163
      %3323 = vmatpush.msra.mxu0 %v3155
      %3324 = vmatpush.msra.mxu0 %v3147
      %3325 = vmatpush.msra.mxu0 %v3139
      %3326 = vmatpush.msra.mxu0 %v3131
      %3327 = vmatpush.msra.mxu0 %v3123
      %3328 = vmatpush.msra.mxu0 %v3115
      %3329 = vmatpush.msra.mxu0 %v3107
      %3330 = vmatmul.f32.gmra.mxu0 %v3172
      %v3331 = vpop.f32.mrf.mxu0
      %v3332 = vadd.f32 %v3169, %v3331
      %3333 = vdwg.mxu0
      %v3342 = vrot.slane %v3212, 4
      %v3343 = vrot.slane %v3252, 4
      %v3344 = vrot.slane %v3292, 4
      %v3345 = vrot.slane %v3332, 4
      %vm3346 = vcmask 1043456
      %v3347 = vsel %vm3346, %v3192, %v3342
      %v3348 = vsel %vm3346, %v3232, %v3343
      %v3349 = vsel %vm3346, %v3272, %v3344
      %v3350 = vsel %vm3346, %v3312, %v3345
      %3355 = vst [vmem:[%s280] sm:$0xff] %v3347
      %3356 = vst [vmem:[%s280 + $0x8] sm:$0xff] %v3348
      %3357 = vst [vmem:[%s280 + $0x10] sm:$0xff] %v3349
      %3358 = vst [vmem:[%s280 + $0x18] sm:$0xff] %v3350
      %s3359 = smul.u32 8, %s18
      %p3360 = scmp.lt.s32.totalorder %s3359, 31
      %s3361 = scalar_select %p3360, %s3359, 31
      %s3362 = smul.addr %s3361, 4
      %s3363 = scalar_lea.vmem %s7, %s3362
      // Predicated region
      $region49: #{encoding_with_network.1} parent=47 // pred_check
        %p3364 = pneg %p188
      $region50: #{encoding_with_network.1} parent=47 // pred_check_branch
        %3366 = sbr.rel (%p3364) target = $region52
      $region51: #{encoding_with_network.1} parent=47 // pred_region
        %s3367 = smul.u32 8, %s18
      $region52: #{encoding_with_network.1} parent=47 // pred_fallthru
        _
    $region48: #{encoding_with_network.1} parent=5 // pred_fallthru
      _
    %p3368 = scmp.le.s32.totalorder 2, %s13
    // Predicated region
    $region53: #{encoding_with_network.1} parent=5 // pred_check
      %p3369 = pneg %p3368
    $region54: #{encoding_with_network.1} parent=5 // pred_check_branch
      %3371 = sbr.rel (%p3369) target = $region56
    $region55: #{encoding_with_network.1} parent=5 // pred_region
      %s3372 = ssub.s32 %s13, 2
      // Predicated region
      $region57: #{encoding_with_network.1} parent=55 // pred_check
        %p3373 = pneg %p194
      $region58: #{encoding_with_network.1} parent=55 // pred_check_branch
        %3375 = sbr.rel (%p3373) target = $region60
      $region59: #{encoding_with_network.1} parent=55 // pred_region
        %s3376 = smul.u32 8, %s19
        %p3377 = scmp.lt.s32.totalorder %s3376, 31
        %s3378 = scalar_select %p3377, %s3376, 31
        %s3379 = smul.addr %s3378, 4
        %s3380 = scalar_lea.vmem %s7, %s3379
      $region60: #{encoding_with_network.1} parent=55 // pred_fallthru
        _
    $region56: #{encoding_with_network.1} parent=5 // pred_fallthru
      _
  $region6: #{encoding_with_network.1} parent=0 // loop_footer
    %s17 = sadd.s32 1, %s13
  $region7: #{encoding_with_network.1} parent=0 // loop_footer_branch
    %12 = sbr.rel target = $region3
  $region8: #{encoding_with_network.1} parent=0 // loop_exit
    _

</llo_original>
